<compile_context>
chip_gen: v5e
topology: v5e:2x2
jax: 0.10.0
libtpu: 0.0.40
codegen_flags: <defaults>
</compile_context>

<pallas_src>
import functools

import jax
import jax.numpy as jnp
from jax.experimental import pallas as pl
from jax.experimental.pallas import tpu as pltpu


def _mlp_norm_kernel(t_ref, h_ref, ttab_ref, w1_ref, b1_ref, w2_ref, b2_ref,
                     w3_ref, b3_ref, o_ref):
    # Timestep-embedding contribution: gather rows of the tiny pre-projected
    # table (emb @ W1_t) with a one-hot bf16 MXU matmul — no HBM-side gather.
    t_idx = t_ref[...]                                            # (tm, 1) int32
    n_t = ttab_ref.shape[0]
    lanes = jax.lax.broadcasted_iota(jnp.int32, (t_idx.shape[0], n_t), 1)
    onehot = (lanes == t_idx).astype(jnp.bfloat16)                # (tm, n_t)
    t_proj = jnp.dot(onehot, ttab_ref[...],
                     preferred_element_type=jnp.float32)          # (tm, H1) f32

    # Layer 1: h cast to bf16 in-kernel (VPU slot is free in a DMA-bound
    # kernel), f32 accumulation on the MXU; dropout == identity in eval mode.
    a1 = jnp.dot(h_ref[...].astype(jnp.bfloat16), w1_ref[...],
                 preferred_element_type=jnp.float32)
    h1 = jnp.maximum(a1 + t_proj + b1_ref[...], 0.0)

    # Layer 2
    a2 = jnp.dot(h1.astype(jnp.bfloat16), w2_ref[...],
                 preferred_element_type=jnp.float32)
    h2 = jnp.maximum(a2 + b2_ref[...], 0.0)

    # Layer 3
    y = jnp.dot(h2.astype(jnp.bfloat16), w3_ref[...],
                preferred_element_type=jnp.float32) + b3_ref[...]

    # F.normalize(y, dim=-1): y / max(||y||, 1e-12) == y * rsqrt(max(||y||^2, 1e-24))
    sq = jnp.sum(y * y, axis=-1, keepdims=True)
    o_ref[...] = (y * jax.lax.rsqrt(jnp.maximum(sq, 1e-24))).astype(o_ref.dtype)


def _round_up(x, m):
    return (x + m - 1) // m * m


def h_to_clip_joint_forward(h, t, params, *, tm=256, split_for_megacore=False):
    """h: (B, h_dim) f32, t: (B,) int -> (B, out_dim) f32, rows L2-normalized.

    tm: batch rows per grid step (raise to 512-1024 for large batches).
    split_for_megacore: force >=2 grid tiles even when B fits one tile; only
      useful on v7x (2 TensorCores/chip) — on v5e/v6e the grid is sequential.
    """
    emb = params["emb"]
    w1, b1 = params["w1"], params["b1"]
    w2, b2 = params["w2"], params["b2"]
    w3, b3 = params["w3"], params["b3"]

    B, h_dim = h.shape
    h1d = w1.shape[1]
    h2d = w2.shape[1]
    d_out = w3.shape[1]
    num_t = emb.shape[0]

    # Fold embedding lookup + concat into the first linear layer:
    #   [h, emb[t]] @ W1 == h @ W1[:h_dim] + (emb @ W1[h_dim:])[t]
    w1_h = w1[:h_dim]
    t_table = jnp.dot(emb, w1[h_dim:])                    # (num_timesteps, H1), tiny
    num_t_pad = max(_round_up(num_t, 128), 128)           # lane-clean one-hot K dim
    t_table = jnp.pad(t_table, ((0, num_t_pad - num_t), (0, 0)))

    # Tile heuristic: split only when the batch needs more than one tile (or
    # when explicitly requested for v7x megacore); pad B by <16 rows at most.
    n_tiles = max(1, pl.cdiv(B, tm))
    if split_for_megacore and n_tiles == 1 and B > 16:
        n_tiles = 2
    tm_eff = _round_up(pl.cdiv(B, n_tiles), 16)
    B_pad = _round_up(B, tm_eff)

    t2d = t.astype(jnp.int32).reshape(B, 1)
    if B_pad != B:
        h = jnp.pad(h, ((0, B_pad - B), (0, 0)))
        t2d = jnp.pad(t2d, ((0, B_pad - B), (0, 0)))      # pad rows -> index 0, sliced off

    grid = (B_pad // tm_eff,)
    out = pl.pallas_call(
        _mlp_norm_kernel,
        out_shape=jax.ShapeDtypeStruct((B_pad, d_out), jnp.float32),
        grid_spec=pltpu.PrefetchScalarGridSpec(
            num_scalar_prefetch=0,
            grid=grid,
            in_specs=[
                pl.BlockSpec((tm_eff, 1), lambda i: (i, 0)),        # t indices (int32)
                pl.BlockSpec((tm_eff, h_dim), lambda i: (i, 0)),    # h tile (f32)
                pl.BlockSpec((num_t_pad, h1d), lambda i: (0, 0)),   # t_table (bf16, resident)
                pl.BlockSpec((h_dim, h1d), lambda i: (0, 0)),       # W1_h (resident)
                pl.BlockSpec((1, h1d), lambda i: (0, 0)),           # b1
                pl.BlockSpec((h1d, h2d), lambda i: (0, 0)),         # W2
                pl.BlockSpec((1, h2d), lambda i: (0, 0)),           # b2
                pl.BlockSpec((h2d, d_out), lambda i: (0, 0)),       # W3
                pl.BlockSpec((1, d_out), lambda i: (0, 0)),         # b3
            ],
            out_specs=pl.BlockSpec((tm_eff, d_out), lambda i: (i, 0)),
        ),
        compiler_params=pltpu.CompilerParams(
            dimension_semantics=("parallel",),
        ),
    )(
        t2d, h,
        t_table.astype(jnp.bfloat16),
        w1_h.astype(jnp.bfloat16), b1.reshape(1, -1),
        w2.astype(jnp.bfloat16), b2.reshape(1, -1),
        w3.astype(jnp.bfloat16), b3.reshape(1, -1),
    )
    return out[:B]


def init_params(key, h_dim, t_dim, h1, h2, out_dim, num_timesteps):
    ks = jax.random.split(key, 7)
    d_in = h_dim + t_dim

    def lin(kw, fan_in, fan_out):
        bound = 1.0 / jnp.sqrt(fan_in)
        return jax.random.uniform(kw, (fan_in, fan_out), jnp.float32, -bound, bound)

    return {
        "emb": jax.random.normal(ks[0], (num_timesteps, t_dim), jnp.float32),
        "w1": lin(ks[1], d_in, h1),
        "b1": jax.random.uniform(ks[2], (h1,), jnp.float32, -0.01, 0.01),
        "w2": lin(ks[3], h1, h2),
        "b2": jax.random.uniform(ks[4], (h2,), jnp.float32, -0.01, 0.01),
        "w3": lin(ks[5], h2, out_dim),
        "b3": jax.random.uniform(ks[6], (out_dim,), jnp.float32, -0.01, 0.01),
    }


def _reference(h, t, p):
    """Full-precision (f32) JAX reference matching the PyTorch eval forward."""
    t_embed = jnp.take(p["emb"], t, axis=0)
    x = jnp.concatenate([h, t_embed], axis=-1)
    x = jnp.maximum(x @ p["w1"] + p["b1"], 0.0)
    x = jnp.maximum(x @ p["w2"] + p["b2"], 0.0)
    x = x @ p["w3"] + p["b3"]
    norm = jnp.sqrt(jnp.sum(x * x, axis=-1, keepdims=True))
    return x / jnp.maximum(norm, 1e-12)


if __name__ == "__main__":
    # Small, lane-aligned shapes consistent with the module structure. B=384
    # with tm=256 exercises the multi-tile path (2 x 192 rows, zero padding).
    B, H_DIM, T_DIM, H1, H2, OUT_DIM, NUM_T = 384, 256, 128, 512, 256, 128, 50

    key = jax.random.PRNGKey(0)
    kp, kh, kt = jax.random.split(key, 3)
    params = init_params(kp, H_DIM, T_DIM, H1, H2, OUT_DIM, NUM_T)

    h = jax.random.normal(kh, (B, H_DIM), jnp.float32)
    t = jax.random.randint(kt, (B,), 0, NUM_T, jnp.int32)

    fwd = jax.jit(functools.partial(h_to_clip_joint_forward, tm=256))
    out = jax.block_until_ready(fwd(h, t, params))

    ref = jax.block_until_ready(_reference(h, t, params))
    assert out.shape == (B, OUT_DIM)

    # Both outputs are (near-)unit rows: check angular agreement plus a
    # per-element bound, so bf16-path regressions are not masked.
    cos = jnp.sum(out * ref, axis=-1)
    max_abs_err = jnp.max(jnp.abs(out - ref))
    assert jnp.min(cos) > 0.999, f"cosine mismatch: min cos = {jnp.min(cos)}"
    assert max_abs_err < 2e-2, f"element mismatch: max |err| = {max_abs_err}"

    print("KERNEL_OK")
</pallas_src>

<mosaic_0001>
module attributes {stable_mosaic.version = 11 : i64} {
  func.func @_mlp_norm_kernel(%arg0: i32, %arg1: memref<192x1xi32, #tpu.memory_space<vmem>>, %arg2: memref<192x256xf32, #tpu.memory_space<vmem>>, %arg3: memref<128x512xbf16, #tpu.memory_space<vmem>>, %arg4: memref<256x512xbf16, #tpu.memory_space<vmem>>, %arg5: memref<1x512xf32, #tpu.memory_space<vmem>>, %arg6: memref<512x256xbf16, #tpu.memory_space<vmem>>, %arg7: memref<1x256xf32, #tpu.memory_space<vmem>>, %arg8: memref<256x128xbf16, #tpu.memory_space<vmem>>, %arg9: memref<1x128xf32, #tpu.memory_space<vmem>>, %arg10: memref<192x128xf32, #tpu.memory_space<vmem>>) attributes {dimension_semantics = [#tpu.dimension_semantics<parallel>], iteration_bounds = array<i64: 2>, scalar_prefetch = 0 : i64, scratch_operands = 0 : i64, tpu.core_type = #tpu.core_type<tc>, window_params = [{transform_indices = @transform_0, window_bounds = array<i64: 192, 1>}, {transform_indices = @transform_1, window_bounds = array<i64: 192, 256>}, {pipeline_mode = #tpu.pipeline_mode<synchronous>, transform_indices = @transform_2, window_bounds = array<i64: 128, 512>}, {pipeline_mode = #tpu.pipeline_mode<synchronous>, transform_indices = @transform_3, window_bounds = array<i64: 256, 512>}, {pipeline_mode = #tpu.pipeline_mode<synchronous>, transform_indices = @transform_4, window_bounds = array<i64: 1, 512>}, {pipeline_mode = #tpu.pipeline_mode<synchronous>, transform_indices = @transform_5, window_bounds = array<i64: 512, 256>}, {pipeline_mode = #tpu.pipeline_mode<synchronous>, transform_indices = @transform_6, window_bounds = array<i64: 1, 256>}, {pipeline_mode = #tpu.pipeline_mode<synchronous>, transform_indices = @transform_7, window_bounds = array<i64: 256, 128>}, {pipeline_mode = #tpu.pipeline_mode<synchronous>, transform_indices = @transform_8, window_bounds = array<i64: 1, 128>}, {transform_indices = @transform_9, window_bounds = array<i64: 192, 128>}]} {
    %c0 = arith.constant 0 : index
    %c0_0 = arith.constant 0 : index
    %0 = vector.load %arg1[%c0, %c0_0] : memref<192x1xi32, #tpu.memory_space<vmem>>, vector<192x1xi32>
    %1 = tpu.iota {dimensions = array<i32: 1>} : vector<192x128xi32>
    %2 = vector.broadcast %0 : vector<192x1xi32> to vector<192x128xi32>
    %3 = arith.cmpi eq, %1, %2 : vector<192x128xi32>
    %4 = arith.extui %3 : vector<192x128xi1> to vector<192x128xi32>
    %5 = arith.sitofp %4 : vector<192x128xi32> to vector<192x128xf32>
    %6 = arith.truncf %5 : vector<192x128xf32> to vector<192x128xbf16>
    %c0_1 = arith.constant 0 : index
    %c0_2 = arith.constant 0 : index
    %7 = vector.load %arg3[%c0_1, %c0_2] : memref<128x512xbf16, #tpu.memory_space<vmem>>, vector<128x512xbf16>
    %cst = arith.constant dense<0.000000e+00> : vector<192x512xf32>
    %8 = tpu.matmul %6, %7, %cst {dimension_numbers = #tpu.dot_dimension_numbers<[1], [0], [0], [1], [0, 0, 1, 1], [], []>} : vector<192x128xbf16>, vector<128x512xbf16>, vector<192x512xf32> -> vector<192x512xf32>
    %c0_3 = arith.constant 0 : index
    %c0_4 = arith.constant 0 : index
    %9 = vector.load %arg2[%c0_3, %c0_4] : memref<192x256xf32, #tpu.memory_space<vmem>>, vector<192x256xf32>
    %10 = arith.truncf %9 : vector<192x256xf32> to vector<192x256xbf16>
    %c0_5 = arith.constant 0 : index
    %c0_6 = arith.constant 0 : index
    %11 = vector.load %arg4[%c0_5, %c0_6] : memref<256x512xbf16, #tpu.memory_space<vmem>>, vector<256x512xbf16>
    %cst_7 = arith.constant dense<0.000000e+00> : vector<192x512xf32>
    %12 = tpu.matmul %10, %11, %cst_7 {dimension_numbers = #tpu.dot_dimension_numbers<[1], [0], [0], [1], [0, 0, 1, 1], [], []>} : vector<192x256xbf16>, vector<256x512xbf16>, vector<192x512xf32> -> vector<192x512xf32>
    %13 = arith.addf %12, %8 : vector<192x512xf32>
    %c0_8 = arith.constant 0 : index
    %c0_9 = arith.constant 0 : index
    %14 = vector.load %arg5[%c0_8, %c0_9] : memref<1x512xf32, #tpu.memory_space<vmem>>, vector<1x512xf32>
    %15 = vector.broadcast %14 : vector<1x512xf32> to vector<192x512xf32>
    %16 = arith.addf %13, %15 : vector<192x512xf32>
    %cst_10 = arith.constant 0.000000e+00 : f32
    %17 = vector.broadcast %cst_10 : f32 to vector<192x512xf32>
    %18 = arith.maximumf %16, %17 : vector<192x512xf32>
    %19 = arith.truncf %18 : vector<192x512xf32> to vector<192x512xbf16>
    %c0_11 = arith.constant 0 : index
    %c0_12 = arith.constant 0 : index
    %20 = vector.load %arg6[%c0_11, %c0_12] : memref<512x256xbf16, #tpu.memory_space<vmem>>, vector<512x256xbf16>
    %cst_13 = arith.constant dense<0.000000e+00> : vector<192x256xf32>
    %21 = tpu.matmul %19, %20, %cst_13 {dimension_numbers = #tpu.dot_dimension_numbers<[1], [0], [0], [1], [0, 0, 1, 1], [], []>} : vector<192x512xbf16>, vector<512x256xbf16>, vector<192x256xf32> -> vector<192x256xf32>
    %c0_14 = arith.constant 0 : index
    %c0_15 = arith.constant 0 : index
    %22 = vector.load %arg7[%c0_14, %c0_15] : memref<1x256xf32, #tpu.memory_space<vmem>>, vector<1x256xf32>
    %23 = vector.broadcast %22 : vector<1x256xf32> to vector<192x256xf32>
    %24 = arith.addf %21, %23 : vector<192x256xf32>
    %cst_16 = arith.constant 0.000000e+00 : f32
    %25 = vector.broadcast %cst_16 : f32 to vector<192x256xf32>
    %26 = arith.maximumf %24, %25 : vector<192x256xf32>
    %27 = arith.truncf %26 : vector<192x256xf32> to vector<192x256xbf16>
    %c0_17 = arith.constant 0 : index
    %c0_18 = arith.constant 0 : index
    %28 = vector.load %arg8[%c0_17, %c0_18] : memref<256x128xbf16, #tpu.memory_space<vmem>>, vector<256x128xbf16>
    %cst_19 = arith.constant dense<0.000000e+00> : vector<192x128xf32>
    %29 = tpu.matmul %27, %28, %cst_19 {dimension_numbers = #tpu.dot_dimension_numbers<[1], [0], [0], [1], [0, 0, 1, 1], [], []>} : vector<192x256xbf16>, vector<256x128xbf16>, vector<192x128xf32> -> vector<192x128xf32>
    %c0_20 = arith.constant 0 : index
    %c0_21 = arith.constant 0 : index
    %30 = vector.load %arg9[%c0_20, %c0_21] : memref<1x128xf32, #tpu.memory_space<vmem>>, vector<1x128xf32>
    %31 = vector.broadcast %30 : vector<1x128xf32> to vector<192x128xf32>
    %32 = arith.addf %29, %31 : vector<192x128xf32>
    %33 = arith.mulf %32, %32 : vector<192x128xf32>
    %cst_22 = arith.constant dense<0.000000e+00> : vector<192xf32>
    %34 = vector.multi_reduction <add>, %33, %cst_22 [1] : vector<192x128xf32> to vector<192xf32>
    %35 = vector.shape_cast %34 : vector<192xf32> to vector<192x1xf32>
    %cst_23 = arith.constant 1.000000e-24 : f32
    %36 = vector.broadcast %cst_23 : f32 to vector<192x1xf32>
    %37 = arith.maximumf %35, %36 : vector<192x1xf32>
    %38 = math.rsqrt %37 : vector<192x1xf32>
    %39 = vector.broadcast %38 : vector<192x1xf32> to vector<192x128xf32>
    %40 = arith.mulf %32, %39 : vector<192x128xf32>
    %c0_24 = arith.constant 0 : index
    %c0_25 = arith.constant 0 : index
    %41 = vector.load %arg10[%c0_24, %c0_25] : memref<192x128xf32, #tpu.memory_space<vmem>>, vector<192x128xf32>
    tpu.vector_store %arg10[%c0_24, %c0_25], %40 {strides = array<i32>} : memref<192x128xf32, #tpu.memory_space<vmem>>, vector<192x128xf32>,
    return
  }
  func.func @transform_0(%arg0: i32) -> (i32, i32) {
    %c0_i32 = arith.constant 0 : i32
    %c0_i32_0 = arith.constant 0 : i32
    return %arg0, %c0_i32 : i32, i32
  }
  func.func @transform_1(%arg0: i32) -> (i32, i32) {
    %c0_i32 = arith.constant 0 : i32
    %c0_i32_0 = arith.constant 0 : i32
    return %arg0, %c0_i32 : i32, i32
  }
  func.func @transform_2(%arg0: i32) -> (i32, i32) {
    %c0_i32 = arith.constant 0 : i32
    %c0_i32_0 = arith.constant 0 : i32
    %c0_i32_1 = arith.constant 0 : i32
    return %c0_i32, %c0_i32_0 : i32, i32
  }
  func.func @transform_3(%arg0: i32) -> (i32, i32) {
    %c0_i32 = arith.constant 0 : i32
    %c0_i32_0 = arith.constant 0 : i32
    %c0_i32_1 = arith.constant 0 : i32
    return %c0_i32, %c0_i32_0 : i32, i32
  }
  func.func @transform_4(%arg0: i32) -> (i32, i32) {
    %c0_i32 = arith.constant 0 : i32
    %c0_i32_0 = arith.constant 0 : i32
    %c0_i32_1 = arith.constant 0 : i32
    return %c0_i32, %c0_i32_0 : i32, i32
  }
  func.func @transform_5(%arg0: i32) -> (i32, i32) {
    %c0_i32 = arith.constant 0 : i32
    %c0_i32_0 = arith.constant 0 : i32
    %c0_i32_1 = arith.constant 0 : i32
    return %c0_i32, %c0_i32_0 : i32, i32
  }
  func.func @transform_6(%arg0: i32) -> (i32, i32) {
    %c0_i32 = arith.constant 0 : i32
    %c0_i32_0 = arith.constant 0 : i32
    %c0_i32_1 = arith.constant 0 : i32
    return %c0_i32, %c0_i32_0 : i32, i32
  }
  func.func @transform_7(%arg0: i32) -> (i32, i32) {
    %c0_i32 = arith.constant 0 : i32
    %c0_i32_0 = arith.constant 0 : i32
    %c0_i32_1 = arith.constant 0 : i32
    return %c0_i32, %c0_i32_0 : i32, i32
  }
  func.func @transform_8(%arg0: i32) -> (i32, i32) {
    %c0_i32 = arith.constant 0 : i32
    %c0_i32_0 = arith.constant 0 : i32
    %c0_i32_1 = arith.constant 0 : i32
    return %c0_i32, %c0_i32_0 : i32, i32
  }
  func.func @transform_9(%arg0: i32) -> (i32, i32) {
    %c0_i32 = arith.constant 0 : i32
    %c0_i32_0 = arith.constant 0 : i32
    return %arg0, %c0_i32 : i32, i32
  }
}

</mosaic_0001>

<llo_original>
// kernel: h_to_clip_joint_forward.1
$region0: #{h_to_clip_joint_forward.1}
  #allocation0 [shape = 'u32[]', space=smem, size = 0x4, offset = 0x4, fixed_abs, tag = 'smem constant byte address 0x4 - core index']
  #allocation1 [shape = 'u32[72,128]{1,0:T(1,128)}', space=vmem, size = 0x9000, scoped, tag = 'internal scratch']
  %s0 = inlined_call_operand.vmem [shape: s32[384,1], index: 0, kind: input, shape index: {}]
  %s1 = inlined_call_operand.vmem [shape: f32[384,256], index: 1, kind: input, shape index: {}]
  %s2 = inlined_call_operand.vmem [shape: bf16[128,512], index: 2, kind: input, shape index: {}]
  %s3 = inlined_call_operand.vmem [shape: bf16[256,512], index: 3, kind: input, shape index: {}]
  %s4 = inlined_call_operand.vmem [shape: f32[1,512], index: 4, kind: input, shape index: {}]
  %s5 = inlined_call_operand.vmem [shape: bf16[512,256], index: 5, kind: input, shape index: {}]
  %s6 = inlined_call_operand.vmem [shape: f32[1,256], index: 6, kind: input, shape index: {}]
  %s7 = inlined_call_operand.vmem [shape: bf16[256,128], index: 7, kind: input, shape index: {}]
  %s8 = inlined_call_operand.vmem [shape: f32[1,128], index: 8, kind: input, shape index: {}]
  %s9 = inlined_call_operand.hbm [shape: f32[384,128], index: 9, kind: output, shape index: {}]
  %s10 = sld [smem:[#allocation0]]
  $region69: #{h_to_clip_joint_forward.1} parent=0
    _
  %s12 = ssub.s32 1, %s10
  %s13 = scalar_select 0, %s12, %s10
  $region1: #{h_to_clip_joint_forward.1} parent=0
    #allocation2 [shape = 'u8[196608]{0}', space=vmem, size = 0x30000, scoped, tag = 'output window, operand 0']
    #allocation3 [shape = 's32[2]{0}', space=sflag, size = 0x8, scoped, tag = 'scoped memory for h_to_clip_joint_forward.1']
    %14 = vsyncpa [#allocation3], 0
    %s15 = scalar_lea.sflag [#allocation3], 1
    %16 = vsyncpa %s15, 0
    loop: start=0, step=1, limit=4
    $region2: #{h_to_clip_joint_forward.1} parent=1 // loop_pre_header
      _
    $region3: #{h_to_clip_joint_forward.1} parent=1 // loop_header
      %s18 = sphi 0, %s22
      %p19 = scmp.ge.s32.totalorder %s18, 4
      %s28 = sphi 0, %s30
      %s31 = sphi 0, %s28
      %s32 = sphi 0, %s31
      %s48 = sphi 0, %s32
      %s54 = sphi 0, %s56
      %s57 = sphi 0, %s54
      %s58 = sphi 0, %s57
      %s74 = sphi 0, %s58
      %s78 = sphi 0, %s78
      %s80 = sphi 0, %s78
      %s81 = sphi 0, %s80
      %s95 = sphi 0, %s81
      %s99 = sphi 0, %s99
      %s101 = sphi 0, %s99
      %s102 = sphi 0, %s101
      %s116 = sphi 0, %s102
      %s120 = sphi 0, %s120
      %s122 = sphi 0, %s120
      %s123 = sphi 0, %s122
      %s137 = sphi 0, %s123
      %s141 = sphi 0, %s141
      %s143 = sphi 0, %s141
      %s144 = sphi 0, %s143
      %s158 = sphi 0, %s144
      %s162 = sphi 0, %s162
      %s164 = sphi 0, %s162
      %s165 = sphi 0, %s164
      %s179 = sphi 0, %s165
      %s183 = sphi 0, %s183
      %s185 = sphi 0, %s183
      %s186 = sphi 0, %s185
      %s200 = sphi 0, %s186
      %s204 = sphi 0, %s204
      %s206 = sphi 0, %s204
      %s207 = sphi 0, %s206
      %s221 = sphi 0, %s207
      %s227 = sphi 0, %s229
      %s230 = sphi 0, %s227
      %s231 = sphi 0, %s230
      %s247 = sphi 0, %s231
    $region4: #{h_to_clip_joint_forward.1} parent=1 // loop_header_branch
      %21 = sbr.rel (%p19) target = $region8
    $region5: #{h_to_clip_joint_forward.1} parent=1 // loop_body
      %s23 = ssub.s32 %s18, 1
      %s24 = ssub.s32 %s18, 2
      %s25 = sadd.s32 %s18, 1
      %s26 = ssub.s32 %s18, %s25
      %p27 = scmp.eq.s32.totalorder %s26, 0
      %s29 = sadd.s32 %s28, 1
      %s30 = scalar_select %p27, %s28, %s29
      %p33 = pneg %p27
      %p34 = scmp.eq.s32.totalorder %s18, 1
      %p35 = por %p33, %p34
      %p36 = scmp.ne.s32.totalorder %s28, %s31
      %p37 = scmp.eq.s32.totalorder %s18, 0
      %p38 = por %p36, %p37
      %p39 = scmp.ne.s32.totalorder %s28, %s31
      %p40 = scmp.eq.s32.totalorder %s23, 1
      %p41 = por %p39, %p40
      %p42 = scmp.ne.s32.totalorder %s31, %s32
      %p43 = scmp.eq.s32.totalorder %s23, 0
      %p44 = por %p42, %p43
      %p45 = scmp.ne.s32.totalorder %s31, %s32
      %p46 = scmp.eq.s32.totalorder %s24, 1
      %p47 = por %p45, %p46
      %p49 = scmp.ne.s32.totalorder %s32, %s48
      %p50 = scmp.eq.s32.totalorder %s24, 0
      %p51 = por %p49, %p50
      %s52 = ssub.s32 %s18, %s25
      %p53 = scmp.eq.s32.totalorder %s52, 0
      %s55 = sadd.s32 %s54, 1
      %s56 = scalar_select %p53, %s54, %s55
      %p59 = pneg %p53
      %p60 = scmp.eq.s32.totalorder %s18, 1
      %p61 = por %p59, %p60
      %p62 = scmp.ne.s32.totalorder %s54, %s57
      %p63 = scmp.eq.s32.totalorder %s18, 0
      %p64 = por %p62, %p63
      %p65 = scmp.ne.s32.totalorder %s54, %s57
      %p66 = scmp.eq.s32.totalorder %s23, 1
      %p67 = por %p65, %p66
      %p68 = scmp.ne.s32.totalorder %s57, %s58
      %p69 = scmp.eq.s32.totalorder %s23, 0
      %p70 = por %p68, %p69
      %p71 = scmp.ne.s32.totalorder %s57, %s58
      %p72 = scmp.eq.s32.totalorder %s24, 1
      %p73 = por %p71, %p72
      %p75 = scmp.ne.s32.totalorder %s58, %s74
      %p76 = scmp.eq.s32.totalorder %s24, 0
      %p77 = por %p75, %p76
      %s79 = sadd.s32 %s78, 1
      %p82 = scmp.eq.s32.totalorder %s18, 1
      %p83 = scmp.ne.s32.totalorder %s78, %s80
      %p84 = scmp.eq.s32.totalorder %s18, 0
      %p85 = por %p83, %p84
      %p86 = scmp.ne.s32.totalorder %s78, %s80
      %p87 = scmp.eq.s32.totalorder %s23, 1
      %p88 = por %p86, %p87
      %p89 = scmp.ne.s32.totalorder %s80, %s81
      %p90 = scmp.eq.s32.totalorder %s23, 0
      %p91 = por %p89, %p90
      %p92 = scmp.ne.s32.totalorder %s80, %s81
      %p93 = scmp.eq.s32.totalorder %s24, 1
      %p94 = por %p92, %p93
      %p96 = scmp.ne.s32.totalorder %s81, %s95
      %p97 = scmp.eq.s32.totalorder %s24, 0
      %p98 = por %p96, %p97
      %s100 = sadd.s32 %s99, 1
      %p103 = scmp.eq.s32.totalorder %s18, 1
      %p104 = scmp.ne.s32.totalorder %s99, %s101
      %p105 = scmp.eq.s32.totalorder %s18, 0
      %p106 = por %p104, %p105
      %p107 = scmp.ne.s32.totalorder %s99, %s101
      %p108 = scmp.eq.s32.totalorder %s23, 1
      %p109 = por %p107, %p108
      %p110 = scmp.ne.s32.totalorder %s101, %s102
      %p111 = scmp.eq.s32.totalorder %s23, 0
      %p112 = por %p110, %p111
      %p113 = scmp.ne.s32.totalorder %s101, %s102
      %p114 = scmp.eq.s32.totalorder %s24, 1
      %p115 = por %p113, %p114
      %p117 = scmp.ne.s32.totalorder %s102, %s116
      %p118 = scmp.eq.s32.totalorder %s24, 0
      %p119 = por %p117, %p118
      %s121 = sadd.s32 %s120, 1
      %p124 = scmp.eq.s32.totalorder %s18, 1
      %p125 = scmp.ne.s32.totalorder %s120, %s122
      %p126 = scmp.eq.s32.totalorder %s18, 0
      %p127 = por %p125, %p126
      %p128 = scmp.ne.s32.totalorder %s120, %s122
      %p129 = scmp.eq.s32.totalorder %s23, 1
      %p130 = por %p128, %p129
      %p131 = scmp.ne.s32.totalorder %s122, %s123
      %p132 = scmp.eq.s32.totalorder %s23, 0
      %p133 = por %p131, %p132
      %p134 = scmp.ne.s32.totalorder %s122, %s123
      %p135 = scmp.eq.s32.totalorder %s24, 1
      %p136 = por %p134, %p135
      %p138 = scmp.ne.s32.totalorder %s123, %s137
      %p139 = scmp.eq.s32.totalorder %s24, 0
      %p140 = por %p138, %p139
      %s142 = sadd.s32 %s141, 1
      %p145 = scmp.eq.s32.totalorder %s18, 1
      %p146 = scmp.ne.s32.totalorder %s141, %s143
      %p147 = scmp.eq.s32.totalorder %s18, 0
      %p148 = por %p146, %p147
      %p149 = scmp.ne.s32.totalorder %s141, %s143
      %p150 = scmp.eq.s32.totalorder %s23, 1
      %p151 = por %p149, %p150
      %p152 = scmp.ne.s32.totalorder %s143, %s144
      %p153 = scmp.eq.s32.totalorder %s23, 0
      %p154 = por %p152, %p153
      %p155 = scmp.ne.s32.totalorder %s143, %s144
      %p156 = scmp.eq.s32.totalorder %s24, 1
      %p157 = por %p155, %p156
      %p159 = scmp.ne.s32.totalorder %s144, %s158
      %p160 = scmp.eq.s32.totalorder %s24, 0
      %p161 = por %p159, %p160
      %s163 = sadd.s32 %s162, 1
      %p166 = scmp.eq.s32.totalorder %s18, 1
      %p167 = scmp.ne.s32.totalorder %s162, %s164
      %p168 = scmp.eq.s32.totalorder %s18, 0
      %p169 = por %p167, %p168
      %p170 = scmp.ne.s32.totalorder %s162, %s164
      %p171 = scmp.eq.s32.totalorder %s23, 1
      %p172 = por %p170, %p171
      %p173 = scmp.ne.s32.totalorder %s164, %s165
      %p174 = scmp.eq.s32.totalorder %s23, 0
      %p175 = por %p173, %p174
      %p176 = scmp.ne.s32.totalorder %s164, %s165
      %p177 = scmp.eq.s32.totalorder %s24, 1
      %p178 = por %p176, %p177
      %p180 = scmp.ne.s32.totalorder %s165, %s179
      %p181 = scmp.eq.s32.totalorder %s24, 0
      %p182 = por %p180, %p181
      %s184 = sadd.s32 %s183, 1
      %p187 = scmp.eq.s32.totalorder %s18, 1
      %p188 = scmp.ne.s32.totalorder %s183, %s185
      %p189 = scmp.eq.s32.totalorder %s18, 0
      %p190 = por %p188, %p189
      %p191 = scmp.ne.s32.totalorder %s183, %s185
      %p192 = scmp.eq.s32.totalorder %s23, 1
      %p193 = por %p191, %p192
      %p194 = scmp.ne.s32.totalorder %s185, %s186
      %p195 = scmp.eq.s32.totalorder %s23, 0
      %p196 = por %p194, %p195
      %p197 = scmp.ne.s32.totalorder %s185, %s186
      %p198 = scmp.eq.s32.totalorder %s24, 1
      %p199 = por %p197, %p198
      %p201 = scmp.ne.s32.totalorder %s186, %s200
      %p202 = scmp.eq.s32.totalorder %s24, 0
      %p203 = por %p201, %p202
      %s205 = sadd.s32 %s204, 1
      %p208 = scmp.eq.s32.totalorder %s18, 1
      %p209 = scmp.ne.s32.totalorder %s204, %s206
      %p210 = scmp.eq.s32.totalorder %s18, 0
      %p211 = por %p209, %p210
      %p212 = scmp.ne.s32.totalorder %s204, %s206
      %p213 = scmp.eq.s32.totalorder %s23, 1
      %p214 = por %p212, %p213
      %p215 = scmp.ne.s32.totalorder %s206, %s207
      %p216 = scmp.eq.s32.totalorder %s23, 0
      %p217 = por %p215, %p216
      %p218 = scmp.ne.s32.totalorder %s206, %s207
      %p219 = scmp.eq.s32.totalorder %s24, 1
      %p220 = por %p218, %p219
      %p222 = scmp.ne.s32.totalorder %s207, %s221
      %p223 = scmp.eq.s32.totalorder %s24, 0
      %p224 = por %p222, %p223
      %s225 = ssub.s32 %s18, %s25
      %p226 = scmp.eq.s32.totalorder %s225, 0
      %s228 = sadd.s32 %s227, 1
      %s229 = scalar_select %p226, %s227, %s228
      %p232 = pneg %p226
      %p233 = scmp.eq.s32.totalorder %s18, 1
      %p234 = por %p232, %p233
      %p235 = scmp.ne.s32.totalorder %s227, %s230
      %p236 = scmp.eq.s32.totalorder %s18, 0
      %p237 = por %p235, %p236
      %p238 = scmp.ne.s32.totalorder %s227, %s230
      %p239 = scmp.eq.s32.totalorder %s23, 1
      %p240 = por %p238, %p239
      %p241 = scmp.ne.s32.totalorder %s230, %s231
      %p242 = scmp.eq.s32.totalorder %s23, 0
      %p243 = por %p241, %p242
      %p244 = scmp.ne.s32.totalorder %s230, %s231
      %p245 = scmp.eq.s32.totalorder %s24, 1
      %p246 = por %p244, %p245
      %p248 = scmp.ne.s32.totalorder %s231, %s247
      %p249 = scmp.eq.s32.totalorder %s24, 0
      %p250 = por %p248, %p249
      %p251 = scmp.le.s32.totalorder 1, %s18
      %p252 = scmp.lt.s32.totalorder %s18, 3
      %p253 = pnand %p251, %p252
      %p254 = pneg %p253
      // Predicated region
      $region9: #{h_to_clip_joint_forward.1} parent=5 // pred_check
        _
      $region10: #{h_to_clip_joint_forward.1} parent=5 // pred_check_branch
        %256 = sbr.rel (%p253) target = $region12
      $region11: #{h_to_clip_joint_forward.1} parent=5 // pred_region
        %s257 = ssub.s32 %s18, 1
        // Predicated region
        $region13: #{h_to_clip_joint_forward.1} parent=11 // pred_check
          %p258 = pneg %p91
        $region14: #{h_to_clip_joint_forward.1} parent=11 // pred_check_branch
          %260 = sbr.rel (%p258) target = $region16
        $region15: #{h_to_clip_joint_forward.1} parent=11 // pred_region
          _
        $region16: #{h_to_clip_joint_forward.1} parent=11 // pred_fallthru
          _
        // Predicated region
        $region17: #{h_to_clip_joint_forward.1} parent=11 // pred_check
          %p261 = pneg %p112
        $region18: #{h_to_clip_joint_forward.1} parent=11 // pred_check_branch
          %263 = sbr.rel (%p261) target = $region20
        $region19: #{h_to_clip_joint_forward.1} parent=11 // pred_region
          _
        $region20: #{h_to_clip_joint_forward.1} parent=11 // pred_fallthru
          _
        // Predicated region
        $region21: #{h_to_clip_joint_forward.1} parent=11 // pred_check
          %p264 = pneg %p133
        $region22: #{h_to_clip_joint_forward.1} parent=11 // pred_check_branch
          %266 = sbr.rel (%p264) target = $region24
        $region23: #{h_to_clip_joint_forward.1} parent=11 // pred_region
          _
        $region24: #{h_to_clip_joint_forward.1} parent=11 // pred_fallthru
          _
        // Predicated region
        $region25: #{h_to_clip_joint_forward.1} parent=11 // pred_check
          %p267 = pneg %p154
        $region26: #{h_to_clip_joint_forward.1} parent=11 // pred_check_branch
          %269 = sbr.rel (%p267) target = $region28
        $region27: #{h_to_clip_joint_forward.1} parent=11 // pred_region
          _
        $region28: #{h_to_clip_joint_forward.1} parent=11 // pred_fallthru
          _
        // Predicated region
        $region29: #{h_to_clip_joint_forward.1} parent=11 // pred_check
          %p270 = pneg %p175
        $region30: #{h_to_clip_joint_forward.1} parent=11 // pred_check_branch
          %272 = sbr.rel (%p270) target = $region32
        $region31: #{h_to_clip_joint_forward.1} parent=11 // pred_region
          _
        $region32: #{h_to_clip_joint_forward.1} parent=11 // pred_fallthru
          _
        // Predicated region
        $region33: #{h_to_clip_joint_forward.1} parent=11 // pred_check
          %p273 = pneg %p196
        $region34: #{h_to_clip_joint_forward.1} parent=11 // pred_check_branch
          %275 = sbr.rel (%p273) target = $region36
        $region35: #{h_to_clip_joint_forward.1} parent=11 // pred_region
          _
        $region36: #{h_to_clip_joint_forward.1} parent=11 // pred_fallthru
          _
        // Predicated region
        $region37: #{h_to_clip_joint_forward.1} parent=11 // pred_check
          %p276 = pneg %p217
        $region38: #{h_to_clip_joint_forward.1} parent=11 // pred_check_branch
          %278 = sbr.rel (%p276) target = $region40
        $region39: #{h_to_clip_joint_forward.1} parent=11 // pred_region
          _
        $region40: #{h_to_clip_joint_forward.1} parent=11 // pred_fallthru
          _
      $region12: #{h_to_clip_joint_forward.1} parent=5 // pred_fallthru
        _
      %p279 = scmp.lt.s32.totalorder %s18, 2
      // Predicated region
      $region41: #{h_to_clip_joint_forward.1} parent=5 // pred_check
        %p280 = pneg %p279
      $region42: #{h_to_clip_joint_forward.1} parent=5 // pred_check_branch
        %282 = sbr.rel (%p280) target = $region44
      $region43: #{h_to_clip_joint_forward.1} parent=5 // pred_region
        // Predicated region
        $region45: #{h_to_clip_joint_forward.1} parent=43 // pred_check
          %p283 = pneg %p38
        $region46: #{h_to_clip_joint_forward.1} parent=43 // pred_check_branch
          %285 = sbr.rel (%p283) target = $region48
        $region47: #{h_to_clip_joint_forward.1} parent=43 // pred_region
          %s286 = smul.u32 24, %s18
          %p287 = scmp.lt.s32.totalorder %s286, 47
          %s288 = scalar_select %p287, %s286, 47
          %s289 = smul.addr %s288, 8
          %s290 = scalar_lea.vmem %s0, %s289
          %s291 = smul.u32 24, %s18
        $region48: #{h_to_clip_joint_forward.1} parent=43 // pred_fallthru
          _
        // Predicated region
        $region49: #{h_to_clip_joint_forward.1} parent=43 // pred_check
          %p292 = pneg %p64
        $region50: #{h_to_clip_joint_forward.1} parent=43 // pred_check_branch
          %294 = sbr.rel (%p292) target = $region52
        $region51: #{h_to_clip_joint_forward.1} parent=43 // pred_region
          %s295 = smul.u32 24, %s18
          %p296 = scmp.lt.s32.totalorder %s295, 47
          %s297 = scalar_select %p296, %s295, 47
          %s298 = smul.addr %s297, 2
          %s299 = smul.addr %s298, 8
          %s300 = scalar_lea.vmem %s1, %s299
          %s301 = smul.u32 24, %s18
        $region52: #{h_to_clip_joint_forward.1} parent=43 // pred_fallthru
          _
      $region44: #{h_to_clip_joint_forward.1} parent=5 // pred_fallthru
        _
      %p302 = scmp.le.s32.totalorder 1, %s18
      %p303 = scmp.lt.s32.totalorder %s18, 3
      %p304 = pnand %p302, %p303
      %p305 = pneg %p304
      // Predicated region
      $region53: #{h_to_clip_joint_forward.1} parent=5 // pred_check
        _
      $region54: #{h_to_clip_joint_forward.1} parent=5 // pred_check_branch
        %307 = sbr.rel (%p304) target = $region56
      $region55: #{h_to_clip_joint_forward.1} parent=5 // pred_region
        %s308 = ssub.s32 %s18, 1
        %s309 = smul.u32 24, %s23
        %p310 = scmp.lt.s32.totalorder %s309, 47
        %s311 = scalar_select %p310, %s309, 47
        %s312 = smul.addr %s311, 8
        %s313 = scalar_lea.vmem %s0, %s312
        %p314 = pneg %p44
        %p315 = pneg %p41
        %s316 = smul.u32 24, %s23
        %p317 = scmp.lt.s32.totalorder %s316, 47
        %s318 = scalar_select %p317, %s316, 47
        %s319 = smul.addr %s318, 2
        %s320 = smul.addr %s319, 8
        %s321 = scalar_lea.vmem %s1, %s320
        %p322 = pneg %p70
        %p323 = pneg %p67
        %p324 = pneg %p91
        %p325 = pneg %p88
        %p326 = pneg %p112
        %p327 = pneg %p109
        %p328 = pneg %p133
        %p329 = pneg %p130
        %p330 = pneg %p154
        %p331 = pneg %p151
        %p332 = pneg %p175
        %p333 = pneg %p172
        %p334 = pneg %p196
        %p335 = pneg %p193
        %p336 = pneg %p217
        %p337 = pneg %p214
        %p338 = pneg %p243
        %p339 = pneg %p240
        %s340 = sand.u32 %s230, 1
        %s341 = scalar_lea.sflag [#allocation3], %s340
        %s342 = sand.u32 %s230, 1
        %s343 = smul.addr %s342, 192
        %s344 = scalar_lea.vmem [#allocation2], %s343
        %s345 = smul.u32 24, %s23
        %p346 = scmp.lt.s32.totalorder %s345, 47
        %s347 = scalar_select %p346, %s345, 47
        %s348 = smul.addr %s347, 8
        %s349 = scalar_lea.vmem %s0, %s348
        %s350 = smul.u32 24, %s23
        %s351 = smul.u32 24, %s23
        %p352 = scmp.lt.s32.totalorder %s351, 47
        %s353 = scalar_select %p352, %s351, 47
        %s354 = smul.addr %s353, 2
        %s355 = smul.addr %s354, 8
        %s356 = scalar_lea.vmem %s1, %s355
        %s357 = smul.u32 24, %s23
        %s358 = smul.u32 24, %s23
        %v359 = vld [vmem:[%s349] sm:$0xff]
        %v360 = vld [vmem:[%s349 + $0x8] sm:$0xff]
        %v361 = vld [vmem:[%s349 + $0x10] sm:$0xff]
        %v362 = vld [vmem:[%s349 + $0x18] sm:$0xff]
        %v363 = vld [vmem:[%s349 + $0x20] sm:$0xff]
        %v364 = vld [vmem:[%s349 + $0x28] sm:$0xff]
        %v365 = vld [vmem:[%s349 + $0x30] sm:$0xff]
        %v366 = vld [vmem:[%s349 + $0x38] sm:$0xff]
        %v367 = vld [vmem:[%s349 + $0x40] sm:$0xff]
        %v368 = vld [vmem:[%s349 + $0x48] sm:$0xff]
        %v369 = vld [vmem:[%s349 + $0x50] sm:$0xff]
        %v370 = vld [vmem:[%s349 + $0x58] sm:$0xff]
        %v371 = vld [vmem:[%s349 + $0x60] sm:$0xff]
        %v372 = vld [vmem:[%s349 + $0x68] sm:$0xff]
        %v373 = vld [vmem:[%s349 + $0x70] sm:$0xff]
        %v374 = vld [vmem:[%s349 + $0x78] sm:$0xff]
        %v375 = vld [vmem:[%s349 + $0x80] sm:$0xff]
        %v376 = vld [vmem:[%s349 + $0x88] sm:$0xff]
        %v377 = vld [vmem:[%s349 + $0x90] sm:$0xff]
        %v378 = vld [vmem:[%s349 + $0x98] sm:$0xff]
        %v379 = vld [vmem:[%s349 + $0xa0] sm:$0xff]
        %v380 = vld [vmem:[%s349 + $0xa8] sm:$0xff]
        %v381 = vld [vmem:[%s349 + $0xb0] sm:$0xff]
        %v382 = vld [vmem:[%s349 + $0xb8] sm:$0xff]
        %v383 = vlaneseq
        %v384 = vand.u32 %v383, 127
        %385 = vset.pattern.permute.xlu0 0
        %386 = vperm.xlu0 %385, %v359
        %v387 = vpop.permute.xlu0 %386
        %388 = vset.pattern.permute.xlu0 0
        %389 = vperm.xlu0 %388, %v360
        %v390 = vpop.permute.xlu0 %389
        %391 = vset.pattern.permute.xlu0 0
        %392 = vperm.xlu0 %391, %v361
        %v393 = vpop.permute.xlu0 %392
        %394 = vset.pattern.permute.xlu0 0
        %395 = vperm.xlu0 %394, %v362
        %v396 = vpop.permute.xlu0 %395
        %397 = vset.pattern.permute.xlu0 0
        %398 = vperm.xlu0 %397, %v363
        %v399 = vpop.permute.xlu0 %398
        %400 = vset.pattern.permute.xlu0 0
        %401 = vperm.xlu0 %400, %v364
        %v402 = vpop.permute.xlu0 %401
        %403 = vset.pattern.permute.xlu0 0
        %404 = vperm.xlu0 %403, %v365
        %v405 = vpop.permute.xlu0 %404
        %406 = vset.pattern.permute.xlu0 0
        %407 = vperm.xlu0 %406, %v366
        %v408 = vpop.permute.xlu0 %407
        %409 = vset.pattern.permute.xlu0 0
        %410 = vperm.xlu0 %409, %v367
        %v411 = vpop.permute.xlu0 %410
        %412 = vset.pattern.permute.xlu0 0
        %413 = vperm.xlu0 %412, %v368
        %v414 = vpop.permute.xlu0 %413
        %415 = vset.pattern.permute.xlu0 0
        %416 = vperm.xlu0 %415, %v369
        %v417 = vpop.permute.xlu0 %416
        %418 = vset.pattern.permute.xlu0 0
        %419 = vperm.xlu0 %418, %v370
        %v420 = vpop.permute.xlu0 %419
        %421 = vset.pattern.permute.xlu0 0
        %422 = vperm.xlu0 %421, %v371
        %v423 = vpop.permute.xlu0 %422
        %424 = vset.pattern.permute.xlu0 0
        %425 = vperm.xlu0 %424, %v372
        %v426 = vpop.permute.xlu0 %425
        %427 = vset.pattern.permute.xlu0 0
        %428 = vperm.xlu0 %427, %v373
        %v429 = vpop.permute.xlu0 %428
        %430 = vset.pattern.permute.xlu0 0
        %431 = vperm.xlu0 %430, %v374
        %v432 = vpop.permute.xlu0 %431
        %433 = vset.pattern.permute.xlu0 0
        %434 = vperm.xlu0 %433, %v375
        %v435 = vpop.permute.xlu0 %434
        %436 = vset.pattern.permute.xlu0 0
        %437 = vperm.xlu0 %436, %v376
        %v438 = vpop.permute.xlu0 %437
        %439 = vset.pattern.permute.xlu0 0
        %440 = vperm.xlu0 %439, %v377
        %v441 = vpop.permute.xlu0 %440
        %442 = vset.pattern.permute.xlu0 0
        %443 = vperm.xlu0 %442, %v378
        %v444 = vpop.permute.xlu0 %443
        %445 = vset.pattern.permute.xlu0 0
        %446 = vperm.xlu0 %445, %v379
        %v447 = vpop.permute.xlu0 %446
        %448 = vset.pattern.permute.xlu0 0
        %449 = vperm.xlu0 %448, %v380
        %v450 = vpop.permute.xlu0 %449
        %451 = vset.pattern.permute.xlu0 0
        %452 = vperm.xlu0 %451, %v381
        %v453 = vpop.permute.xlu0 %452
        %454 = vset.pattern.permute.xlu0 0
        %455 = vperm.xlu0 %454, %v382
        %v456 = vpop.permute.xlu0 %455
        %vm457 = vcmp.eq.s32.totalorder %v384, %v387
        %vm458 = vcmp.eq.s32.totalorder %v384, %v390
        %vm459 = vcmp.eq.s32.totalorder %v384, %v393
        %vm460 = vcmp.eq.s32.totalorder %v384, %v396
        %vm461 = vcmp.eq.s32.totalorder %v384, %v399
        %vm462 = vcmp.eq.s32.totalorder %v384, %v402
        %vm463 = vcmp.eq.s32.totalorder %v384, %v405
        %vm464 = vcmp.eq.s32.totalorder %v384, %v408
        %vm465 = vcmp.eq.s32.totalorder %v384, %v411
        %vm466 = vcmp.eq.s32.totalorder %v384, %v414
        %vm467 = vcmp.eq.s32.totalorder %v384, %v417
        %vm468 = vcmp.eq.s32.totalorder %v384, %v420
        %vm469 = vcmp.eq.s32.totalorder %v384, %v423
        %vm470 = vcmp.eq.s32.totalorder %v384, %v426
        %vm471 = vcmp.eq.s32.totalorder %v384, %v429
        %vm472 = vcmp.eq.s32.totalorder %v384, %v432
        %vm473 = vcmp.eq.s32.totalorder %v384, %v435
        %vm474 = vcmp.eq.s32.totalorder %v384, %v438
        %vm475 = vcmp.eq.s32.totalorder %v384, %v441
        %vm476 = vcmp.eq.s32.totalorder %v384, %v444
        %vm477 = vcmp.eq.s32.totalorder %v384, %v447
        %vm478 = vcmp.eq.s32.totalorder %v384, %v450
        %vm479 = vcmp.eq.s32.totalorder %v384, %v453
        %vm480 = vcmp.eq.s32.totalorder %v384, %v456
        %v481 = vsel %vm457, 1, 0
        %v482 = vsel %vm458, 1, 0
        %v483 = vsel %vm459, 1, 0
        %v484 = vsel %vm460, 1, 0
        %v485 = vsel %vm461, 1, 0
        %v486 = vsel %vm462, 1, 0
        %v487 = vsel %vm463, 1, 0
        %v488 = vsel %vm464, 1, 0
        %v489 = vsel %vm465, 1, 0
        %v490 = vsel %vm466, 1, 0
        %v491 = vsel %vm467, 1, 0
        %v492 = vsel %vm468, 1, 0
        %v493 = vsel %vm469, 1, 0
        %v494 = vsel %vm470, 1, 0
        %v495 = vsel %vm471, 1, 0
        %v496 = vsel %vm472, 1, 0
        %v497 = vsel %vm473, 1, 0
        %v498 = vsel %vm474, 1, 0
        %v499 = vsel %vm475, 1, 0
        %v500 = vsel %vm476, 1, 0
        %v501 = vsel %vm477, 1, 0
        %v502 = vsel %vm478, 1, 0
        %v503 = vsel %vm479, 1, 0
        %v504 = vsel %vm480, 1, 0
        %v505 = vcvt.s32.f32 %v481
        %v506 = vcvt.s32.f32 %v482
        %v507 = vcvt.s32.f32 %v483
        %v508 = vcvt.s32.f32 %v484
        %v509 = vcvt.s32.f32 %v485
        %v510 = vcvt.s32.f32 %v486
        %v511 = vcvt.s32.f32 %v487
        %v512 = vcvt.s32.f32 %v488
        %v513 = vcvt.s32.f32 %v489
        %v514 = vcvt.s32.f32 %v490
        %v515 = vcvt.s32.f32 %v491
        %v516 = vcvt.s32.f32 %v492
        %v517 = vcvt.s32.f32 %v493
        %v518 = vcvt.s32.f32 %v494
        %v519 = vcvt.s32.f32 %v495
        %v520 = vcvt.s32.f32 %v496
        %v521 = vcvt.s32.f32 %v497
        %v522 = vcvt.s32.f32 %v498
        %v523 = vcvt.s32.f32 %v499
        %v524 = vcvt.s32.f32 %v500
        %v525 = vcvt.s32.f32 %v501
        %v526 = vcvt.s32.f32 %v502
        %v527 = vcvt.s32.f32 %v503
        %v528 = vcvt.s32.f32 %v504
        %v529 = vpack.c.bf16 %v506, %v505
        %v530 = vpack.c.bf16 %v508, %v507
        %v531 = vpack.c.bf16 %v510, %v509
        %v532 = vpack.c.bf16 %v512, %v511
        %v533 = vpack.c.bf16 %v514, %v513
        %v534 = vpack.c.bf16 %v516, %v515
        %v535 = vpack.c.bf16 %v518, %v517
        %v536 = vpack.c.bf16 %v520, %v519
        %v537 = vpack.c.bf16 %v522, %v521
        %v538 = vpack.c.bf16 %v524, %v523
        %v539 = vpack.c.bf16 %v526, %v525
        %v540 = vpack.c.bf16 %v528, %v527
        %v541 = vld [vmem:[%s2] sm:$0xff]
        %v542 = vld [vmem:[%s2 + $0x8] sm:$0xff]
        %v543 = vld [vmem:[%s2 + $0x10] sm:$0xff]
        %v544 = vld [vmem:[%s2 + $0x18] sm:$0xff]
        %v545 = vld [vmem:[%s2 + $0x20] sm:$0xff]
        %v546 = vld [vmem:[%s2 + $0x28] sm:$0xff]
        %v547 = vld [vmem:[%s2 + $0x30] sm:$0xff]
        %v548 = vld [vmem:[%s2 + $0x38] sm:$0xff]
        %v549 = vld [vmem:[%s2 + $0x40] sm:$0xff]
        %v550 = vld [vmem:[%s2 + $0x48] sm:$0xff]
        %v551 = vld [vmem:[%s2 + $0x50] sm:$0xff]
        %v552 = vld [vmem:[%s2 + $0x58] sm:$0xff]
        %v553 = vld [vmem:[%s2 + $0x60] sm:$0xff]
        %v554 = vld [vmem:[%s2 + $0x68] sm:$0xff]
        %v555 = vld [vmem:[%s2 + $0x70] sm:$0xff]
        %v556 = vld [vmem:[%s2 + $0x78] sm:$0xff]
        %v557 = vld [vmem:[%s2 + $0x80] sm:$0xff]
        %v558 = vld [vmem:[%s2 + $0x88] sm:$0xff]
        %v559 = vld [vmem:[%s2 + $0x90] sm:$0xff]
        %v560 = vld [vmem:[%s2 + $0x98] sm:$0xff]
        %v561 = vld [vmem:[%s2 + $0xa0] sm:$0xff]
        %v562 = vld [vmem:[%s2 + $0xa8] sm:$0xff]
        %v563 = vld [vmem:[%s2 + $0xb0] sm:$0xff]
        %v564 = vld [vmem:[%s2 + $0xb8] sm:$0xff]
        %v565 = vld [vmem:[%s2 + $0xc0] sm:$0xff]
        %v566 = vld [vmem:[%s2 + $0xc8] sm:$0xff]
        %v567 = vld [vmem:[%s2 + $0xd0] sm:$0xff]
        %v568 = vld [vmem:[%s2 + $0xd8] sm:$0xff]
        %v569 = vld [vmem:[%s2 + $0xe0] sm:$0xff]
        %v570 = vld [vmem:[%s2 + $0xe8] sm:$0xff]
        %v571 = vld [vmem:[%s2 + $0xf0] sm:$0xff]
        %v572 = vld [vmem:[%s2 + $0xf8] sm:$0xff]
        %v605 = vunpack.c.l.b16 %v541
        %v606 = vunpack.c.h.b16 %v541
        %v607 = vunpack.c.l.b16 %v542
        %v608 = vunpack.c.h.b16 %v542
        %v609 = vunpack.c.l.b16 %v543
        %v610 = vunpack.c.h.b16 %v543
        %v611 = vunpack.c.l.b16 %v544
        %v612 = vunpack.c.h.b16 %v544
        %v613 = vunpack.c.l.b16 %v545
        %v614 = vunpack.c.h.b16 %v545
        %v615 = vunpack.c.l.b16 %v546
        %v616 = vunpack.c.h.b16 %v546
        %v617 = vunpack.c.l.b16 %v547
        %v618 = vunpack.c.h.b16 %v547
        %v619 = vunpack.c.l.b16 %v548
        %v620 = vunpack.c.h.b16 %v548
        %v621 = vunpack.c.l.b16 %v549
        %v622 = vunpack.c.h.b16 %v549
        %v623 = vunpack.c.l.b16 %v550
        %v624 = vunpack.c.h.b16 %v550
        %v625 = vunpack.c.l.b16 %v551
        %v626 = vunpack.c.h.b16 %v551
        %v627 = vunpack.c.l.b16 %v552
        %v628 = vunpack.c.h.b16 %v552
        %v629 = vunpack.c.l.b16 %v553
        %v630 = vunpack.c.h.b16 %v553
        %v631 = vunpack.c.l.b16 %v554
        %v632 = vunpack.c.h.b16 %v554
        %v633 = vunpack.c.l.b16 %v555
        %v634 = vunpack.c.h.b16 %v555
        %v635 = vunpack.c.l.b16 %v556
        %v636 = vunpack.c.h.b16 %v556
        %v637 = vunpack.c.l.b16 %v557
        %v638 = vunpack.c.h.b16 %v557
        %v639 = vunpack.c.l.b16 %v558
        %v640 = vunpack.c.h.b16 %v558
        %v641 = vunpack.c.l.b16 %v559
        %v642 = vunpack.c.h.b16 %v559
        %v643 = vunpack.c.l.b16 %v560
        %v644 = vunpack.c.h.b16 %v560
        %v645 = vunpack.c.l.b16 %v561
        %v646 = vunpack.c.h.b16 %v561
        %v647 = vunpack.c.l.b16 %v562
        %v648 = vunpack.c.h.b16 %v562
        %v649 = vunpack.c.l.b16 %v563
        %v650 = vunpack.c.h.b16 %v563
        %v651 = vunpack.c.l.b16 %v564
        %v652 = vunpack.c.h.b16 %v564
        %v653 = vunpack.c.l.b16 %v565
        %v654 = vunpack.c.h.b16 %v565
        %v655 = vunpack.c.l.b16 %v566
        %v656 = vunpack.c.h.b16 %v566
        %v657 = vunpack.c.l.b16 %v567
        %v658 = vunpack.c.h.b16 %v567
        %v659 = vunpack.c.l.b16 %v568
        %v660 = vunpack.c.h.b16 %v568
        %v661 = vunpack.c.l.b16 %v569
        %v662 = vunpack.c.h.b16 %v569
        %v663 = vunpack.c.l.b16 %v570
        %v664 = vunpack.c.h.b16 %v570
        %v665 = vunpack.c.l.b16 %v571
        %v666 = vunpack.c.h.b16 %v571
        %v667 = vunpack.c.l.b16 %v572
        %v668 = vunpack.c.h.b16 %v572
        %v669 = vpack.c.b16 %v609, %v605
        %v670 = vpack.c.b16 %v610, %v606
        %v671 = vpack.c.b16 %v611, %v607
        %v672 = vpack.c.b16 %v612, %v608
        %v673 = vpack.c.b16 %v617, %v613
        %v674 = vpack.c.b16 %v618, %v614
        %v675 = vpack.c.b16 %v619, %v615
        %v676 = vpack.c.b16 %v620, %v616
        %v677 = vpack.c.b16 %v625, %v621
        %v678 = vpack.c.b16 %v626, %v622
        %v679 = vpack.c.b16 %v627, %v623
        %v680 = vpack.c.b16 %v628, %v624
        %v681 = vpack.c.b16 %v633, %v629
        %v682 = vpack.c.b16 %v634, %v630
        %v683 = vpack.c.b16 %v635, %v631
        %v684 = vpack.c.b16 %v636, %v632
        %v685 = vpack.c.b16 %v641, %v637
        %v686 = vpack.c.b16 %v642, %v638
        %v687 = vpack.c.b16 %v643, %v639
        %v688 = vpack.c.b16 %v644, %v640
        %v689 = vpack.c.b16 %v649, %v645
        %v690 = vpack.c.b16 %v650, %v646
        %v691 = vpack.c.b16 %v651, %v647
        %v692 = vpack.c.b16 %v652, %v648
        %v693 = vpack.c.b16 %v657, %v653
        %v694 = vpack.c.b16 %v658, %v654
        %v695 = vpack.c.b16 %v659, %v655
        %v696 = vpack.c.b16 %v660, %v656
        %v697 = vpack.c.b16 %v665, %v661
        %v698 = vpack.c.b16 %v666, %v662
        %v699 = vpack.c.b16 %v667, %v663
        %v700 = vpack.c.b16 %v668, %v664
        %733 = vmatpush.bf16.msra.mxu0 %v697
        %734 = vmatpush.bf16.msra.mxu0 %v693
        %735 = vmatpush.bf16.msra.mxu0 %v689
        %736 = vmatpush.bf16.msra.mxu0 %v685
        %737 = vmatpush.bf16.msra.mxu0 %v681
        %738 = vmatpush.bf16.msra.mxu0 %v677
        %739 = vmatpush.bf16.msra.mxu0 %v673
        %740 = vmatpush.bf16.msra.mxu0 %v669
        %741 = vmatmul.bf16.gmra.mxu0 %v529
        %v742 = vpop.f32.mrf.mxu0
        %v743 = vadd.f32 0.0, %v742
        %v744 = vpop.f32.mrf.mxu0
        %v745 = vadd.f32 0.0, %v744
        %746 = vmatmul.bf16.gmra.mxu0 %v530
        %v747 = vpop.f32.mrf.mxu0
        %v748 = vadd.f32 0.0, %v747
        %v749 = vpop.f32.mrf.mxu0
        %v750 = vadd.f32 0.0, %v749
        %751 = vmatmul.bf16.gmra.mxu0 %v531
        %v752 = vpop.f32.mrf.mxu0
        %v753 = vadd.f32 0.0, %v752
        %v754 = vpop.f32.mrf.mxu0
        %v755 = vadd.f32 0.0, %v754
        %756 = vmatmul.bf16.gmra.mxu0 %v532
        %v757 = vpop.f32.mrf.mxu0
        %v758 = vadd.f32 0.0, %v757
        %v759 = vpop.f32.mrf.mxu0
        %v760 = vadd.f32 0.0, %v759
        %761 = vmatmul.bf16.gmra.mxu0 %v533
        %v762 = vpop.f32.mrf.mxu0
        %v763 = vadd.f32 0.0, %v762
        %v764 = vpop.f32.mrf.mxu0
        %v765 = vadd.f32 0.0, %v764
        %766 = vmatmul.bf16.gmra.mxu0 %v534
        %v767 = vpop.f32.mrf.mxu0
        %v768 = vadd.f32 0.0, %v767
        %v769 = vpop.f32.mrf.mxu0
        %v770 = vadd.f32 0.0, %v769
        %771 = vmatmul.bf16.gmra.mxu0 %v535
        %v772 = vpop.f32.mrf.mxu0
        %v773 = vadd.f32 0.0, %v772
        %v774 = vpop.f32.mrf.mxu0
        %v775 = vadd.f32 0.0, %v774
        %776 = vmatmul.bf16.gmra.mxu0 %v536
        %v777 = vpop.f32.mrf.mxu0
        %v778 = vadd.f32 0.0, %v777
        %v779 = vpop.f32.mrf.mxu0
        %v780 = vadd.f32 0.0, %v779
        %781 = vmatmul.bf16.gmra.mxu0 %v537
        %v782 = vpop.f32.mrf.mxu0
        %v783 = vadd.f32 0.0, %v782
        %v784 = vpop.f32.mrf.mxu0
        %v785 = vadd.f32 0.0, %v784
        %786 = vmatmul.bf16.gmra.mxu0 %v538
        %v787 = vpop.f32.mrf.mxu0
        %v788 = vadd.f32 0.0, %v787
        %v789 = vpop.f32.mrf.mxu0
        %v790 = vadd.f32 0.0, %v789
        %791 = vmatmul.bf16.gmra.mxu0 %v539
        %v792 = vpop.f32.mrf.mxu0
        %v793 = vadd.f32 0.0, %v792
        %v794 = vpop.f32.mrf.mxu0
        %v795 = vadd.f32 0.0, %v794
        %796 = vmatmul.bf16.gmra.mxu0 %v540
        %v797 = vpop.f32.mrf.mxu0
        %v798 = vadd.f32 0.0, %v797
        %v799 = vpop.f32.mrf.mxu0
        %v800 = vadd.f32 0.0, %v799
        %801 = vdwg.mxu0
        %802 = vmatpush.bf16.msra.mxu0 %v698
        %803 = vmatpush.bf16.msra.mxu0 %v694
        %804 = vmatpush.bf16.msra.mxu0 %v690
        %805 = vmatpush.bf16.msra.mxu0 %v686
        %806 = vmatpush.bf16.msra.mxu0 %v682
        %807 = vmatpush.bf16.msra.mxu0 %v678
        %808 = vmatpush.bf16.msra.mxu0 %v674
        %809 = vmatpush.bf16.msra.mxu0 %v670
        %810 = vmatmul.bf16.gmra.mxu0 %v529
        %v811 = vpop.f32.mrf.mxu0
        %v812 = vadd.f32 0.0, %v811
        %v813 = vpop.f32.mrf.mxu0
        %v814 = vadd.f32 0.0, %v813
        %815 = vmatmul.bf16.gmra.mxu0 %v530
        %v816 = vpop.f32.mrf.mxu0
        %v817 = vadd.f32 0.0, %v816
        %v818 = vpop.f32.mrf.mxu0
        %v819 = vadd.f32 0.0, %v818
        %820 = vmatmul.bf16.gmra.mxu0 %v531
        %v821 = vpop.f32.mrf.mxu0
        %v822 = vadd.f32 0.0, %v821
        %v823 = vpop.f32.mrf.mxu0
        %v824 = vadd.f32 0.0, %v823
        %825 = vmatmul.bf16.gmra.mxu0 %v532
        %v826 = vpop.f32.mrf.mxu0
        %v827 = vadd.f32 0.0, %v826
        %v828 = vpop.f32.mrf.mxu0
        %v829 = vadd.f32 0.0, %v828
        %830 = vmatmul.bf16.gmra.mxu0 %v533
        %v831 = vpop.f32.mrf.mxu0
        %v832 = vadd.f32 0.0, %v831
        %v833 = vpop.f32.mrf.mxu0
        %v834 = vadd.f32 0.0, %v833
        %835 = vmatmul.bf16.gmra.mxu0 %v534
        %v836 = vpop.f32.mrf.mxu0
        %v837 = vadd.f32 0.0, %v836
        %v838 = vpop.f32.mrf.mxu0
        %v839 = vadd.f32 0.0, %v838
        %840 = vmatmul.bf16.gmra.mxu0 %v535
        %v841 = vpop.f32.mrf.mxu0
        %v842 = vadd.f32 0.0, %v841
        %v843 = vpop.f32.mrf.mxu0
        %v844 = vadd.f32 0.0, %v843
        %845 = vmatmul.bf16.gmra.mxu0 %v536
        %v846 = vpop.f32.mrf.mxu0
        %v847 = vadd.f32 0.0, %v846
        %v848 = vpop.f32.mrf.mxu0
        %v849 = vadd.f32 0.0, %v848
        %850 = vmatmul.bf16.gmra.mxu0 %v537
        %v851 = vpop.f32.mrf.mxu0
        %v852 = vadd.f32 0.0, %v851
        %v853 = vpop.f32.mrf.mxu0
        %v854 = vadd.f32 0.0, %v853
        %855 = vmatmul.bf16.gmra.mxu0 %v538
        %v856 = vpop.f32.mrf.mxu0
        %v857 = vadd.f32 0.0, %v856
        %v858 = vpop.f32.mrf.mxu0
        %v859 = vadd.f32 0.0, %v858
        %860 = vmatmul.bf16.gmra.mxu0 %v539
        %v861 = vpop.f32.mrf.mxu0
        %v862 = vadd.f32 0.0, %v861
        %v863 = vpop.f32.mrf.mxu0
        %v864 = vadd.f32 0.0, %v863
        %865 = vmatmul.bf16.gmra.mxu0 %v540
        %v866 = vpop.f32.mrf.mxu0
        %v867 = vadd.f32 0.0, %v866
        %v868 = vpop.f32.mrf.mxu0
        %v869 = vadd.f32 0.0, %v868
        %870 = vdwg.mxu0
        %871 = vmatpush.bf16.msra.mxu0 %v699
        %872 = vmatpush.bf16.msra.mxu0 %v695
        %873 = vmatpush.bf16.msra.mxu0 %v691
        %874 = vmatpush.bf16.msra.mxu0 %v687
        %875 = vmatpush.bf16.msra.mxu0 %v683
        %876 = vmatpush.bf16.msra.mxu0 %v679
        %877 = vmatpush.bf16.msra.mxu0 %v675
        %878 = vmatpush.bf16.msra.mxu0 %v671
        %879 = vmatmul.bf16.gmra.mxu0 %v529
        %v880 = vpop.f32.mrf.mxu0
        %v881 = vadd.f32 0.0, %v880
        %v882 = vpop.f32.mrf.mxu0
        %v883 = vadd.f32 0.0, %v882
        %884 = vmatmul.bf16.gmra.mxu0 %v530
        %v885 = vpop.f32.mrf.mxu0
        %v886 = vadd.f32 0.0, %v885
        %v887 = vpop.f32.mrf.mxu0
        %v888 = vadd.f32 0.0, %v887
        %889 = vmatmul.bf16.gmra.mxu0 %v531
        %v890 = vpop.f32.mrf.mxu0
        %v891 = vadd.f32 0.0, %v890
        %v892 = vpop.f32.mrf.mxu0
        %v893 = vadd.f32 0.0, %v892
        %894 = vmatmul.bf16.gmra.mxu0 %v532
        %v895 = vpop.f32.mrf.mxu0
        %v896 = vadd.f32 0.0, %v895
        %v897 = vpop.f32.mrf.mxu0
        %v898 = vadd.f32 0.0, %v897
        %899 = vmatmul.bf16.gmra.mxu0 %v533
        %v900 = vpop.f32.mrf.mxu0
        %v901 = vadd.f32 0.0, %v900
        %v902 = vpop.f32.mrf.mxu0
        %v903 = vadd.f32 0.0, %v902
        %904 = vmatmul.bf16.gmra.mxu0 %v534
        %v905 = vpop.f32.mrf.mxu0
        %v906 = vadd.f32 0.0, %v905
        %v907 = vpop.f32.mrf.mxu0
        %v908 = vadd.f32 0.0, %v907
        %909 = vmatmul.bf16.gmra.mxu0 %v535
        %v910 = vpop.f32.mrf.mxu0
        %v911 = vadd.f32 0.0, %v910
        %v912 = vpop.f32.mrf.mxu0
        %v913 = vadd.f32 0.0, %v912
        %914 = vmatmul.bf16.gmra.mxu0 %v536
        %v915 = vpop.f32.mrf.mxu0
        %v916 = vadd.f32 0.0, %v915
        %v917 = vpop.f32.mrf.mxu0
        %v918 = vadd.f32 0.0, %v917
        %919 = vmatmul.bf16.gmra.mxu0 %v537
        %v920 = vpop.f32.mrf.mxu0
        %v921 = vadd.f32 0.0, %v920
        %v922 = vpop.f32.mrf.mxu0
        %v923 = vadd.f32 0.0, %v922
        %924 = vmatmul.bf16.gmra.mxu0 %v538
        %v925 = vpop.f32.mrf.mxu0
        %v926 = vadd.f32 0.0, %v925
        %v927 = vpop.f32.mrf.mxu0
        %v928 = vadd.f32 0.0, %v927
        %929 = vmatmul.bf16.gmra.mxu0 %v539
        %v930 = vpop.f32.mrf.mxu0
        %v931 = vadd.f32 0.0, %v930
        %v932 = vpop.f32.mrf.mxu0
        %v933 = vadd.f32 0.0, %v932
        %934 = vmatmul.bf16.gmra.mxu0 %v540
        %v935 = vpop.f32.mrf.mxu0
        %v936 = vadd.f32 0.0, %v935
        %v937 = vpop.f32.mrf.mxu0
        %v938 = vadd.f32 0.0, %v937
        %939 = vdwg.mxu0
        %940 = vmatpush.bf16.msra.mxu0 %v700
        %941 = vmatpush.bf16.msra.mxu0 %v696
        %942 = vmatpush.bf16.msra.mxu0 %v692
        %943 = vmatpush.bf16.msra.mxu0 %v688
        %944 = vmatpush.bf16.msra.mxu0 %v684
        %945 = vmatpush.bf16.msra.mxu0 %v680
        %946 = vmatpush.bf16.msra.mxu0 %v676
        %947 = vmatpush.bf16.msra.mxu0 %v672
        %948 = vmatmul.bf16.gmra.mxu0 %v529
        %v949 = vpop.f32.mrf.mxu0
        %v950 = vadd.f32 0.0, %v949
        %v951 = vpop.f32.mrf.mxu0
        %v952 = vadd.f32 0.0, %v951
        %953 = vmatmul.bf16.gmra.mxu0 %v530
        %v954 = vpop.f32.mrf.mxu0
        %v955 = vadd.f32 0.0, %v954
        %v956 = vpop.f32.mrf.mxu0
        %v957 = vadd.f32 0.0, %v956
        %958 = vmatmul.bf16.gmra.mxu0 %v531
        %v959 = vpop.f32.mrf.mxu0
        %v960 = vadd.f32 0.0, %v959
        %v961 = vpop.f32.mrf.mxu0
        %v962 = vadd.f32 0.0, %v961
        %963 = vmatmul.bf16.gmra.mxu0 %v532
        %v964 = vpop.f32.mrf.mxu0
        %v965 = vadd.f32 0.0, %v964
        %v966 = vpop.f32.mrf.mxu0
        %v967 = vadd.f32 0.0, %v966
        %968 = vmatmul.bf16.gmra.mxu0 %v533
        %v969 = vpop.f32.mrf.mxu0
        %v970 = vadd.f32 0.0, %v969
        %v971 = vpop.f32.mrf.mxu0
        %v972 = vadd.f32 0.0, %v971
        %973 = vmatmul.bf16.gmra.mxu0 %v534
        %v974 = vpop.f32.mrf.mxu0
        %v975 = vadd.f32 0.0, %v974
        %v976 = vpop.f32.mrf.mxu0
        %v977 = vadd.f32 0.0, %v976
        %978 = vmatmul.bf16.gmra.mxu0 %v535
        %v979 = vpop.f32.mrf.mxu0
        %v980 = vadd.f32 0.0, %v979
        %v981 = vpop.f32.mrf.mxu0
        %v982 = vadd.f32 0.0, %v981
        %983 = vmatmul.bf16.gmra.mxu0 %v536
        %v984 = vpop.f32.mrf.mxu0
        %v985 = vadd.f32 0.0, %v984
        %v986 = vpop.f32.mrf.mxu0
        %v987 = vadd.f32 0.0, %v986
        %988 = vmatmul.bf16.gmra.mxu0 %v537
        %v989 = vpop.f32.mrf.mxu0
        %v990 = vadd.f32 0.0, %v989
        %v991 = vpop.f32.mrf.mxu0
        %v992 = vadd.f32 0.0, %v991
        %993 = vmatmul.bf16.gmra.mxu0 %v538
        %v994 = vpop.f32.mrf.mxu0
        %v995 = vadd.f32 0.0, %v994
        %v996 = vpop.f32.mrf.mxu0
        %v997 = vadd.f32 0.0, %v996
        %998 = vmatmul.bf16.gmra.mxu0 %v539
        %v999 = vpop.f32.mrf.mxu0
        %v1000 = vadd.f32 0.0, %v999
        %v1001 = vpop.f32.mrf.mxu0
        %v1002 = vadd.f32 0.0, %v1001
        %1003 = vmatmul.bf16.gmra.mxu0 %v540
        %v1004 = vpop.f32.mrf.mxu0
        %v1005 = vadd.f32 0.0, %v1004
        %v1006 = vpop.f32.mrf.mxu0
        %v1007 = vadd.f32 0.0, %v1006
        %1008 = vdwg.mxu0
        %v1009 = vld [vmem:[%s356] sm:$0xff]
        %v1010 = vld [vmem:[%s356 + $0x8] sm:$0xff]
        %v1011 = vld [vmem:[%s356 + $0x10] sm:$0xff]
        %v1012 = vld [vmem:[%s356 + $0x18] sm:$0xff]
        %v1013 = vld [vmem:[%s356 + $0x20] sm:$0xff]
        %v1014 = vld [vmem:[%s356 + $0x28] sm:$0xff]
        %v1015 = vld [vmem:[%s356 + $0x30] sm:$0xff]
        %v1016 = vld [vmem:[%s356 + $0x38] sm:$0xff]
        %v1017 = vld [vmem:[%s356 + $0x40] sm:$0xff]
        %v1018 = vld [vmem:[%s356 + $0x48] sm:$0xff]
        %v1019 = vld [vmem:[%s356 + $0x50] sm:$0xff]
        %v1020 = vld [vmem:[%s356 + $0x58] sm:$0xff]
        %v1021 = vld [vmem:[%s356 + $0x60] sm:$0xff]
        %v1022 = vld [vmem:[%s356 + $0x68] sm:$0xff]
        %v1023 = vld [vmem:[%s356 + $0x70] sm:$0xff]
        %v1024 = vld [vmem:[%s356 + $0x78] sm:$0xff]
        %v1025 = vld [vmem:[%s356 + $0x80] sm:$0xff]
        %v1026 = vld [vmem:[%s356 + $0x88] sm:$0xff]
        %v1027 = vld [vmem:[%s356 + $0x90] sm:$0xff]
        %v1028 = vld [vmem:[%s356 + $0x98] sm:$0xff]
        %v1029 = vld [vmem:[%s356 + $0xa0] sm:$0xff]
        %v1030 = vld [vmem:[%s356 + $0xa8] sm:$0xff]
        %v1031 = vld [vmem:[%s356 + $0xb0] sm:$0xff]
        %v1032 = vld [vmem:[%s356 + $0xb8] sm:$0xff]
        %v1033 = vld [vmem:[%s356 + $0xc0] sm:$0xff]
        %v1034 = vld [vmem:[%s356 + $0xc8] sm:$0xff]
        %v1035 = vld [vmem:[%s356 + $0xd0] sm:$0xff]
        %v1036 = vld [vmem:[%s356 + $0xd8] sm:$0xff]
        %v1037 = vld [vmem:[%s356 + $0xe0] sm:$0xff]
        %v1038 = vld [vmem:[%s356 + $0xe8] sm:$0xff]
        %v1039 = vld [vmem:[%s356 + $0xf0] sm:$0xff]
        %v1040 = vld [vmem:[%s356 + $0xf8] sm:$0xff]
        %v1041 = vld [vmem:[%s356 + $0x100] sm:$0xff]
        %v1042 = vld [vmem:[%s356 + $0x108] sm:$0xff]
        %v1043 = vld [vmem:[%s356 + $0x110] sm:$0xff]
        %v1044 = vld [vmem:[%s356 + $0x118] sm:$0xff]
        %v1045 = vld [vmem:[%s356 + $0x120] sm:$0xff]
        %v1046 = vld [vmem:[%s356 + $0x128] sm:$0xff]
        %v1047 = vld [vmem:[%s356 + $0x130] sm:$0xff]
        %v1048 = vld [vmem:[%s356 + $0x138] sm:$0xff]
        %v1049 = vld [vmem:[%s356 + $0x140] sm:$0xff]
        %v1050 = vld [vmem:[%s356 + $0x148] sm:$0xff]
        %v1051 = vld [vmem:[%s356 + $0x150] sm:$0xff]
        %v1052 = vld [vmem:[%s356 + $0x158] sm:$0xff]
        %v1053 = vld [vmem:[%s356 + $0x160] sm:$0xff]
        %v1054 = vld [vmem:[%s356 + $0x168] sm:$0xff]
        %v1055 = vld [vmem:[%s356 + $0x170] sm:$0xff]
        %v1056 = vld [vmem:[%s356 + $0x178] sm:$0xff]
        %v1057 = vpack.c.bf16 %v1011, %v1009
        %v1058 = vpack.c.bf16 %v1012, %v1010
        %v1059 = vpack.c.bf16 %v1015, %v1013
        %v1060 = vpack.c.bf16 %v1016, %v1014
        %v1061 = vpack.c.bf16 %v1019, %v1017
        %v1062 = vpack.c.bf16 %v1020, %v1018
        %v1063 = vpack.c.bf16 %v1023, %v1021
        %v1064 = vpack.c.bf16 %v1024, %v1022
        %v1065 = vpack.c.bf16 %v1027, %v1025
        %v1066 = vpack.c.bf16 %v1028, %v1026
        %v1067 = vpack.c.bf16 %v1031, %v1029
        %v1068 = vpack.c.bf16 %v1032, %v1030
        %v1069 = vpack.c.bf16 %v1035, %v1033
        %v1070 = vpack.c.bf16 %v1036, %v1034
        %v1071 = vpack.c.bf16 %v1039, %v1037
        %v1072 = vpack.c.bf16 %v1040, %v1038
        %v1073 = vpack.c.bf16 %v1043, %v1041
        %v1074 = vpack.c.bf16 %v1044, %v1042
        %v1075 = vpack.c.bf16 %v1047, %v1045
        %v1076 = vpack.c.bf16 %v1048, %v1046
        %v1077 = vpack.c.bf16 %v1051, %v1049
        %v1078 = vpack.c.bf16 %v1052, %v1050
        %v1079 = vpack.c.bf16 %v1055, %v1053
        %v1080 = vpack.c.bf16 %v1056, %v1054
        %v1081 = vld [vmem:[%s3] sm:$0xff]
        %v1082 = vld [vmem:[%s3 + $0x8] sm:$0xff]
        %v1083 = vld [vmem:[%s3 + $0x10] sm:$0xff]
        %v1084 = vld [vmem:[%s3 + $0x18] sm:$0xff]
        %v1085 = vld [vmem:[%s3 + $0x20] sm:$0xff]
        %v1086 = vld [vmem:[%s3 + $0x28] sm:$0xff]
        %v1087 = vld [vmem:[%s3 + $0x30] sm:$0xff]
        %v1088 = vld [vmem:[%s3 + $0x38] sm:$0xff]
        %v1089 = vld [vmem:[%s3 + $0x40] sm:$0xff]
        %v1090 = vld [vmem:[%s3 + $0x48] sm:$0xff]
        %v1091 = vld [vmem:[%s3 + $0x50] sm:$0xff]
        %v1092 = vld [vmem:[%s3 + $0x58] sm:$0xff]
        %v1093 = vld [vmem:[%s3 + $0x60] sm:$0xff]
        %v1094 = vld [vmem:[%s3 + $0x68] sm:$0xff]
        %v1095 = vld [vmem:[%s3 + $0x70] sm:$0xff]
        %v1096 = vld [vmem:[%s3 + $0x78] sm:$0xff]
        %v1097 = vld [vmem:[%s3 + $0x80] sm:$0xff]
        %v1098 = vld [vmem:[%s3 + $0x88] sm:$0xff]
        %v1099 = vld [vmem:[%s3 + $0x90] sm:$0xff]
        %v1100 = vld [vmem:[%s3 + $0x98] sm:$0xff]
        %v1101 = vld [vmem:[%s3 + $0xa0] sm:$0xff]
        %v1102 = vld [vmem:[%s3 + $0xa8] sm:$0xff]
        %v1103 = vld [vmem:[%s3 + $0xb0] sm:$0xff]
        %v1104 = vld [vmem:[%s3 + $0xb8] sm:$0xff]
        %v1105 = vld [vmem:[%s3 + $0xc0] sm:$0xff]
        %v1106 = vld [vmem:[%s3 + $0xc8] sm:$0xff]
        %v1107 = vld [vmem:[%s3 + $0xd0] sm:$0xff]
        %v1108 = vld [vmem:[%s3 + $0xd8] sm:$0xff]
        %v1109 = vld [vmem:[%s3 + $0xe0] sm:$0xff]
        %v1110 = vld [vmem:[%s3 + $0xe8] sm:$0xff]
        %v1111 = vld [vmem:[%s3 + $0xf0] sm:$0xff]
        %v1112 = vld [vmem:[%s3 + $0xf8] sm:$0xff]
        %v1113 = vld [vmem:[%s3 + $0x100] sm:$0xff]
        %v1114 = vld [vmem:[%s3 + $0x108] sm:$0xff]
        %v1115 = vld [vmem:[%s3 + $0x110] sm:$0xff]
        %v1116 = vld [vmem:[%s3 + $0x118] sm:$0xff]
        %v1117 = vld [vmem:[%s3 + $0x120] sm:$0xff]
        %v1118 = vld [vmem:[%s3 + $0x128] sm:$0xff]
        %v1119 = vld [vmem:[%s3 + $0x130] sm:$0xff]
        %v1120 = vld [vmem:[%s3 + $0x138] sm:$0xff]
        %v1121 = vld [vmem:[%s3 + $0x140] sm:$0xff]
        %v1122 = vld [vmem:[%s3 + $0x148] sm:$0xff]
        %v1123 = vld [vmem:[%s3 + $0x150] sm:$0xff]
        %v1124 = vld [vmem:[%s3 + $0x158] sm:$0xff]
        %v1125 = vld [vmem:[%s3 + $0x160] sm:$0xff]
        %v1126 = vld [vmem:[%s3 + $0x168] sm:$0xff]
        %v1127 = vld [vmem:[%s3 + $0x170] sm:$0xff]
        %v1128 = vld [vmem:[%s3 + $0x178] sm:$0xff]
        %v1129 = vld [vmem:[%s3 + $0x180] sm:$0xff]
        %v1130 = vld [vmem:[%s3 + $0x188] sm:$0xff]
        %v1131 = vld [vmem:[%s3 + $0x190] sm:$0xff]
        %v1132 = vld [vmem:[%s3 + $0x198] sm:$0xff]
        %v1133 = vld [vmem:[%s3 + $0x1a0] sm:$0xff]
        %v1134 = vld [vmem:[%s3 + $0x1a8] sm:$0xff]
        %v1135 = vld [vmem:[%s3 + $0x1b0] sm:$0xff]
        %v1136 = vld [vmem:[%s3 + $0x1b8] sm:$0xff]
        %v1137 = vld [vmem:[%s3 + $0x1c0] sm:$0xff]
        %v1138 = vld [vmem:[%s3 + $0x1c8] sm:$0xff]
        %v1139 = vld [vmem:[%s3 + $0x1d0] sm:$0xff]
        %v1140 = vld [vmem:[%s3 + $0x1d8] sm:$0xff]
        %v1141 = vld [vmem:[%s3 + $0x1e0] sm:$0xff]
        %v1142 = vld [vmem:[%s3 + $0x1e8] sm:$0xff]
        %v1143 = vld [vmem:[%s3 + $0x1f0] sm:$0xff]
        %v1144 = vld [vmem:[%s3 + $0x1f8] sm:$0xff]
        %v1209 = vunpack.c.l.b16 %v1081
        %v1210 = vunpack.c.h.b16 %v1081
        %v1211 = vunpack.c.l.b16 %v1082
        %v1212 = vunpack.c.h.b16 %v1082
        %v1213 = vunpack.c.l.b16 %v1083
        %v1214 = vunpack.c.h.b16 %v1083
        %v1215 = vunpack.c.l.b16 %v1084
        %v1216 = vunpack.c.h.b16 %v1084
        %v1217 = vunpack.c.l.b16 %v1085
        %v1218 = vunpack.c.h.b16 %v1085
        %v1219 = vunpack.c.l.b16 %v1086
        %v1220 = vunpack.c.h.b16 %v1086
        %v1221 = vunpack.c.l.b16 %v1087
        %v1222 = vunpack.c.h.b16 %v1087
        %v1223 = vunpack.c.l.b16 %v1088
        %v1224 = vunpack.c.h.b16 %v1088
        %v1225 = vunpack.c.l.b16 %v1089
        %v1226 = vunpack.c.h.b16 %v1089
        %v1227 = vunpack.c.l.b16 %v1090
        %v1228 = vunpack.c.h.b16 %v1090
        %v1229 = vunpack.c.l.b16 %v1091
        %v1230 = vunpack.c.h.b16 %v1091
        %v1231 = vunpack.c.l.b16 %v1092
        %v1232 = vunpack.c.h.b16 %v1092
        %v1233 = vunpack.c.l.b16 %v1093
        %v1234 = vunpack.c.h.b16 %v1093
        %v1235 = vunpack.c.l.b16 %v1094
        %v1236 = vunpack.c.h.b16 %v1094
        %v1237 = vunpack.c.l.b16 %v1095
        %v1238 = vunpack.c.h.b16 %v1095
        %v1239 = vunpack.c.l.b16 %v1096
        %v1240 = vunpack.c.h.b16 %v1096
        %v1241 = vunpack.c.l.b16 %v1097
        %v1242 = vunpack.c.h.b16 %v1097
        %v1243 = vunpack.c.l.b16 %v1098
        %v1244 = vunpack.c.h.b16 %v1098
        %v1245 = vunpack.c.l.b16 %v1099
        %v1246 = vunpack.c.h.b16 %v1099
        %v1247 = vunpack.c.l.b16 %v1100
        %v1248 = vunpack.c.h.b16 %v1100
        %v1249 = vunpack.c.l.b16 %v1101
        %v1250 = vunpack.c.h.b16 %v1101
        %v1251 = vunpack.c.l.b16 %v1102
        %v1252 = vunpack.c.h.b16 %v1102
        %v1253 = vunpack.c.l.b16 %v1103
        %v1254 = vunpack.c.h.b16 %v1103
        %v1255 = vunpack.c.l.b16 %v1104
        %v1256 = vunpack.c.h.b16 %v1104
        %v1257 = vunpack.c.l.b16 %v1105
        %v1258 = vunpack.c.h.b16 %v1105
        %v1259 = vunpack.c.l.b16 %v1106
        %v1260 = vunpack.c.h.b16 %v1106
        %v1261 = vunpack.c.l.b16 %v1107
        %v1262 = vunpack.c.h.b16 %v1107
        %v1263 = vunpack.c.l.b16 %v1108
        %v1264 = vunpack.c.h.b16 %v1108
        %v1265 = vunpack.c.l.b16 %v1109
        %v1266 = vunpack.c.h.b16 %v1109
        %v1267 = vunpack.c.l.b16 %v1110
        %v1268 = vunpack.c.h.b16 %v1110
        %v1269 = vunpack.c.l.b16 %v1111
        %v1270 = vunpack.c.h.b16 %v1111
        %v1271 = vunpack.c.l.b16 %v1112
        %v1272 = vunpack.c.h.b16 %v1112
        %v1273 = vunpack.c.l.b16 %v1113
        %v1274 = vunpack.c.h.b16 %v1113
        %v1275 = vunpack.c.l.b16 %v1114
        %v1276 = vunpack.c.h.b16 %v1114
        %v1277 = vunpack.c.l.b16 %v1115
        %v1278 = vunpack.c.h.b16 %v1115
        %v1279 = vunpack.c.l.b16 %v1116
        %v1280 = vunpack.c.h.b16 %v1116
        %v1281 = vunpack.c.l.b16 %v1117
        %v1282 = vunpack.c.h.b16 %v1117
        %v1283 = vunpack.c.l.b16 %v1118
        %v1284 = vunpack.c.h.b16 %v1118
        %v1285 = vunpack.c.l.b16 %v1119
        %v1286 = vunpack.c.h.b16 %v1119
        %v1287 = vunpack.c.l.b16 %v1120
        %v1288 = vunpack.c.h.b16 %v1120
        %v1289 = vunpack.c.l.b16 %v1121
        %v1290 = vunpack.c.h.b16 %v1121
        %v1291 = vunpack.c.l.b16 %v1122
        %v1292 = vunpack.c.h.b16 %v1122
        %v1293 = vunpack.c.l.b16 %v1123
        %v1294 = vunpack.c.h.b16 %v1123
        %v1295 = vunpack.c.l.b16 %v1124
        %v1296 = vunpack.c.h.b16 %v1124
        %v1297 = vunpack.c.l.b16 %v1125
        %v1298 = vunpack.c.h.b16 %v1125
        %v1299 = vunpack.c.l.b16 %v1126
        %v1300 = vunpack.c.h.b16 %v1126
        %v1301 = vunpack.c.l.b16 %v1127
        %v1302 = vunpack.c.h.b16 %v1127
        %v1303 = vunpack.c.l.b16 %v1128
        %v1304 = vunpack.c.h.b16 %v1128
        %v1305 = vunpack.c.l.b16 %v1129
        %v1306 = vunpack.c.h.b16 %v1129
        %v1307 = vunpack.c.l.b16 %v1130
        %v1308 = vunpack.c.h.b16 %v1130
        %v1309 = vunpack.c.l.b16 %v1131
        %v1310 = vunpack.c.h.b16 %v1131
        %v1311 = vunpack.c.l.b16 %v1132
        %v1312 = vunpack.c.h.b16 %v1132
        %v1313 = vunpack.c.l.b16 %v1133
        %v1314 = vunpack.c.h.b16 %v1133
        %v1315 = vunpack.c.l.b16 %v1134
        %v1316 = vunpack.c.h.b16 %v1134
        %v1317 = vunpack.c.l.b16 %v1135
        %v1318 = vunpack.c.h.b16 %v1135
        %v1319 = vunpack.c.l.b16 %v1136
        %v1320 = vunpack.c.h.b16 %v1136
        %v1321 = vunpack.c.l.b16 %v1137
        %v1322 = vunpack.c.h.b16 %v1137
        %v1323 = vunpack.c.l.b16 %v1138
        %v1324 = vunpack.c.h.b16 %v1138
        %v1325 = vunpack.c.l.b16 %v1139
        %v1326 = vunpack.c.h.b16 %v1139
        %v1327 = vunpack.c.l.b16 %v1140
        %v1328 = vunpack.c.h.b16 %v1140
        %v1329 = vunpack.c.l.b16 %v1141
        %v1330 = vunpack.c.h.b16 %v1141
        %v1331 = vunpack.c.l.b16 %v1142
        %v1332 = vunpack.c.h.b16 %v1142
        %v1333 = vunpack.c.l.b16 %v1143
        %v1334 = vunpack.c.h.b16 %v1143
        %v1335 = vunpack.c.l.b16 %v1144
        %v1336 = vunpack.c.h.b16 %v1144
        %v1337 = vpack.c.b16 %v1213, %v1209
        %v1338 = vpack.c.b16 %v1214, %v1210
        %v1339 = vpack.c.b16 %v1215, %v1211
        %v1340 = vpack.c.b16 %v1216, %v1212
        %v1341 = vpack.c.b16 %v1221, %v1217
        %v1342 = vpack.c.b16 %v1222, %v1218
        %v1343 = vpack.c.b16 %v1223, %v1219
        %v1344 = vpack.c.b16 %v1224, %v1220
        %v1345 = vpack.c.b16 %v1229, %v1225
        %v1346 = vpack.c.b16 %v1230, %v1226
        %v1347 = vpack.c.b16 %v1231, %v1227
        %v1348 = vpack.c.b16 %v1232, %v1228
        %v1349 = vpack.c.b16 %v1237, %v1233
        %v1350 = vpack.c.b16 %v1238, %v1234
        %v1351 = vpack.c.b16 %v1239, %v1235
        %v1352 = vpack.c.b16 %v1240, %v1236
        %v1353 = vpack.c.b16 %v1245, %v1241
        %v1354 = vpack.c.b16 %v1246, %v1242
        %v1355 = vpack.c.b16 %v1247, %v1243
        %v1356 = vpack.c.b16 %v1248, %v1244
        %v1357 = vpack.c.b16 %v1253, %v1249
        %v1358 = vpack.c.b16 %v1254, %v1250
        %v1359 = vpack.c.b16 %v1255, %v1251
        %v1360 = vpack.c.b16 %v1256, %v1252
        %v1361 = vpack.c.b16 %v1261, %v1257
        %v1362 = vpack.c.b16 %v1262, %v1258
        %v1363 = vpack.c.b16 %v1263, %v1259
        %v1364 = vpack.c.b16 %v1264, %v1260
        %v1365 = vpack.c.b16 %v1269, %v1265
        %v1366 = vpack.c.b16 %v1270, %v1266
        %v1367 = vpack.c.b16 %v1271, %v1267
        %v1368 = vpack.c.b16 %v1272, %v1268
        %v1369 = vpack.c.b16 %v1277, %v1273
        %v1370 = vpack.c.b16 %v1278, %v1274
        %v1371 = vpack.c.b16 %v1279, %v1275
        %v1372 = vpack.c.b16 %v1280, %v1276
        %v1373 = vpack.c.b16 %v1285, %v1281
        %v1374 = vpack.c.b16 %v1286, %v1282
        %v1375 = vpack.c.b16 %v1287, %v1283
        %v1376 = vpack.c.b16 %v1288, %v1284
        %v1377 = vpack.c.b16 %v1293, %v1289
        %v1378 = vpack.c.b16 %v1294, %v1290
        %v1379 = vpack.c.b16 %v1295, %v1291
        %v1380 = vpack.c.b16 %v1296, %v1292
        %v1381 = vpack.c.b16 %v1301, %v1297
        %v1382 = vpack.c.b16 %v1302, %v1298
        %v1383 = vpack.c.b16 %v1303, %v1299
        %v1384 = vpack.c.b16 %v1304, %v1300
        %v1385 = vpack.c.b16 %v1309, %v1305
        %v1386 = vpack.c.b16 %v1310, %v1306
        %v1387 = vpack.c.b16 %v1311, %v1307
        %v1388 = vpack.c.b16 %v1312, %v1308
        %v1389 = vpack.c.b16 %v1317, %v1313
        %v1390 = vpack.c.b16 %v1318, %v1314
        %v1391 = vpack.c.b16 %v1319, %v1315
        %v1392 = vpack.c.b16 %v1320, %v1316
        %v1393 = vpack.c.b16 %v1325, %v1321
        %v1394 = vpack.c.b16 %v1326, %v1322
        %v1395 = vpack.c.b16 %v1327, %v1323
        %v1396 = vpack.c.b16 %v1328, %v1324
        %v1397 = vpack.c.b16 %v1333, %v1329
        %v1398 = vpack.c.b16 %v1334, %v1330
        %v1399 = vpack.c.b16 %v1335, %v1331
        %v1400 = vpack.c.b16 %v1336, %v1332
        %1465 = vmatpush.bf16.msra.mxu0 %v1365
        %1466 = vmatpush.bf16.msra.mxu0 %v1361
        %1467 = vmatpush.bf16.msra.mxu0 %v1357
        %1468 = vmatpush.bf16.msra.mxu0 %v1353
        %1469 = vmatpush.bf16.msra.mxu0 %v1349
        %1470 = vmatpush.bf16.msra.mxu0 %v1345
        %1471 = vmatpush.bf16.msra.mxu0 %v1341
        %1472 = vmatpush.bf16.msra.mxu0 %v1337
        %1473 = vmatmul.bf16.gmra.mxu0 %v1057
        %v1474 = vpop.f32.mrf.mxu0
        %v1475 = vadd.f32 %v743, %v1474
        %v1476 = vpop.f32.mrf.mxu0
        %v1477 = vadd.f32 %v745, %v1476
        %1478 = vmatmul.bf16.gmra.mxu0 %v1059
        %v1479 = vpop.f32.mrf.mxu0
        %v1480 = vadd.f32 %v748, %v1479
        %v1481 = vpop.f32.mrf.mxu0
        %v1482 = vadd.f32 %v750, %v1481
        %1483 = vmatmul.bf16.gmra.mxu0 %v1061
        %v1484 = vpop.f32.mrf.mxu0
        %v1485 = vadd.f32 %v753, %v1484
        %v1486 = vpop.f32.mrf.mxu0
        %v1487 = vadd.f32 %v755, %v1486
        %1488 = vmatmul.bf16.gmra.mxu0 %v1063
        %v1489 = vpop.f32.mrf.mxu0
        %v1490 = vadd.f32 %v758, %v1489
        %v1491 = vpop.f32.mrf.mxu0
        %v1492 = vadd.f32 %v760, %v1491
        %1493 = vmatmul.bf16.gmra.mxu0 %v1065
        %v1494 = vpop.f32.mrf.mxu0
        %v1495 = vadd.f32 %v763, %v1494
        %v1496 = vpop.f32.mrf.mxu0
        %v1497 = vadd.f32 %v765, %v1496
        %1498 = vmatmul.bf16.gmra.mxu0 %v1067
        %v1499 = vpop.f32.mrf.mxu0
        %v1500 = vadd.f32 %v768, %v1499
        %v1501 = vpop.f32.mrf.mxu0
        %v1502 = vadd.f32 %v770, %v1501
        %1503 = vmatmul.bf16.gmra.mxu0 %v1069
        %v1504 = vpop.f32.mrf.mxu0
        %v1505 = vadd.f32 %v773, %v1504
        %v1506 = vpop.f32.mrf.mxu0
        %v1507 = vadd.f32 %v775, %v1506
        %1508 = vmatmul.bf16.gmra.mxu0 %v1071
        %v1509 = vpop.f32.mrf.mxu0
        %v1510 = vadd.f32 %v778, %v1509
        %v1511 = vpop.f32.mrf.mxu0
        %v1512 = vadd.f32 %v780, %v1511
        %1513 = vmatmul.bf16.gmra.mxu0 %v1073
        %v1514 = vpop.f32.mrf.mxu0
        %v1515 = vadd.f32 %v783, %v1514
        %v1516 = vpop.f32.mrf.mxu0
        %v1517 = vadd.f32 %v785, %v1516
        %1518 = vmatmul.bf16.gmra.mxu0 %v1075
        %v1519 = vpop.f32.mrf.mxu0
        %v1520 = vadd.f32 %v788, %v1519
        %v1521 = vpop.f32.mrf.mxu0
        %v1522 = vadd.f32 %v790, %v1521
        %1523 = vmatmul.bf16.gmra.mxu0 %v1077
        %v1524 = vpop.f32.mrf.mxu0
        %v1525 = vadd.f32 %v793, %v1524
        %v1526 = vpop.f32.mrf.mxu0
        %v1527 = vadd.f32 %v795, %v1526
        %1528 = vmatmul.bf16.gmra.mxu0 %v1079
        %v1529 = vpop.f32.mrf.mxu0
        %v1530 = vadd.f32 %v798, %v1529
        %v1531 = vpop.f32.mrf.mxu0
        %v1532 = vadd.f32 %v800, %v1531
        %1533 = vdwg.mxu0
        %1534 = vmatpush.bf16.msra.mxu0 %v1397
        %1535 = vmatpush.bf16.msra.mxu0 %v1393
        %1536 = vmatpush.bf16.msra.mxu0 %v1389
        %1537 = vmatpush.bf16.msra.mxu0 %v1385
        %1538 = vmatpush.bf16.msra.mxu0 %v1381
        %1539 = vmatpush.bf16.msra.mxu0 %v1377
        %1540 = vmatpush.bf16.msra.mxu0 %v1373
        %1541 = vmatpush.bf16.msra.mxu0 %v1369
        %1542 = vmatmul.bf16.gmra.mxu0 %v1058
        %v1543 = vpop.f32.mrf.mxu0
        %v1544 = vadd.f32 %v1475, %v1543
        %v1545 = vpop.f32.mrf.mxu0
        %v1546 = vadd.f32 %v1477, %v1545
        %1547 = vmatmul.bf16.gmra.mxu0 %v1060
        %v1548 = vpop.f32.mrf.mxu0
        %v1549 = vadd.f32 %v1480, %v1548
        %v1550 = vpop.f32.mrf.mxu0
        %v1551 = vadd.f32 %v1482, %v1550
        %1552 = vmatmul.bf16.gmra.mxu0 %v1062
        %v1553 = vpop.f32.mrf.mxu0
        %v1554 = vadd.f32 %v1485, %v1553
        %v1555 = vpop.f32.mrf.mxu0
        %v1556 = vadd.f32 %v1487, %v1555
        %1557 = vmatmul.bf16.gmra.mxu0 %v1064
        %v1558 = vpop.f32.mrf.mxu0
        %v1559 = vadd.f32 %v1490, %v1558
        %v1560 = vpop.f32.mrf.mxu0
        %v1561 = vadd.f32 %v1492, %v1560
        %1562 = vmatmul.bf16.gmra.mxu0 %v1066
        %v1563 = vpop.f32.mrf.mxu0
        %v1564 = vadd.f32 %v1495, %v1563
        %v1565 = vpop.f32.mrf.mxu0
        %v1566 = vadd.f32 %v1497, %v1565
        %1567 = vmatmul.bf16.gmra.mxu0 %v1068
        %v1568 = vpop.f32.mrf.mxu0
        %v1569 = vadd.f32 %v1500, %v1568
        %v1570 = vpop.f32.mrf.mxu0
        %v1571 = vadd.f32 %v1502, %v1570
        %1572 = vmatmul.bf16.gmra.mxu0 %v1070
        %v1573 = vpop.f32.mrf.mxu0
        %v1574 = vadd.f32 %v1505, %v1573
        %v1575 = vpop.f32.mrf.mxu0
        %v1576 = vadd.f32 %v1507, %v1575
        %1577 = vmatmul.bf16.gmra.mxu0 %v1072
        %v1578 = vpop.f32.mrf.mxu0
        %v1579 = vadd.f32 %v1510, %v1578
        %v1580 = vpop.f32.mrf.mxu0
        %v1581 = vadd.f32 %v1512, %v1580
        %1582 = vmatmul.bf16.gmra.mxu0 %v1074
        %v1583 = vpop.f32.mrf.mxu0
        %v1584 = vadd.f32 %v1515, %v1583
        %v1585 = vpop.f32.mrf.mxu0
        %v1586 = vadd.f32 %v1517, %v1585
        %1587 = vmatmul.bf16.gmra.mxu0 %v1076
        %v1588 = vpop.f32.mrf.mxu0
        %v1589 = vadd.f32 %v1520, %v1588
        %v1590 = vpop.f32.mrf.mxu0
        %v1591 = vadd.f32 %v1522, %v1590
        %1592 = vmatmul.bf16.gmra.mxu0 %v1078
        %v1593 = vpop.f32.mrf.mxu0
        %v1594 = vadd.f32 %v1525, %v1593
        %v1595 = vpop.f32.mrf.mxu0
        %v1596 = vadd.f32 %v1527, %v1595
        %1597 = vmatmul.bf16.gmra.mxu0 %v1080
        %v1598 = vpop.f32.mrf.mxu0
        %v1599 = vadd.f32 %v1530, %v1598
        %v1600 = vpop.f32.mrf.mxu0
        %v1601 = vadd.f32 %v1532, %v1600
        %1602 = vdwg.mxu0
        %1603 = vmatpush.bf16.msra.mxu0 %v1366
        %1604 = vmatpush.bf16.msra.mxu0 %v1362
        %1605 = vmatpush.bf16.msra.mxu0 %v1358
        %1606 = vmatpush.bf16.msra.mxu0 %v1354
        %1607 = vmatpush.bf16.msra.mxu0 %v1350
        %1608 = vmatpush.bf16.msra.mxu0 %v1346
        %1609 = vmatpush.bf16.msra.mxu0 %v1342
        %1610 = vmatpush.bf16.msra.mxu0 %v1338
        %1611 = vmatmul.bf16.gmra.mxu0 %v1057
        %v1612 = vpop.f32.mrf.mxu0
        %v1613 = vadd.f32 %v812, %v1612
        %v1614 = vpop.f32.mrf.mxu0
        %v1615 = vadd.f32 %v814, %v1614
        %1616 = vmatmul.bf16.gmra.mxu0 %v1059
        %v1617 = vpop.f32.mrf.mxu0
        %v1618 = vadd.f32 %v817, %v1617
        %v1619 = vpop.f32.mrf.mxu0
        %v1620 = vadd.f32 %v819, %v1619
        %1621 = vmatmul.bf16.gmra.mxu0 %v1061
        %v1622 = vpop.f32.mrf.mxu0
        %v1623 = vadd.f32 %v822, %v1622
        %v1624 = vpop.f32.mrf.mxu0
        %v1625 = vadd.f32 %v824, %v1624
        %1626 = vmatmul.bf16.gmra.mxu0 %v1063
        %v1627 = vpop.f32.mrf.mxu0
        %v1628 = vadd.f32 %v827, %v1627
        %v1629 = vpop.f32.mrf.mxu0
        %v1630 = vadd.f32 %v829, %v1629
        %1631 = vmatmul.bf16.gmra.mxu0 %v1065
        %v1632 = vpop.f32.mrf.mxu0
        %v1633 = vadd.f32 %v832, %v1632
        %v1634 = vpop.f32.mrf.mxu0
        %v1635 = vadd.f32 %v834, %v1634
        %1636 = vmatmul.bf16.gmra.mxu0 %v1067
        %v1637 = vpop.f32.mrf.mxu0
        %v1638 = vadd.f32 %v837, %v1637
        %v1639 = vpop.f32.mrf.mxu0
        %v1640 = vadd.f32 %v839, %v1639
        %1641 = vmatmul.bf16.gmra.mxu0 %v1069
        %v1642 = vpop.f32.mrf.mxu0
        %v1643 = vadd.f32 %v842, %v1642
        %v1644 = vpop.f32.mrf.mxu0
        %v1645 = vadd.f32 %v844, %v1644
        %1646 = vmatmul.bf16.gmra.mxu0 %v1071
        %v1647 = vpop.f32.mrf.mxu0
        %v1648 = vadd.f32 %v847, %v1647
        %v1649 = vpop.f32.mrf.mxu0
        %v1650 = vadd.f32 %v849, %v1649
        %1651 = vmatmul.bf16.gmra.mxu0 %v1073
        %v1652 = vpop.f32.mrf.mxu0
        %v1653 = vadd.f32 %v852, %v1652
        %v1654 = vpop.f32.mrf.mxu0
        %v1655 = vadd.f32 %v854, %v1654
        %1656 = vmatmul.bf16.gmra.mxu0 %v1075
        %v1657 = vpop.f32.mrf.mxu0
        %v1658 = vadd.f32 %v857, %v1657
        %v1659 = vpop.f32.mrf.mxu0
        %v1660 = vadd.f32 %v859, %v1659
        %1661 = vmatmul.bf16.gmra.mxu0 %v1077
        %v1662 = vpop.f32.mrf.mxu0
        %v1663 = vadd.f32 %v862, %v1662
        %v1664 = vpop.f32.mrf.mxu0
        %v1665 = vadd.f32 %v864, %v1664
        %1666 = vmatmul.bf16.gmra.mxu0 %v1079
        %v1667 = vpop.f32.mrf.mxu0
        %v1668 = vadd.f32 %v867, %v1667
        %v1669 = vpop.f32.mrf.mxu0
        %v1670 = vadd.f32 %v869, %v1669
        %1671 = vdwg.mxu0
        %1672 = vmatpush.bf16.msra.mxu0 %v1398
        %1673 = vmatpush.bf16.msra.mxu0 %v1394
        %1674 = vmatpush.bf16.msra.mxu0 %v1390
        %1675 = vmatpush.bf16.msra.mxu0 %v1386
        %1676 = vmatpush.bf16.msra.mxu0 %v1382
        %1677 = vmatpush.bf16.msra.mxu0 %v1378
        %1678 = vmatpush.bf16.msra.mxu0 %v1374
        %1679 = vmatpush.bf16.msra.mxu0 %v1370
        %1680 = vmatmul.bf16.gmra.mxu0 %v1058
        %v1681 = vpop.f32.mrf.mxu0
        %v1682 = vadd.f32 %v1613, %v1681
        %v1683 = vpop.f32.mrf.mxu0
        %v1684 = vadd.f32 %v1615, %v1683
        %1685 = vmatmul.bf16.gmra.mxu0 %v1060
        %v1686 = vpop.f32.mrf.mxu0
        %v1687 = vadd.f32 %v1618, %v1686
        %v1688 = vpop.f32.mrf.mxu0
        %v1689 = vadd.f32 %v1620, %v1688
        %1690 = vmatmul.bf16.gmra.mxu0 %v1062
        %v1691 = vpop.f32.mrf.mxu0
        %v1692 = vadd.f32 %v1623, %v1691
        %v1693 = vpop.f32.mrf.mxu0
        %v1694 = vadd.f32 %v1625, %v1693
        %1695 = vmatmul.bf16.gmra.mxu0 %v1064
        %v1696 = vpop.f32.mrf.mxu0
        %v1697 = vadd.f32 %v1628, %v1696
        %v1698 = vpop.f32.mrf.mxu0
        %v1699 = vadd.f32 %v1630, %v1698
        %1700 = vmatmul.bf16.gmra.mxu0 %v1066
        %v1701 = vpop.f32.mrf.mxu0
        %v1702 = vadd.f32 %v1633, %v1701
        %v1703 = vpop.f32.mrf.mxu0
        %v1704 = vadd.f32 %v1635, %v1703
        %1705 = vmatmul.bf16.gmra.mxu0 %v1068
        %v1706 = vpop.f32.mrf.mxu0
        %v1707 = vadd.f32 %v1638, %v1706
        %v1708 = vpop.f32.mrf.mxu0
        %v1709 = vadd.f32 %v1640, %v1708
        %1710 = vmatmul.bf16.gmra.mxu0 %v1070
        %v1711 = vpop.f32.mrf.mxu0
        %v1712 = vadd.f32 %v1643, %v1711
        %v1713 = vpop.f32.mrf.mxu0
        %v1714 = vadd.f32 %v1645, %v1713
        %1715 = vmatmul.bf16.gmra.mxu0 %v1072
        %v1716 = vpop.f32.mrf.mxu0
        %v1717 = vadd.f32 %v1648, %v1716
        %v1718 = vpop.f32.mrf.mxu0
        %v1719 = vadd.f32 %v1650, %v1718
        %1720 = vmatmul.bf16.gmra.mxu0 %v1074
        %v1721 = vpop.f32.mrf.mxu0
        %v1722 = vadd.f32 %v1653, %v1721
        %v1723 = vpop.f32.mrf.mxu0
        %v1724 = vadd.f32 %v1655, %v1723
        %1725 = vmatmul.bf16.gmra.mxu0 %v1076
        %v1726 = vpop.f32.mrf.mxu0
        %v1727 = vadd.f32 %v1658, %v1726
        %v1728 = vpop.f32.mrf.mxu0
        %v1729 = vadd.f32 %v1660, %v1728
        %1730 = vmatmul.bf16.gmra.mxu0 %v1078
        %v1731 = vpop.f32.mrf.mxu0
        %v1732 = vadd.f32 %v1663, %v1731
        %v1733 = vpop.f32.mrf.mxu0
        %v1734 = vadd.f32 %v1665, %v1733
        %1735 = vmatmul.bf16.gmra.mxu0 %v1080
        %v1736 = vpop.f32.mrf.mxu0
        %v1737 = vadd.f32 %v1668, %v1736
        %v1738 = vpop.f32.mrf.mxu0
        %v1739 = vadd.f32 %v1670, %v1738
        %1740 = vdwg.mxu0
        %1741 = vmatpush.bf16.msra.mxu0 %v1367
        %1742 = vmatpush.bf16.msra.mxu0 %v1363
        %1743 = vmatpush.bf16.msra.mxu0 %v1359
        %1744 = vmatpush.bf16.msra.mxu0 %v1355
        %1745 = vmatpush.bf16.msra.mxu0 %v1351
        %1746 = vmatpush.bf16.msra.mxu0 %v1347
        %1747 = vmatpush.bf16.msra.mxu0 %v1343
        %1748 = vmatpush.bf16.msra.mxu0 %v1339
        %1749 = vmatmul.bf16.gmra.mxu0 %v1057
        %v1750 = vpop.f32.mrf.mxu0
        %v1751 = vadd.f32 %v881, %v1750
        %v1752 = vpop.f32.mrf.mxu0
        %v1753 = vadd.f32 %v883, %v1752
        %1754 = vmatmul.bf16.gmra.mxu0 %v1059
        %v1755 = vpop.f32.mrf.mxu0
        %v1756 = vadd.f32 %v886, %v1755
        %v1757 = vpop.f32.mrf.mxu0
        %v1758 = vadd.f32 %v888, %v1757
        %1759 = vmatmul.bf16.gmra.mxu0 %v1061
        %v1760 = vpop.f32.mrf.mxu0
        %v1761 = vadd.f32 %v891, %v1760
        %v1762 = vpop.f32.mrf.mxu0
        %v1763 = vadd.f32 %v893, %v1762
        %1764 = vmatmul.bf16.gmra.mxu0 %v1063
        %v1765 = vpop.f32.mrf.mxu0
        %v1766 = vadd.f32 %v896, %v1765
        %v1767 = vpop.f32.mrf.mxu0
        %v1768 = vadd.f32 %v898, %v1767
        %1769 = vmatmul.bf16.gmra.mxu0 %v1065
        %v1770 = vpop.f32.mrf.mxu0
        %v1771 = vadd.f32 %v901, %v1770
        %v1772 = vpop.f32.mrf.mxu0
        %v1773 = vadd.f32 %v903, %v1772
        %1774 = vmatmul.bf16.gmra.mxu0 %v1067
        %v1775 = vpop.f32.mrf.mxu0
        %v1776 = vadd.f32 %v906, %v1775
        %v1777 = vpop.f32.mrf.mxu0
        %v1778 = vadd.f32 %v908, %v1777
        %1779 = vmatmul.bf16.gmra.mxu0 %v1069
        %v1780 = vpop.f32.mrf.mxu0
        %v1781 = vadd.f32 %v911, %v1780
        %v1782 = vpop.f32.mrf.mxu0
        %v1783 = vadd.f32 %v913, %v1782
        %1784 = vmatmul.bf16.gmra.mxu0 %v1071
        %v1785 = vpop.f32.mrf.mxu0
        %v1786 = vadd.f32 %v916, %v1785
        %v1787 = vpop.f32.mrf.mxu0
        %v1788 = vadd.f32 %v918, %v1787
        %1789 = vmatmul.bf16.gmra.mxu0 %v1073
        %v1790 = vpop.f32.mrf.mxu0
        %v1791 = vadd.f32 %v921, %v1790
        %v1792 = vpop.f32.mrf.mxu0
        %v1793 = vadd.f32 %v923, %v1792
        %1794 = vmatmul.bf16.gmra.mxu0 %v1075
        %v1795 = vpop.f32.mrf.mxu0
        %v1796 = vadd.f32 %v926, %v1795
        %v1797 = vpop.f32.mrf.mxu0
        %v1798 = vadd.f32 %v928, %v1797
        %1799 = vmatmul.bf16.gmra.mxu0 %v1077
        %v1800 = vpop.f32.mrf.mxu0
        %v1801 = vadd.f32 %v931, %v1800
        %v1802 = vpop.f32.mrf.mxu0
        %v1803 = vadd.f32 %v933, %v1802
        %1804 = vmatmul.bf16.gmra.mxu0 %v1079
        %v1805 = vpop.f32.mrf.mxu0
        %v1806 = vadd.f32 %v936, %v1805
        %v1807 = vpop.f32.mrf.mxu0
        %v1808 = vadd.f32 %v938, %v1807
        %1809 = vdwg.mxu0
        %1810 = vmatpush.bf16.msra.mxu0 %v1399
        %1811 = vmatpush.bf16.msra.mxu0 %v1395
        %1812 = vmatpush.bf16.msra.mxu0 %v1391
        %1813 = vmatpush.bf16.msra.mxu0 %v1387
        %1814 = vmatpush.bf16.msra.mxu0 %v1383
        %1815 = vmatpush.bf16.msra.mxu0 %v1379
        %1816 = vmatpush.bf16.msra.mxu0 %v1375
        %1817 = vmatpush.bf16.msra.mxu0 %v1371
        %1818 = vmatmul.bf16.gmra.mxu0 %v1058
        %v1819 = vpop.f32.mrf.mxu0
        %v1820 = vadd.f32 %v1751, %v1819
        %v1821 = vpop.f32.mrf.mxu0
        %v1822 = vadd.f32 %v1753, %v1821
        %1823 = vmatmul.bf16.gmra.mxu0 %v1060
        %v1824 = vpop.f32.mrf.mxu0
        %v1825 = vadd.f32 %v1756, %v1824
        %v1826 = vpop.f32.mrf.mxu0
        %v1827 = vadd.f32 %v1758, %v1826
        %1828 = vmatmul.bf16.gmra.mxu0 %v1062
        %v1829 = vpop.f32.mrf.mxu0
        %v1830 = vadd.f32 %v1761, %v1829
        %v1831 = vpop.f32.mrf.mxu0
        %v1832 = vadd.f32 %v1763, %v1831
        %1833 = vmatmul.bf16.gmra.mxu0 %v1064
        %v1834 = vpop.f32.mrf.mxu0
        %v1835 = vadd.f32 %v1766, %v1834
        %v1836 = vpop.f32.mrf.mxu0
        %v1837 = vadd.f32 %v1768, %v1836
        %1838 = vmatmul.bf16.gmra.mxu0 %v1066
        %v1839 = vpop.f32.mrf.mxu0
        %v1840 = vadd.f32 %v1771, %v1839
        %v1841 = vpop.f32.mrf.mxu0
        %v1842 = vadd.f32 %v1773, %v1841
        %1843 = vmatmul.bf16.gmra.mxu0 %v1068
        %v1844 = vpop.f32.mrf.mxu0
        %v1845 = vadd.f32 %v1776, %v1844
        %v1846 = vpop.f32.mrf.mxu0
        %v1847 = vadd.f32 %v1778, %v1846
        %1848 = vmatmul.bf16.gmra.mxu0 %v1070
        %v1849 = vpop.f32.mrf.mxu0
        %v1850 = vadd.f32 %v1781, %v1849
        %v1851 = vpop.f32.mrf.mxu0
        %v1852 = vadd.f32 %v1783, %v1851
        %1853 = vmatmul.bf16.gmra.mxu0 %v1072
        %v1854 = vpop.f32.mrf.mxu0
        %v1855 = vadd.f32 %v1786, %v1854
        %v1856 = vpop.f32.mrf.mxu0
        %v1857 = vadd.f32 %v1788, %v1856
        %1858 = vmatmul.bf16.gmra.mxu0 %v1074
        %v1859 = vpop.f32.mrf.mxu0
        %v1860 = vadd.f32 %v1791, %v1859
        %v1861 = vpop.f32.mrf.mxu0
        %v1862 = vadd.f32 %v1793, %v1861
        %1863 = vmatmul.bf16.gmra.mxu0 %v1076
        %v1864 = vpop.f32.mrf.mxu0
        %v1865 = vadd.f32 %v1796, %v1864
        %v1866 = vpop.f32.mrf.mxu0
        %v1867 = vadd.f32 %v1798, %v1866
        %1868 = vmatmul.bf16.gmra.mxu0 %v1078
        %v1869 = vpop.f32.mrf.mxu0
        %v1870 = vadd.f32 %v1801, %v1869
        %v1871 = vpop.f32.mrf.mxu0
        %v1872 = vadd.f32 %v1803, %v1871
        %1873 = vmatmul.bf16.gmra.mxu0 %v1080
        %v1874 = vpop.f32.mrf.mxu0
        %v1875 = vadd.f32 %v1806, %v1874
        %v1876 = vpop.f32.mrf.mxu0
        %v1877 = vadd.f32 %v1808, %v1876
        %1878 = vdwg.mxu0
        %1879 = vmatpush.bf16.msra.mxu0 %v1368
        %1880 = vmatpush.bf16.msra.mxu0 %v1364
        %1881 = vmatpush.bf16.msra.mxu0 %v1360
        %1882 = vmatpush.bf16.msra.mxu0 %v1356
        %1883 = vmatpush.bf16.msra.mxu0 %v1352
        %1884 = vmatpush.bf16.msra.mxu0 %v1348
        %1885 = vmatpush.bf16.msra.mxu0 %v1344
        %1886 = vmatpush.bf16.msra.mxu0 %v1340
        %1887 = vmatmul.bf16.gmra.mxu0 %v1057
        %v1888 = vpop.f32.mrf.mxu0
        %v1889 = vadd.f32 %v950, %v1888
        %v1890 = vpop.f32.mrf.mxu0
        %v1891 = vadd.f32 %v952, %v1890
        %1892 = vmatmul.bf16.gmra.mxu0 %v1059
        %v1893 = vpop.f32.mrf.mxu0
        %v1894 = vadd.f32 %v955, %v1893
        %v1895 = vpop.f32.mrf.mxu0
        %v1896 = vadd.f32 %v957, %v1895
        %1897 = vmatmul.bf16.gmra.mxu0 %v1061
        %v1898 = vpop.f32.mrf.mxu0
        %v1899 = vadd.f32 %v960, %v1898
        %v1900 = vpop.f32.mrf.mxu0
        %v1901 = vadd.f32 %v962, %v1900
        %1902 = vmatmul.bf16.gmra.mxu0 %v1063
        %v1903 = vpop.f32.mrf.mxu0
        %v1904 = vadd.f32 %v965, %v1903
        %v1905 = vpop.f32.mrf.mxu0
        %v1906 = vadd.f32 %v967, %v1905
        %1907 = vmatmul.bf16.gmra.mxu0 %v1065
        %v1908 = vpop.f32.mrf.mxu0
        %v1909 = vadd.f32 %v970, %v1908
        %v1910 = vpop.f32.mrf.mxu0
        %v1911 = vadd.f32 %v972, %v1910
        %1912 = vmatmul.bf16.gmra.mxu0 %v1067
        %v1913 = vpop.f32.mrf.mxu0
        %v1914 = vadd.f32 %v975, %v1913
        %v1915 = vpop.f32.mrf.mxu0
        %v1916 = vadd.f32 %v977, %v1915
        %1917 = vmatmul.bf16.gmra.mxu0 %v1069
        %v1918 = vpop.f32.mrf.mxu0
        %v1919 = vadd.f32 %v980, %v1918
        %v1920 = vpop.f32.mrf.mxu0
        %v1921 = vadd.f32 %v982, %v1920
        %1922 = vmatmul.bf16.gmra.mxu0 %v1071
        %v1923 = vpop.f32.mrf.mxu0
        %v1924 = vadd.f32 %v985, %v1923
        %v1925 = vpop.f32.mrf.mxu0
        %v1926 = vadd.f32 %v987, %v1925
        %1927 = vmatmul.bf16.gmra.mxu0 %v1073
        %v1928 = vpop.f32.mrf.mxu0
        %v1929 = vadd.f32 %v990, %v1928
        %v1930 = vpop.f32.mrf.mxu0
        %v1931 = vadd.f32 %v992, %v1930
        %1932 = vmatmul.bf16.gmra.mxu0 %v1075
        %v1933 = vpop.f32.mrf.mxu0
        %v1934 = vadd.f32 %v995, %v1933
        %v1935 = vpop.f32.mrf.mxu0
        %v1936 = vadd.f32 %v997, %v1935
        %1937 = vmatmul.bf16.gmra.mxu0 %v1077
        %v1938 = vpop.f32.mrf.mxu0
        %v1939 = vadd.f32 %v1000, %v1938
        %v1940 = vpop.f32.mrf.mxu0
        %v1941 = vadd.f32 %v1002, %v1940
        %1942 = vmatmul.bf16.gmra.mxu0 %v1079
        %v1943 = vpop.f32.mrf.mxu0
        %v1944 = vadd.f32 %v1005, %v1943
        %v1945 = vpop.f32.mrf.mxu0
        %v1946 = vadd.f32 %v1007, %v1945
        %1947 = vdwg.mxu0
        %1948 = vmatpush.bf16.msra.mxu0 %v1400
        %1949 = vmatpush.bf16.msra.mxu0 %v1396
        %1950 = vmatpush.bf16.msra.mxu0 %v1392
        %1951 = vmatpush.bf16.msra.mxu0 %v1388
        %1952 = vmatpush.bf16.msra.mxu0 %v1384
        %1953 = vmatpush.bf16.msra.mxu0 %v1380
        %1954 = vmatpush.bf16.msra.mxu0 %v1376
        %1955 = vmatpush.bf16.msra.mxu0 %v1372
        %1956 = vmatmul.bf16.gmra.mxu0 %v1058
        %v1957 = vpop.f32.mrf.mxu0
        %v1958 = vadd.f32 %v1889, %v1957
        %v1959 = vpop.f32.mrf.mxu0
        %v1960 = vadd.f32 %v1891, %v1959
        %1961 = vmatmul.bf16.gmra.mxu0 %v1060
        %v1962 = vpop.f32.mrf.mxu0
        %v1963 = vadd.f32 %v1894, %v1962
        %v1964 = vpop.f32.mrf.mxu0
        %v1965 = vadd.f32 %v1896, %v1964
        %1966 = vmatmul.bf16.gmra.mxu0 %v1062
        %v1967 = vpop.f32.mrf.mxu0
        %v1968 = vadd.f32 %v1899, %v1967
        %v1969 = vpop.f32.mrf.mxu0
        %v1970 = vadd.f32 %v1901, %v1969
        %1971 = vmatmul.bf16.gmra.mxu0 %v1064
        %v1972 = vpop.f32.mrf.mxu0
        %v1973 = vadd.f32 %v1904, %v1972
        %v1974 = vpop.f32.mrf.mxu0
        %v1975 = vadd.f32 %v1906, %v1974
        %1976 = vmatmul.bf16.gmra.mxu0 %v1066
        %v1977 = vpop.f32.mrf.mxu0
        %v1978 = vadd.f32 %v1909, %v1977
        %v1979 = vpop.f32.mrf.mxu0
        %v1980 = vadd.f32 %v1911, %v1979
        %1981 = vmatmul.bf16.gmra.mxu0 %v1068
        %v1982 = vpop.f32.mrf.mxu0
        %v1983 = vadd.f32 %v1914, %v1982
        %v1984 = vpop.f32.mrf.mxu0
        %v1985 = vadd.f32 %v1916, %v1984
        %1986 = vmatmul.bf16.gmra.mxu0 %v1070
        %v1987 = vpop.f32.mrf.mxu0
        %v1988 = vadd.f32 %v1919, %v1987
        %v1989 = vpop.f32.mrf.mxu0
        %v1990 = vadd.f32 %v1921, %v1989
        %1991 = vmatmul.bf16.gmra.mxu0 %v1072
        %v1992 = vpop.f32.mrf.mxu0
        %v1993 = vadd.f32 %v1924, %v1992
        %v1994 = vpop.f32.mrf.mxu0
        %v1995 = vadd.f32 %v1926, %v1994
        %1996 = vmatmul.bf16.gmra.mxu0 %v1074
        %v1997 = vpop.f32.mrf.mxu0
        %v1998 = vadd.f32 %v1929, %v1997
        %v1999 = vpop.f32.mrf.mxu0
        %v2000 = vadd.f32 %v1931, %v1999
        %2001 = vmatmul.bf16.gmra.mxu0 %v1076
        %v2002 = vpop.f32.mrf.mxu0
        %v2003 = vadd.f32 %v1934, %v2002
        %v2004 = vpop.f32.mrf.mxu0
        %v2005 = vadd.f32 %v1936, %v2004
        %2006 = vmatmul.bf16.gmra.mxu0 %v1078
        %v2007 = vpop.f32.mrf.mxu0
        %v2008 = vadd.f32 %v1939, %v2007
        %v2009 = vpop.f32.mrf.mxu0
        %v2010 = vadd.f32 %v1941, %v2009
        %2011 = vmatmul.bf16.gmra.mxu0 %v1080
        %v2012 = vpop.f32.mrf.mxu0
        %v2013 = vadd.f32 %v1944, %v2012
        %v2014 = vpop.f32.mrf.mxu0
        %v2015 = vadd.f32 %v1946, %v2014
        %2016 = vdwg.mxu0
        %v2017 = vld [vmem:[%s4] sm:$0xf]
        %v2019 = vperm.slane %v2017, 0
        %v2020 = vperm.slane %v2017, 1
        %v2021 = vperm.slane %v2017, 2
        %v2022 = vperm.slane %v2017, 3
        %v2027 = vadd.f32 %v1544, %v2019
        %v2028 = vadd.f32 %v1682, %v2020
        %v2029 = vadd.f32 %v1820, %v2021
        %v2030 = vadd.f32 %v1958, %v2022
        %v2031 = vadd.f32 %v1546, %v2019
        %v2032 = vadd.f32 %v1684, %v2020
        %v2033 = vadd.f32 %v1822, %v2021
        %v2034 = vadd.f32 %v1960, %v2022
        %v2035 = vadd.f32 %v1549, %v2019
        %v2036 = vadd.f32 %v1687, %v2020
        %v2037 = vadd.f32 %v1825, %v2021
        %v2038 = vadd.f32 %v1963, %v2022
        %v2039 = vadd.f32 %v1551, %v2019
        %v2040 = vadd.f32 %v1689, %v2020
        %v2041 = vadd.f32 %v1827, %v2021
        %v2042 = vadd.f32 %v1965, %v2022
        %v2043 = vadd.f32 %v1554, %v2019
        %v2044 = vadd.f32 %v1692, %v2020
        %v2045 = vadd.f32 %v1830, %v2021
        %v2046 = vadd.f32 %v1968, %v2022
        %v2047 = vadd.f32 %v1556, %v2019
        %v2048 = vadd.f32 %v1694, %v2020
        %v2049 = vadd.f32 %v1832, %v2021
        %v2050 = vadd.f32 %v1970, %v2022
        %v2051 = vadd.f32 %v1559, %v2019
        %v2052 = vadd.f32 %v1697, %v2020
        %v2053 = vadd.f32 %v1835, %v2021
        %v2054 = vadd.f32 %v1973, %v2022
        %v2055 = vadd.f32 %v1561, %v2019
        %v2056 = vadd.f32 %v1699, %v2020
        %v2057 = vadd.f32 %v1837, %v2021
        %v2058 = vadd.f32 %v1975, %v2022
        %v2059 = vadd.f32 %v1564, %v2019
        %v2060 = vadd.f32 %v1702, %v2020
        %v2061 = vadd.f32 %v1840, %v2021
        %v2062 = vadd.f32 %v1978, %v2022
        %v2063 = vadd.f32 %v1566, %v2019
        %v2064 = vadd.f32 %v1704, %v2020
        %v2065 = vadd.f32 %v1842, %v2021
        %v2066 = vadd.f32 %v1980, %v2022
        %v2067 = vadd.f32 %v1569, %v2019
        %v2068 = vadd.f32 %v1707, %v2020
        %v2069 = vadd.f32 %v1845, %v2021
        %v2070 = vadd.f32 %v1983, %v2022
        %v2071 = vadd.f32 %v1571, %v2019
        %v2072 = vadd.f32 %v1709, %v2020
        %v2073 = vadd.f32 %v1847, %v2021
        %v2074 = vadd.f32 %v1985, %v2022
        %v2075 = vadd.f32 %v1574, %v2019
        %v2076 = vadd.f32 %v1712, %v2020
        %v2077 = vadd.f32 %v1850, %v2021
        %v2078 = vadd.f32 %v1988, %v2022
        %v2079 = vadd.f32 %v1576, %v2019
        %v2080 = vadd.f32 %v1714, %v2020
        %v2081 = vadd.f32 %v1852, %v2021
        %v2082 = vadd.f32 %v1990, %v2022
        %v2083 = vadd.f32 %v1579, %v2019
        %v2084 = vadd.f32 %v1717, %v2020
        %v2085 = vadd.f32 %v1855, %v2021
        %v2086 = vadd.f32 %v1993, %v2022
        %v2087 = vadd.f32 %v1581, %v2019
        %v2088 = vadd.f32 %v1719, %v2020
        %v2089 = vadd.f32 %v1857, %v2021
        %v2090 = vadd.f32 %v1995, %v2022
        %v2091 = vadd.f32 %v1584, %v2019
        %v2092 = vadd.f32 %v1722, %v2020
        %v2093 = vadd.f32 %v1860, %v2021
        %v2094 = vadd.f32 %v1998, %v2022
        %v2095 = vadd.f32 %v1586, %v2019
        %v2096 = vadd.f32 %v1724, %v2020
        %v2097 = vadd.f32 %v1862, %v2021
        %v2098 = vadd.f32 %v2000, %v2022
        %v2099 = vadd.f32 %v1589, %v2019
        %v2100 = vadd.f32 %v1727, %v2020
        %v2101 = vadd.f32 %v1865, %v2021
        %v2102 = vadd.f32 %v2003, %v2022
        %v2103 = vadd.f32 %v1591, %v2019
        %v2104 = vadd.f32 %v1729, %v2020
        %v2105 = vadd.f32 %v1867, %v2021
        %v2106 = vadd.f32 %v2005, %v2022
        %v2107 = vadd.f32 %v1594, %v2019
        %v2108 = vadd.f32 %v1732, %v2020
        %v2109 = vadd.f32 %v1870, %v2021
        %v2110 = vadd.f32 %v2008, %v2022
        %v2111 = vadd.f32 %v1596, %v2019
        %v2112 = vadd.f32 %v1734, %v2020
        %v2113 = vadd.f32 %v1872, %v2021
        %v2114 = vadd.f32 %v2010, %v2022
        %v2115 = vadd.f32 %v1599, %v2019
        %v2116 = vadd.f32 %v1737, %v2020
        %v2117 = vadd.f32 %v1875, %v2021
        %v2118 = vadd.f32 %v2013, %v2022
        %v2119 = vadd.f32 %v1601, %v2019
        %v2120 = vadd.f32 %v1739, %v2020
        %v2121 = vadd.f32 %v1877, %v2021
        %v2122 = vadd.f32 %v2015, %v2022
        %v2123 = vmax.f32 %v2027, 0.0
        %v2124 = vmax.f32 %v2028, 0.0
        %v2125 = vmax.f32 %v2029, 0.0
        %v2126 = vmax.f32 %v2030, 0.0
        %v2127 = vmax.f32 %v2031, 0.0
        %v2128 = vmax.f32 %v2032, 0.0
        %v2129 = vmax.f32 %v2033, 0.0
        %v2130 = vmax.f32 %v2034, 0.0
        %v2131 = vmax.f32 %v2035, 0.0
        %v2132 = vmax.f32 %v2036, 0.0
        %v2133 = vmax.f32 %v2037, 0.0
        %v2134 = vmax.f32 %v2038, 0.0
        %v2135 = vmax.f32 %v2039, 0.0
        %v2136 = vmax.f32 %v2040, 0.0
        %v2137 = vmax.f32 %v2041, 0.0
        %v2138 = vmax.f32 %v2042, 0.0
        %v2139 = vmax.f32 %v2043, 0.0
        %v2140 = vmax.f32 %v2044, 0.0
        %v2141 = vmax.f32 %v2045, 0.0
        %v2142 = vmax.f32 %v2046, 0.0
        %v2143 = vmax.f32 %v2047, 0.0
        %v2144 = vmax.f32 %v2048, 0.0
        %v2145 = vmax.f32 %v2049, 0.0
        %v2146 = vmax.f32 %v2050, 0.0
        %v2147 = vmax.f32 %v2051, 0.0
        %v2148 = vmax.f32 %v2052, 0.0
        %v2149 = vmax.f32 %v2053, 0.0
        %v2150 = vmax.f32 %v2054, 0.0
        %v2151 = vmax.f32 %v2055, 0.0
        %v2152 = vmax.f32 %v2056, 0.0
        %v2153 = vmax.f32 %v2057, 0.0
        %v2154 = vmax.f32 %v2058, 0.0
        %v2155 = vmax.f32 %v2059, 0.0
        %v2156 = vmax.f32 %v2060, 0.0
        %v2157 = vmax.f32 %v2061, 0.0
        %v2158 = vmax.f32 %v2062, 0.0
        %v2159 = vmax.f32 %v2063, 0.0
        %v2160 = vmax.f32 %v2064, 0.0
        %v2161 = vmax.f32 %v2065, 0.0
        %v2162 = vmax.f32 %v2066, 0.0
        %v2163 = vmax.f32 %v2067, 0.0
        %v2164 = vmax.f32 %v2068, 0.0
        %v2165 = vmax.f32 %v2069, 0.0
        %v2166 = vmax.f32 %v2070, 0.0
        %v2167 = vmax.f32 %v2071, 0.0
        %v2168 = vmax.f32 %v2072, 0.0
        %v2169 = vmax.f32 %v2073, 0.0
        %v2170 = vmax.f32 %v2074, 0.0
        %v2171 = vmax.f32 %v2075, 0.0
        %v2172 = vmax.f32 %v2076, 0.0
        %v2173 = vmax.f32 %v2077, 0.0
        %v2174 = vmax.f32 %v2078, 0.0
        %v2175 = vmax.f32 %v2079, 0.0
        %v2176 = vmax.f32 %v2080, 0.0
        %v2177 = vmax.f32 %v2081, 0.0
        %v2178 = vmax.f32 %v2082, 0.0
        %v2179 = vmax.f32 %v2083, 0.0
        %v2180 = vmax.f32 %v2084, 0.0
        %v2181 = vmax.f32 %v2085, 0.0
        %v2182 = vmax.f32 %v2086, 0.0
        %v2183 = vmax.f32 %v2087, 0.0
        %v2184 = vmax.f32 %v2088, 0.0
        %v2185 = vmax.f32 %v2089, 0.0
        %v2186 = vmax.f32 %v2090, 0.0
        %v2187 = vmax.f32 %v2091, 0.0
        %v2188 = vmax.f32 %v2092, 0.0
        %v2189 = vmax.f32 %v2093, 0.0
        %v2190 = vmax.f32 %v2094, 0.0
        %v2191 = vmax.f32 %v2095, 0.0
        %v2192 = vmax.f32 %v2096, 0.0
        %v2193 = vmax.f32 %v2097, 0.0
        %v2194 = vmax.f32 %v2098, 0.0
        %v2195 = vmax.f32 %v2099, 0.0
        %v2196 = vmax.f32 %v2100, 0.0
        %v2197 = vmax.f32 %v2101, 0.0
        %v2198 = vmax.f32 %v2102, 0.0
        %v2199 = vmax.f32 %v2103, 0.0
        %v2200 = vmax.f32 %v2104, 0.0
        %v2201 = vmax.f32 %v2105, 0.0
        %v2202 = vmax.f32 %v2106, 0.0
        %v2203 = vmax.f32 %v2107, 0.0
        %v2204 = vmax.f32 %v2108, 0.0
        %v2205 = vmax.f32 %v2109, 0.0
        %v2206 = vmax.f32 %v2110, 0.0
        %v2207 = vmax.f32 %v2111, 0.0
        %v2208 = vmax.f32 %v2112, 0.0
        %v2209 = vmax.f32 %v2113, 0.0
        %v2210 = vmax.f32 %v2114, 0.0
        %v2211 = vmax.f32 %v2115, 0.0
        %v2212 = vmax.f32 %v2116, 0.0
        %v2213 = vmax.f32 %v2117, 0.0
        %v2214 = vmax.f32 %v2118, 0.0
        %v2215 = vmax.f32 %v2119, 0.0
        %v2216 = vmax.f32 %v2120, 0.0
        %v2217 = vmax.f32 %v2121, 0.0
        %v2218 = vmax.f32 %v2122, 0.0
        %v2219 = vpack.c.bf16 %v2127, %v2123
        %v2220 = vpack.c.bf16 %v2128, %v2124
        %v2221 = vpack.c.bf16 %v2129, %v2125
        %v2222 = vpack.c.bf16 %v2130, %v2126
        %v2223 = vpack.c.bf16 %v2135, %v2131
        %v2224 = vpack.c.bf16 %v2136, %v2132
        %v2225 = vpack.c.bf16 %v2137, %v2133
        %v2226 = vpack.c.bf16 %v2138, %v2134
        %v2227 = vpack.c.bf16 %v2143, %v2139
        %v2228 = vpack.c.bf16 %v2144, %v2140
        %v2229 = vpack.c.bf16 %v2145, %v2141
        %v2230 = vpack.c.bf16 %v2146, %v2142
        %v2231 = vpack.c.bf16 %v2151, %v2147
        %v2232 = vpack.c.bf16 %v2152, %v2148
        %v2233 = vpack.c.bf16 %v2153, %v2149
        %v2234 = vpack.c.bf16 %v2154, %v2150
        %v2235 = vpack.c.bf16 %v2159, %v2155
        %v2236 = vpack.c.bf16 %v2160, %v2156
        %v2237 = vpack.c.bf16 %v2161, %v2157
        %v2238 = vpack.c.bf16 %v2162, %v2158
        %v2239 = vpack.c.bf16 %v2167, %v2163
        %v2240 = vpack.c.bf16 %v2168, %v2164
        %v2241 = vpack.c.bf16 %v2169, %v2165
        %v2242 = vpack.c.bf16 %v2170, %v2166
        %v2243 = vpack.c.bf16 %v2175, %v2171
        %v2244 = vpack.c.bf16 %v2176, %v2172
        %v2245 = vpack.c.bf16 %v2177, %v2173
        %v2246 = vpack.c.bf16 %v2178, %v2174
        %v2247 = vpack.c.bf16 %v2183, %v2179
        %v2248 = vpack.c.bf16 %v2184, %v2180
        %v2249 = vpack.c.bf16 %v2185, %v2181
        %v2250 = vpack.c.bf16 %v2186, %v2182
        %v2251 = vpack.c.bf16 %v2191, %v2187
        %v2252 = vpack.c.bf16 %v2192, %v2188
        %v2253 = vpack.c.bf16 %v2193, %v2189
        %v2254 = vpack.c.bf16 %v2194, %v2190
        %v2255 = vpack.c.bf16 %v2199, %v2195
        %v2256 = vpack.c.bf16 %v2200, %v2196
        %v2257 = vpack.c.bf16 %v2201, %v2197
        %v2258 = vpack.c.bf16 %v2202, %v2198
        %v2259 = vpack.c.bf16 %v2207, %v2203
        %v2260 = vpack.c.bf16 %v2208, %v2204
        %v2261 = vpack.c.bf16 %v2209, %v2205
        %v2262 = vpack.c.bf16 %v2210, %v2206
        %v2263 = vpack.c.bf16 %v2215, %v2211
        %v2264 = vpack.c.bf16 %v2216, %v2212
        %v2265 = vpack.c.bf16 %v2217, %v2213
        %v2266 = vpack.c.bf16 %v2218, %v2214
        %v2267 = vld [vmem:[%s5] sm:$0xff]
        %v2268 = vld [vmem:[%s5 + $0x8] sm:$0xff]
        %v2269 = vld [vmem:[%s5 + $0x10] sm:$0xff]
        %v2270 = vld [vmem:[%s5 + $0x18] sm:$0xff]
        %v2271 = vld [vmem:[%s5 + $0x20] sm:$0xff]
        %v2272 = vld [vmem:[%s5 + $0x28] sm:$0xff]
        %v2273 = vld [vmem:[%s5 + $0x30] sm:$0xff]
        %v2274 = vld [vmem:[%s5 + $0x38] sm:$0xff]
        %v2275 = vld [vmem:[%s5 + $0x40] sm:$0xff]
        %v2276 = vld [vmem:[%s5 + $0x48] sm:$0xff]
        %v2277 = vld [vmem:[%s5 + $0x50] sm:$0xff]
        %v2278 = vld [vmem:[%s5 + $0x58] sm:$0xff]
        %v2279 = vld [vmem:[%s5 + $0x60] sm:$0xff]
        %v2280 = vld [vmem:[%s5 + $0x68] sm:$0xff]
        %v2281 = vld [vmem:[%s5 + $0x70] sm:$0xff]
        %v2282 = vld [vmem:[%s5 + $0x78] sm:$0xff]
        %v2283 = vld [vmem:[%s5 + $0x80] sm:$0xff]
        %v2284 = vld [vmem:[%s5 + $0x88] sm:$0xff]
        %v2285 = vld [vmem:[%s5 + $0x90] sm:$0xff]
        %v2286 = vld [vmem:[%s5 + $0x98] sm:$0xff]
        %v2287 = vld [vmem:[%s5 + $0xa0] sm:$0xff]
        %v2288 = vld [vmem:[%s5 + $0xa8] sm:$0xff]
        %v2289 = vld [vmem:[%s5 + $0xb0] sm:$0xff]
        %v2290 = vld [vmem:[%s5 + $0xb8] sm:$0xff]
        %v2291 = vld [vmem:[%s5 + $0xc0] sm:$0xff]
        %v2292 = vld [vmem:[%s5 + $0xc8] sm:$0xff]
        %v2293 = vld [vmem:[%s5 + $0xd0] sm:$0xff]
        %v2294 = vld [vmem:[%s5 + $0xd8] sm:$0xff]
        %v2295 = vld [vmem:[%s5 + $0xe0] sm:$0xff]
        %v2296 = vld [vmem:[%s5 + $0xe8] sm:$0xff]
        %v2297 = vld [vmem:[%s5 + $0xf0] sm:$0xff]
        %v2298 = vld [vmem:[%s5 + $0xf8] sm:$0xff]
        %v2299 = vld [vmem:[%s5 + $0x100] sm:$0xff]
        %v2300 = vld [vmem:[%s5 + $0x108] sm:$0xff]
        %v2301 = vld [vmem:[%s5 + $0x110] sm:$0xff]
        %v2302 = vld [vmem:[%s5 + $0x118] sm:$0xff]
        %v2303 = vld [vmem:[%s5 + $0x120] sm:$0xff]
        %v2304 = vld [vmem:[%s5 + $0x128] sm:$0xff]
        %v2305 = vld [vmem:[%s5 + $0x130] sm:$0xff]
        %v2306 = vld [vmem:[%s5 + $0x138] sm:$0xff]
        %v2307 = vld [vmem:[%s5 + $0x140] sm:$0xff]
        %v2308 = vld [vmem:[%s5 + $0x148] sm:$0xff]
        %v2309 = vld [vmem:[%s5 + $0x150] sm:$0xff]
        %v2310 = vld [vmem:[%s5 + $0x158] sm:$0xff]
        %v2311 = vld [vmem:[%s5 + $0x160] sm:$0xff]
        %v2312 = vld [vmem:[%s5 + $0x168] sm:$0xff]
        %v2313 = vld [vmem:[%s5 + $0x170] sm:$0xff]
        %v2314 = vld [vmem:[%s5 + $0x178] sm:$0xff]
        %v2315 = vld [vmem:[%s5 + $0x180] sm:$0xff]
        %v2316 = vld [vmem:[%s5 + $0x188] sm:$0xff]
        %v2317 = vld [vmem:[%s5 + $0x190] sm:$0xff]
        %v2318 = vld [vmem:[%s5 + $0x198] sm:$0xff]
        %v2319 = vld [vmem:[%s5 + $0x1a0] sm:$0xff]
        %v2320 = vld [vmem:[%s5 + $0x1a8] sm:$0xff]
        %v2321 = vld [vmem:[%s5 + $0x1b0] sm:$0xff]
        %v2322 = vld [vmem:[%s5 + $0x1b8] sm:$0xff]
        %v2323 = vld [vmem:[%s5 + $0x1c0] sm:$0xff]
        %v2324 = vld [vmem:[%s5 + $0x1c8] sm:$0xff]
        %v2325 = vld [vmem:[%s5 + $0x1d0] sm:$0xff]
        %v2326 = vld [vmem:[%s5 + $0x1d8] sm:$0xff]
        %v2327 = vld [vmem:[%s5 + $0x1e0] sm:$0xff]
        %v2328 = vld [vmem:[%s5 + $0x1e8] sm:$0xff]
        %v2329 = vld [vmem:[%s5 + $0x1f0] sm:$0xff]
        %v2330 = vld [vmem:[%s5 + $0x1f8] sm:$0xff]
        %v2331 = vld [vmem:[%s6] sm:$0x3]
        %v2333 = vperm.slane %v2331, 0
        %v2334 = vperm.slane %v2331, 1
        %v2401 = vunpack.c.l.b16 %v2267
        %v2402 = vunpack.c.h.b16 %v2267
        %v2403 = vunpack.c.l.b16 %v2268
        %v2404 = vunpack.c.h.b16 %v2268
        %v2405 = vunpack.c.l.b16 %v2269
        %v2406 = vunpack.c.h.b16 %v2269
        %v2407 = vunpack.c.l.b16 %v2270
        %v2408 = vunpack.c.h.b16 %v2270
        %v2409 = vunpack.c.l.b16 %v2271
        %v2410 = vunpack.c.h.b16 %v2271
        %v2411 = vunpack.c.l.b16 %v2272
        %v2412 = vunpack.c.h.b16 %v2272
        %v2413 = vunpack.c.l.b16 %v2273
        %v2414 = vunpack.c.h.b16 %v2273
        %v2415 = vunpack.c.l.b16 %v2274
        %v2416 = vunpack.c.h.b16 %v2274
        %v2417 = vunpack.c.l.b16 %v2275
        %v2418 = vunpack.c.h.b16 %v2275
        %v2419 = vunpack.c.l.b16 %v2276
        %v2420 = vunpack.c.h.b16 %v2276
        %v2421 = vunpack.c.l.b16 %v2277
        %v2422 = vunpack.c.h.b16 %v2277
        %v2423 = vunpack.c.l.b16 %v2278
        %v2424 = vunpack.c.h.b16 %v2278
        %v2425 = vunpack.c.l.b16 %v2279
        %v2426 = vunpack.c.h.b16 %v2279
        %v2427 = vunpack.c.l.b16 %v2280
        %v2428 = vunpack.c.h.b16 %v2280
        %v2429 = vunpack.c.l.b16 %v2281
        %v2430 = vunpack.c.h.b16 %v2281
        %v2431 = vunpack.c.l.b16 %v2282
        %v2432 = vunpack.c.h.b16 %v2282
        %v2433 = vunpack.c.l.b16 %v2283
        %v2434 = vunpack.c.h.b16 %v2283
        %v2435 = vunpack.c.l.b16 %v2284
        %v2436 = vunpack.c.h.b16 %v2284
        %v2437 = vunpack.c.l.b16 %v2285
        %v2438 = vunpack.c.h.b16 %v2285
        %v2439 = vunpack.c.l.b16 %v2286
        %v2440 = vunpack.c.h.b16 %v2286
        %v2441 = vunpack.c.l.b16 %v2287
        %v2442 = vunpack.c.h.b16 %v2287
        %v2443 = vunpack.c.l.b16 %v2288
        %v2444 = vunpack.c.h.b16 %v2288
        %v2445 = vunpack.c.l.b16 %v2289
        %v2446 = vunpack.c.h.b16 %v2289
        %v2447 = vunpack.c.l.b16 %v2290
        %v2448 = vunpack.c.h.b16 %v2290
        %v2449 = vunpack.c.l.b16 %v2291
        %v2450 = vunpack.c.h.b16 %v2291
        %v2451 = vunpack.c.l.b16 %v2292
        %v2452 = vunpack.c.h.b16 %v2292
        %v2453 = vunpack.c.l.b16 %v2293
        %v2454 = vunpack.c.h.b16 %v2293
        %v2455 = vunpack.c.l.b16 %v2294
        %v2456 = vunpack.c.h.b16 %v2294
        %v2457 = vunpack.c.l.b16 %v2295
        %v2458 = vunpack.c.h.b16 %v2295
        %v2459 = vunpack.c.l.b16 %v2296
        %v2460 = vunpack.c.h.b16 %v2296
        %v2461 = vunpack.c.l.b16 %v2297
        %v2462 = vunpack.c.h.b16 %v2297
        %v2463 = vunpack.c.l.b16 %v2298
        %v2464 = vunpack.c.h.b16 %v2298
        %v2465 = vunpack.c.l.b16 %v2299
        %v2466 = vunpack.c.h.b16 %v2299
        %v2467 = vunpack.c.l.b16 %v2300
        %v2468 = vunpack.c.h.b16 %v2300
        %v2469 = vunpack.c.l.b16 %v2301
        %v2470 = vunpack.c.h.b16 %v2301
        %v2471 = vunpack.c.l.b16 %v2302
        %v2472 = vunpack.c.h.b16 %v2302
        %v2473 = vunpack.c.l.b16 %v2303
        %v2474 = vunpack.c.h.b16 %v2303
        %v2475 = vunpack.c.l.b16 %v2304
        %v2476 = vunpack.c.h.b16 %v2304
        %v2477 = vunpack.c.l.b16 %v2305
        %v2478 = vunpack.c.h.b16 %v2305
        %v2479 = vunpack.c.l.b16 %v2306
        %v2480 = vunpack.c.h.b16 %v2306
        %v2481 = vunpack.c.l.b16 %v2307
        %v2482 = vunpack.c.h.b16 %v2307
        %v2483 = vunpack.c.l.b16 %v2308
        %v2484 = vunpack.c.h.b16 %v2308
        %v2485 = vunpack.c.l.b16 %v2309
        %v2486 = vunpack.c.h.b16 %v2309
        %v2487 = vunpack.c.l.b16 %v2310
        %v2488 = vunpack.c.h.b16 %v2310
        %v2489 = vunpack.c.l.b16 %v2311
        %v2490 = vunpack.c.h.b16 %v2311
        %v2491 = vunpack.c.l.b16 %v2312
        %v2492 = vunpack.c.h.b16 %v2312
        %v2493 = vunpack.c.l.b16 %v2313
        %v2494 = vunpack.c.h.b16 %v2313
        %v2495 = vunpack.c.l.b16 %v2314
        %v2496 = vunpack.c.h.b16 %v2314
        %v2497 = vunpack.c.l.b16 %v2315
        %v2498 = vunpack.c.h.b16 %v2315
        %v2499 = vunpack.c.l.b16 %v2316
        %v2500 = vunpack.c.h.b16 %v2316
        %v2501 = vunpack.c.l.b16 %v2317
        %v2502 = vunpack.c.h.b16 %v2317
        %v2503 = vunpack.c.l.b16 %v2318
        %v2504 = vunpack.c.h.b16 %v2318
        %v2505 = vunpack.c.l.b16 %v2319
        %v2506 = vunpack.c.h.b16 %v2319
        %v2507 = vunpack.c.l.b16 %v2320
        %v2508 = vunpack.c.h.b16 %v2320
        %v2509 = vunpack.c.l.b16 %v2321
        %v2510 = vunpack.c.h.b16 %v2321
        %v2511 = vunpack.c.l.b16 %v2322
        %v2512 = vunpack.c.h.b16 %v2322
        %v2513 = vunpack.c.l.b16 %v2323
        %v2514 = vunpack.c.h.b16 %v2323
        %v2515 = vunpack.c.l.b16 %v2324
        %v2516 = vunpack.c.h.b16 %v2324
        %v2517 = vunpack.c.l.b16 %v2325
        %v2518 = vunpack.c.h.b16 %v2325
        %v2519 = vunpack.c.l.b16 %v2326
        %v2520 = vunpack.c.h.b16 %v2326
        %v2521 = vunpack.c.l.b16 %v2327
        %v2522 = vunpack.c.h.b16 %v2327
        %v2523 = vunpack.c.l.b16 %v2328
        %v2524 = vunpack.c.h.b16 %v2328
        %v2525 = vunpack.c.l.b16 %v2329
        %v2526 = vunpack.c.h.b16 %v2329
        %v2527 = vunpack.c.l.b16 %v2330
        %v2528 = vunpack.c.h.b16 %v2330
        %v2529 = vpack.c.b16 %v2403, %v2401
        %v2530 = vpack.c.b16 %v2404, %v2402
        %v2531 = vpack.c.b16 %v2407, %v2405
        %v2532 = vpack.c.b16 %v2408, %v2406
        %v2533 = vpack.c.b16 %v2411, %v2409
        %v2534 = vpack.c.b16 %v2412, %v2410
        %v2535 = vpack.c.b16 %v2415, %v2413
        %v2536 = vpack.c.b16 %v2416, %v2414
        %v2537 = vpack.c.b16 %v2419, %v2417
        %v2538 = vpack.c.b16 %v2420, %v2418
        %v2539 = vpack.c.b16 %v2423, %v2421
        %v2540 = vpack.c.b16 %v2424, %v2422
        %v2541 = vpack.c.b16 %v2427, %v2425
        %v2542 = vpack.c.b16 %v2428, %v2426
        %v2543 = vpack.c.b16 %v2431, %v2429
        %v2544 = vpack.c.b16 %v2432, %v2430
        %v2545 = vpack.c.b16 %v2435, %v2433
        %v2546 = vpack.c.b16 %v2436, %v2434
        %v2547 = vpack.c.b16 %v2439, %v2437
        %v2548 = vpack.c.b16 %v2440, %v2438
        %v2549 = vpack.c.b16 %v2443, %v2441
        %v2550 = vpack.c.b16 %v2444, %v2442
        %v2551 = vpack.c.b16 %v2447, %v2445
        %v2552 = vpack.c.b16 %v2448, %v2446
        %v2553 = vpack.c.b16 %v2451, %v2449
        %v2554 = vpack.c.b16 %v2452, %v2450
        %v2555 = vpack.c.b16 %v2455, %v2453
        %v2556 = vpack.c.b16 %v2456, %v2454
        %v2557 = vpack.c.b16 %v2459, %v2457
        %v2558 = vpack.c.b16 %v2460, %v2458
        %v2559 = vpack.c.b16 %v2463, %v2461
        %v2560 = vpack.c.b16 %v2464, %v2462
        %v2561 = vpack.c.b16 %v2467, %v2465
        %v2562 = vpack.c.b16 %v2468, %v2466
        %v2563 = vpack.c.b16 %v2471, %v2469
        %v2564 = vpack.c.b16 %v2472, %v2470
        %v2565 = vpack.c.b16 %v2475, %v2473
        %v2566 = vpack.c.b16 %v2476, %v2474
        %v2567 = vpack.c.b16 %v2479, %v2477
        %v2568 = vpack.c.b16 %v2480, %v2478
        %v2569 = vpack.c.b16 %v2483, %v2481
        %v2570 = vpack.c.b16 %v2484, %v2482
        %v2571 = vpack.c.b16 %v2487, %v2485
        %v2572 = vpack.c.b16 %v2488, %v2486
        %v2573 = vpack.c.b16 %v2491, %v2489
        %v2574 = vpack.c.b16 %v2492, %v2490
        %v2575 = vpack.c.b16 %v2495, %v2493
        %v2576 = vpack.c.b16 %v2496, %v2494
        %v2577 = vpack.c.b16 %v2499, %v2497
        %v2578 = vpack.c.b16 %v2500, %v2498
        %v2579 = vpack.c.b16 %v2503, %v2501
        %v2580 = vpack.c.b16 %v2504, %v2502
        %v2581 = vpack.c.b16 %v2507, %v2505
        %v2582 = vpack.c.b16 %v2508, %v2506
        %v2583 = vpack.c.b16 %v2511, %v2509
        %v2584 = vpack.c.b16 %v2512, %v2510
        %v2585 = vpack.c.b16 %v2515, %v2513
        %v2586 = vpack.c.b16 %v2516, %v2514
        %v2587 = vpack.c.b16 %v2519, %v2517
        %v2588 = vpack.c.b16 %v2520, %v2518
        %v2589 = vpack.c.b16 %v2523, %v2521
        %v2590 = vpack.c.b16 %v2524, %v2522
        %v2591 = vpack.c.b16 %v2527, %v2525
        %v2592 = vpack.c.b16 %v2528, %v2526
        %2657 = vmatpush.bf16.msra.mxu0 %v2543
        %2658 = vmatpush.bf16.msra.mxu0 %v2541
        %2659 = vmatpush.bf16.msra.mxu0 %v2539
        %2660 = vmatpush.bf16.msra.mxu0 %v2537
        %2661 = vmatpush.bf16.msra.mxu0 %v2535
        %2662 = vmatpush.bf16.msra.mxu0 %v2533
        %2663 = vmatpush.bf16.msra.mxu0 %v2531
        %2664 = vmatpush.bf16.msra.mxu0 %v2529
        %2665 = vmatmul.bf16.gmra.mxu0 %v2219
        %v2666 = vpop.f32.mrf.mxu0
        %v2667 = vadd.f32 %v2333, %v2666
        %v2668 = vpop.f32.mrf.mxu0
        %v2669 = vadd.f32 %v2333, %v2668
        %2670 = vmatmul.bf16.gmra.mxu0 %v2223
        %v2671 = vpop.f32.mrf.mxu0
        %v2672 = vadd.f32 %v2333, %v2671
        %v2673 = vpop.f32.mrf.mxu0
        %v2674 = vadd.f32 %v2333, %v2673
        %2675 = vmatmul.bf16.gmra.mxu0 %v2227
        %v2676 = vpop.f32.mrf.mxu0
        %v2677 = vadd.f32 %v2333, %v2676
        %v2678 = vpop.f32.mrf.mxu0
        %v2679 = vadd.f32 %v2333, %v2678
        %2680 = vmatmul.bf16.gmra.mxu0 %v2231
        %v2681 = vpop.f32.mrf.mxu0
        %v2682 = vadd.f32 %v2333, %v2681
        %v2683 = vpop.f32.mrf.mxu0
        %v2684 = vadd.f32 %v2333, %v2683
        %2685 = vmatmul.bf16.gmra.mxu0 %v2235
        %v2686 = vpop.f32.mrf.mxu0
        %v2687 = vadd.f32 %v2333, %v2686
        %v2688 = vpop.f32.mrf.mxu0
        %v2689 = vadd.f32 %v2333, %v2688
        %2690 = vmatmul.bf16.gmra.mxu0 %v2239
        %v2691 = vpop.f32.mrf.mxu0
        %v2692 = vadd.f32 %v2333, %v2691
        %v2693 = vpop.f32.mrf.mxu0
        %v2694 = vadd.f32 %v2333, %v2693
        %2695 = vmatmul.bf16.gmra.mxu0 %v2243
        %v2696 = vpop.f32.mrf.mxu0
        %v2697 = vadd.f32 %v2333, %v2696
        %v2698 = vpop.f32.mrf.mxu0
        %v2699 = vadd.f32 %v2333, %v2698
        %2700 = vmatmul.bf16.gmra.mxu0 %v2247
        %v2701 = vpop.f32.mrf.mxu0
        %v2702 = vadd.f32 %v2333, %v2701
        %v2703 = vpop.f32.mrf.mxu0
        %v2704 = vadd.f32 %v2333, %v2703
        %2705 = vmatmul.bf16.gmra.mxu0 %v2251
        %v2706 = vpop.f32.mrf.mxu0
        %v2707 = vadd.f32 %v2333, %v2706
        %v2708 = vpop.f32.mrf.mxu0
        %v2709 = vadd.f32 %v2333, %v2708
        %2710 = vmatmul.bf16.gmra.mxu0 %v2255
        %v2711 = vpop.f32.mrf.mxu0
        %v2712 = vadd.f32 %v2333, %v2711
        %v2713 = vpop.f32.mrf.mxu0
        %v2714 = vadd.f32 %v2333, %v2713
        %2715 = vmatmul.bf16.gmra.mxu0 %v2259
        %v2716 = vpop.f32.mrf.mxu0
        %v2717 = vadd.f32 %v2333, %v2716
        %v2718 = vpop.f32.mrf.mxu0
        %v2719 = vadd.f32 %v2333, %v2718
        %2720 = vmatmul.bf16.gmra.mxu0 %v2263
        %v2721 = vpop.f32.mrf.mxu0
        %v2722 = vadd.f32 %v2333, %v2721
        %v2723 = vpop.f32.mrf.mxu0
        %v2724 = vadd.f32 %v2333, %v2723
        %2725 = vdwg.mxu0
        %2726 = vmatpush.bf16.msra.mxu0 %v2559
        %2727 = vmatpush.bf16.msra.mxu0 %v2557
        %2728 = vmatpush.bf16.msra.mxu0 %v2555
        %2729 = vmatpush.bf16.msra.mxu0 %v2553
        %2730 = vmatpush.bf16.msra.mxu0 %v2551
        %2731 = vmatpush.bf16.msra.mxu0 %v2549
        %2732 = vmatpush.bf16.msra.mxu0 %v2547
        %2733 = vmatpush.bf16.msra.mxu0 %v2545
        %2734 = vmatmul.bf16.gmra.mxu0 %v2220
        %v2735 = vpop.f32.mrf.mxu0
        %v2736 = vadd.f32 %v2667, %v2735
        %v2737 = vpop.f32.mrf.mxu0
        %v2738 = vadd.f32 %v2669, %v2737
        %2739 = vmatmul.bf16.gmra.mxu0 %v2224
        %v2740 = vpop.f32.mrf.mxu0
        %v2741 = vadd.f32 %v2672, %v2740
        %v2742 = vpop.f32.mrf.mxu0
        %v2743 = vadd.f32 %v2674, %v2742
        %2744 = vmatmul.bf16.gmra.mxu0 %v2228
        %v2745 = vpop.f32.mrf.mxu0
        %v2746 = vadd.f32 %v2677, %v2745
        %v2747 = vpop.f32.mrf.mxu0
        %v2748 = vadd.f32 %v2679, %v2747
        %2749 = vmatmul.bf16.gmra.mxu0 %v2232
        %v2750 = vpop.f32.mrf.mxu0
        %v2751 = vadd.f32 %v2682, %v2750
        %v2752 = vpop.f32.mrf.mxu0
        %v2753 = vadd.f32 %v2684, %v2752
        %2754 = vmatmul.bf16.gmra.mxu0 %v2236
        %v2755 = vpop.f32.mrf.mxu0
        %v2756 = vadd.f32 %v2687, %v2755
        %v2757 = vpop.f32.mrf.mxu0
        %v2758 = vadd.f32 %v2689, %v2757
        %2759 = vmatmul.bf16.gmra.mxu0 %v2240
        %v2760 = vpop.f32.mrf.mxu0
        %v2761 = vadd.f32 %v2692, %v2760
        %v2762 = vpop.f32.mrf.mxu0
        %v2763 = vadd.f32 %v2694, %v2762
        %2764 = vmatmul.bf16.gmra.mxu0 %v2244
        %v2765 = vpop.f32.mrf.mxu0
        %v2766 = vadd.f32 %v2697, %v2765
        %v2767 = vpop.f32.mrf.mxu0
        %v2768 = vadd.f32 %v2699, %v2767
        %2769 = vmatmul.bf16.gmra.mxu0 %v2248
        %v2770 = vpop.f32.mrf.mxu0
        %v2771 = vadd.f32 %v2702, %v2770
        %v2772 = vpop.f32.mrf.mxu0
        %v2773 = vadd.f32 %v2704, %v2772
        %2774 = vmatmul.bf16.gmra.mxu0 %v2252
        %v2775 = vpop.f32.mrf.mxu0
        %v2776 = vadd.f32 %v2707, %v2775
        %v2777 = vpop.f32.mrf.mxu0
        %v2778 = vadd.f32 %v2709, %v2777
        %2779 = vmatmul.bf16.gmra.mxu0 %v2256
        %v2780 = vpop.f32.mrf.mxu0
        %v2781 = vadd.f32 %v2712, %v2780
        %v2782 = vpop.f32.mrf.mxu0
        %v2783 = vadd.f32 %v2714, %v2782
        %2784 = vmatmul.bf16.gmra.mxu0 %v2260
        %v2785 = vpop.f32.mrf.mxu0
        %v2786 = vadd.f32 %v2717, %v2785
        %v2787 = vpop.f32.mrf.mxu0
        %v2788 = vadd.f32 %v2719, %v2787
        %2789 = vmatmul.bf16.gmra.mxu0 %v2264
        %v2790 = vpop.f32.mrf.mxu0
        %v2791 = vadd.f32 %v2722, %v2790
        %v2792 = vpop.f32.mrf.mxu0
        %v2793 = vadd.f32 %v2724, %v2792
        %2794 = vdwg.mxu0
        %2795 = vmatpush.bf16.msra.mxu0 %v2575
        %2796 = vmatpush.bf16.msra.mxu0 %v2573
        %2797 = vmatpush.bf16.msra.mxu0 %v2571
        %2798 = vmatpush.bf16.msra.mxu0 %v2569
        %2799 = vmatpush.bf16.msra.mxu0 %v2567
        %2800 = vmatpush.bf16.msra.mxu0 %v2565
        %2801 = vmatpush.bf16.msra.mxu0 %v2563
        %2802 = vmatpush.bf16.msra.mxu0 %v2561
        %2803 = vmatmul.bf16.gmra.mxu0 %v2221
        %v2804 = vpop.f32.mrf.mxu0
        %v2805 = vadd.f32 %v2736, %v2804
        %v2806 = vpop.f32.mrf.mxu0
        %v2807 = vadd.f32 %v2738, %v2806
        %2808 = vmatmul.bf16.gmra.mxu0 %v2225
        %v2809 = vpop.f32.mrf.mxu0
        %v2810 = vadd.f32 %v2741, %v2809
        %v2811 = vpop.f32.mrf.mxu0
        %v2812 = vadd.f32 %v2743, %v2811
        %2813 = vmatmul.bf16.gmra.mxu0 %v2229
        %v2814 = vpop.f32.mrf.mxu0
        %v2815 = vadd.f32 %v2746, %v2814
        %v2816 = vpop.f32.mrf.mxu0
        %v2817 = vadd.f32 %v2748, %v2816
        %2818 = vmatmul.bf16.gmra.mxu0 %v2233
        %v2819 = vpop.f32.mrf.mxu0
        %v2820 = vadd.f32 %v2751, %v2819
        %v2821 = vpop.f32.mrf.mxu0
        %v2822 = vadd.f32 %v2753, %v2821
        %2823 = vmatmul.bf16.gmra.mxu0 %v2237
        %v2824 = vpop.f32.mrf.mxu0
        %v2825 = vadd.f32 %v2756, %v2824
        %v2826 = vpop.f32.mrf.mxu0
        %v2827 = vadd.f32 %v2758, %v2826
        %2828 = vmatmul.bf16.gmra.mxu0 %v2241
        %v2829 = vpop.f32.mrf.mxu0
        %v2830 = vadd.f32 %v2761, %v2829
        %v2831 = vpop.f32.mrf.mxu0
        %v2832 = vadd.f32 %v2763, %v2831
        %2833 = vmatmul.bf16.gmra.mxu0 %v2245
        %v2834 = vpop.f32.mrf.mxu0
        %v2835 = vadd.f32 %v2766, %v2834
        %v2836 = vpop.f32.mrf.mxu0
        %v2837 = vadd.f32 %v2768, %v2836
        %2838 = vmatmul.bf16.gmra.mxu0 %v2249
        %v2839 = vpop.f32.mrf.mxu0
        %v2840 = vadd.f32 %v2771, %v2839
        %v2841 = vpop.f32.mrf.mxu0
        %v2842 = vadd.f32 %v2773, %v2841
        %2843 = vmatmul.bf16.gmra.mxu0 %v2253
        %v2844 = vpop.f32.mrf.mxu0
        %v2845 = vadd.f32 %v2776, %v2844
        %v2846 = vpop.f32.mrf.mxu0
        %v2847 = vadd.f32 %v2778, %v2846
        %2848 = vmatmul.bf16.gmra.mxu0 %v2257
        %v2849 = vpop.f32.mrf.mxu0
        %v2850 = vadd.f32 %v2781, %v2849
        %v2851 = vpop.f32.mrf.mxu0
        %v2852 = vadd.f32 %v2783, %v2851
        %2853 = vmatmul.bf16.gmra.mxu0 %v2261
        %v2854 = vpop.f32.mrf.mxu0
        %v2855 = vadd.f32 %v2786, %v2854
        %v2856 = vpop.f32.mrf.mxu0
        %v2857 = vadd.f32 %v2788, %v2856
        %2858 = vmatmul.bf16.gmra.mxu0 %v2265
        %v2859 = vpop.f32.mrf.mxu0
        %v2860 = vadd.f32 %v2791, %v2859
        %v2861 = vpop.f32.mrf.mxu0
        %v2862 = vadd.f32 %v2793, %v2861
        %2863 = vdwg.mxu0
        %2864 = vmatpush.bf16.msra.mxu0 %v2591
        %2865 = vmatpush.bf16.msra.mxu0 %v2589
        %2866 = vmatpush.bf16.msra.mxu0 %v2587
        %2867 = vmatpush.bf16.msra.mxu0 %v2585
        %2868 = vmatpush.bf16.msra.mxu0 %v2583
        %2869 = vmatpush.bf16.msra.mxu0 %v2581
        %2870 = vmatpush.bf16.msra.mxu0 %v2579
        %2871 = vmatpush.bf16.msra.mxu0 %v2577
        %2872 = vmatmul.bf16.gmra.mxu0 %v2222
        %v2873 = vpop.f32.mrf.mxu0
        %v2874 = vadd.f32 %v2805, %v2873
        %v2875 = vpop.f32.mrf.mxu0
        %v2876 = vadd.f32 %v2807, %v2875
        %2877 = vmatmul.bf16.gmra.mxu0 %v2226
        %v2878 = vpop.f32.mrf.mxu0
        %v2879 = vadd.f32 %v2810, %v2878
        %v2880 = vpop.f32.mrf.mxu0
        %v2881 = vadd.f32 %v2812, %v2880
        %2882 = vmatmul.bf16.gmra.mxu0 %v2230
        %v2883 = vpop.f32.mrf.mxu0
        %v2884 = vadd.f32 %v2815, %v2883
        %v2885 = vpop.f32.mrf.mxu0
        %v2886 = vadd.f32 %v2817, %v2885
        %2887 = vmatmul.bf16.gmra.mxu0 %v2234
        %v2888 = vpop.f32.mrf.mxu0
        %v2889 = vadd.f32 %v2820, %v2888
        %v2890 = vpop.f32.mrf.mxu0
        %v2891 = vadd.f32 %v2822, %v2890
        %2892 = vmatmul.bf16.gmra.mxu0 %v2238
        %v2893 = vpop.f32.mrf.mxu0
        %v2894 = vadd.f32 %v2825, %v2893
        %v2895 = vpop.f32.mrf.mxu0
        %v2896 = vadd.f32 %v2827, %v2895
        %2897 = vmatmul.bf16.gmra.mxu0 %v2242
        %v2898 = vpop.f32.mrf.mxu0
        %v2899 = vadd.f32 %v2830, %v2898
        %v2900 = vpop.f32.mrf.mxu0
        %v2901 = vadd.f32 %v2832, %v2900
        %2902 = vmatmul.bf16.gmra.mxu0 %v2246
        %v2903 = vpop.f32.mrf.mxu0
        %v2904 = vadd.f32 %v2835, %v2903
        %v2905 = vpop.f32.mrf.mxu0
        %v2906 = vadd.f32 %v2837, %v2905
        %2907 = vmatmul.bf16.gmra.mxu0 %v2250
        %v2908 = vpop.f32.mrf.mxu0
        %v2909 = vadd.f32 %v2840, %v2908
        %v2910 = vpop.f32.mrf.mxu0
        %v2911 = vadd.f32 %v2842, %v2910
        %2912 = vmatmul.bf16.gmra.mxu0 %v2254
        %v2913 = vpop.f32.mrf.mxu0
        %v2914 = vadd.f32 %v2845, %v2913
        %v2915 = vpop.f32.mrf.mxu0
        %v2916 = vadd.f32 %v2847, %v2915
        %2917 = vmatmul.bf16.gmra.mxu0 %v2258
        %v2918 = vpop.f32.mrf.mxu0
        %v2919 = vadd.f32 %v2850, %v2918
        %v2920 = vpop.f32.mrf.mxu0
        %v2921 = vadd.f32 %v2852, %v2920
        %2922 = vmatmul.bf16.gmra.mxu0 %v2262
        %v2923 = vpop.f32.mrf.mxu0
        %v2924 = vadd.f32 %v2855, %v2923
        %v2925 = vpop.f32.mrf.mxu0
        %v2926 = vadd.f32 %v2857, %v2925
        %2927 = vmatmul.bf16.gmra.mxu0 %v2266
        %v2928 = vpop.f32.mrf.mxu0
        %v2929 = vadd.f32 %v2860, %v2928
        %v2930 = vpop.f32.mrf.mxu0
        %v2931 = vadd.f32 %v2862, %v2930
        %2932 = vdwg.mxu0
        %2933 = vmatpush.bf16.msra.mxu0 %v2544
        %2934 = vmatpush.bf16.msra.mxu0 %v2542
        %2935 = vmatpush.bf16.msra.mxu0 %v2540
        %2936 = vmatpush.bf16.msra.mxu0 %v2538
        %2937 = vmatpush.bf16.msra.mxu0 %v2536
        %2938 = vmatpush.bf16.msra.mxu0 %v2534
        %2939 = vmatpush.bf16.msra.mxu0 %v2532
        %2940 = vmatpush.bf16.msra.mxu0 %v2530
        %2941 = vmatmul.bf16.gmra.mxu0 %v2219
        %v2942 = vpop.f32.mrf.mxu0
        %v2943 = vadd.f32 %v2334, %v2942
        %v2944 = vpop.f32.mrf.mxu0
        %v2945 = vadd.f32 %v2334, %v2944
        %2946 = vmatmul.bf16.gmra.mxu0 %v2223
        %v2947 = vpop.f32.mrf.mxu0
        %v2948 = vadd.f32 %v2334, %v2947
        %v2949 = vpop.f32.mrf.mxu0
        %v2950 = vadd.f32 %v2334, %v2949
        %2951 = vmatmul.bf16.gmra.mxu0 %v2227
        %v2952 = vpop.f32.mrf.mxu0
        %v2953 = vadd.f32 %v2334, %v2952
        %v2954 = vpop.f32.mrf.mxu0
        %v2955 = vadd.f32 %v2334, %v2954
        %2956 = vmatmul.bf16.gmra.mxu0 %v2231
        %v2957 = vpop.f32.mrf.mxu0
        %v2958 = vadd.f32 %v2334, %v2957
        %v2959 = vpop.f32.mrf.mxu0
        %v2960 = vadd.f32 %v2334, %v2959
        %2961 = vmatmul.bf16.gmra.mxu0 %v2235
        %v2962 = vpop.f32.mrf.mxu0
        %v2963 = vadd.f32 %v2334, %v2962
        %v2964 = vpop.f32.mrf.mxu0
        %v2965 = vadd.f32 %v2334, %v2964
        %2966 = vmatmul.bf16.gmra.mxu0 %v2239
        %v2967 = vpop.f32.mrf.mxu0
        %v2968 = vadd.f32 %v2334, %v2967
        %v2969 = vpop.f32.mrf.mxu0
        %v2970 = vadd.f32 %v2334, %v2969
        %2971 = vmatmul.bf16.gmra.mxu0 %v2243
        %v2972 = vpop.f32.mrf.mxu0
        %v2973 = vadd.f32 %v2334, %v2972
        %v2974 = vpop.f32.mrf.mxu0
        %v2975 = vadd.f32 %v2334, %v2974
        %2976 = vmatmul.bf16.gmra.mxu0 %v2247
        %v2977 = vpop.f32.mrf.mxu0
        %v2978 = vadd.f32 %v2334, %v2977
        %v2979 = vpop.f32.mrf.mxu0
        %v2980 = vadd.f32 %v2334, %v2979
        %2981 = vmatmul.bf16.gmra.mxu0 %v2251
        %v2982 = vpop.f32.mrf.mxu0
        %v2983 = vadd.f32 %v2334, %v2982
        %v2984 = vpop.f32.mrf.mxu0
        %v2985 = vadd.f32 %v2334, %v2984
        %2986 = vmatmul.bf16.gmra.mxu0 %v2255
        %v2987 = vpop.f32.mrf.mxu0
        %v2988 = vadd.f32 %v2334, %v2987
        %v2989 = vpop.f32.mrf.mxu0
        %v2990 = vadd.f32 %v2334, %v2989
        %2991 = vmatmul.bf16.gmra.mxu0 %v2259
        %v2992 = vpop.f32.mrf.mxu0
        %v2993 = vadd.f32 %v2334, %v2992
        %v2994 = vpop.f32.mrf.mxu0
        %v2995 = vadd.f32 %v2334, %v2994
        %2996 = vmatmul.bf16.gmra.mxu0 %v2263
        %v2997 = vpop.f32.mrf.mxu0
        %v2998 = vadd.f32 %v2334, %v2997
        %v2999 = vpop.f32.mrf.mxu0
        %v3000 = vadd.f32 %v2334, %v2999
        %3001 = vdwg.mxu0
        %3002 = vmatpush.bf16.msra.mxu0 %v2560
        %3003 = vmatpush.bf16.msra.mxu0 %v2558
        %3004 = vmatpush.bf16.msra.mxu0 %v2556
        %3005 = vmatpush.bf16.msra.mxu0 %v2554
        %3006 = vmatpush.bf16.msra.mxu0 %v2552
        %3007 = vmatpush.bf16.msra.mxu0 %v2550
        %3008 = vmatpush.bf16.msra.mxu0 %v2548
        %3009 = vmatpush.bf16.msra.mxu0 %v2546
        %3010 = vmatmul.bf16.gmra.mxu0 %v2220
        %v3011 = vpop.f32.mrf.mxu0
        %v3012 = vadd.f32 %v2943, %v3011
        %v3013 = vpop.f32.mrf.mxu0
        %v3014 = vadd.f32 %v2945, %v3013
        %3015 = vmatmul.bf16.gmra.mxu0 %v2224
        %v3016 = vpop.f32.mrf.mxu0
        %v3017 = vadd.f32 %v2948, %v3016
        %v3018 = vpop.f32.mrf.mxu0
        %v3019 = vadd.f32 %v2950, %v3018
        %3020 = vmatmul.bf16.gmra.mxu0 %v2228
        %v3021 = vpop.f32.mrf.mxu0
        %v3022 = vadd.f32 %v2953, %v3021
        %v3023 = vpop.f32.mrf.mxu0
        %v3024 = vadd.f32 %v2955, %v3023
        %3025 = vmatmul.bf16.gmra.mxu0 %v2232
        %v3026 = vpop.f32.mrf.mxu0
        %v3027 = vadd.f32 %v2958, %v3026
        %v3028 = vpop.f32.mrf.mxu0
        %v3029 = vadd.f32 %v2960, %v3028
        %3030 = vmatmul.bf16.gmra.mxu0 %v2236
        %v3031 = vpop.f32.mrf.mxu0
        %v3032 = vadd.f32 %v2963, %v3031
        %v3033 = vpop.f32.mrf.mxu0
        %v3034 = vadd.f32 %v2965, %v3033
        %3035 = vmatmul.bf16.gmra.mxu0 %v2240
        %v3036 = vpop.f32.mrf.mxu0
        %v3037 = vadd.f32 %v2968, %v3036
        %v3038 = vpop.f32.mrf.mxu0
        %v3039 = vadd.f32 %v2970, %v3038
        %3040 = vmatmul.bf16.gmra.mxu0 %v2244
        %v3041 = vpop.f32.mrf.mxu0
        %v3042 = vadd.f32 %v2973, %v3041
        %v3043 = vpop.f32.mrf.mxu0
        %v3044 = vadd.f32 %v2975, %v3043
        %3045 = vmatmul.bf16.gmra.mxu0 %v2248
        %v3046 = vpop.f32.mrf.mxu0
        %v3047 = vadd.f32 %v2978, %v3046
        %v3048 = vpop.f32.mrf.mxu0
        %v3049 = vadd.f32 %v2980, %v3048
        %3050 = vmatmul.bf16.gmra.mxu0 %v2252
        %v3051 = vpop.f32.mrf.mxu0
        %v3052 = vadd.f32 %v2983, %v3051
        %v3053 = vpop.f32.mrf.mxu0
        %v3054 = vadd.f32 %v2985, %v3053
        %3055 = vmatmul.bf16.gmra.mxu0 %v2256
        %v3056 = vpop.f32.mrf.mxu0
        %v3057 = vadd.f32 %v2988, %v3056
        %v3058 = vpop.f32.mrf.mxu0
        %v3059 = vadd.f32 %v2990, %v3058
        %3060 = vmatmul.bf16.gmra.mxu0 %v2260
        %v3061 = vpop.f32.mrf.mxu0
        %v3062 = vadd.f32 %v2993, %v3061
        %v3063 = vpop.f32.mrf.mxu0
        %v3064 = vadd.f32 %v2995, %v3063
        %3065 = vmatmul.bf16.gmra.mxu0 %v2264
        %v3066 = vpop.f32.mrf.mxu0
        %v3067 = vadd.f32 %v2998, %v3066
        %v3068 = vpop.f32.mrf.mxu0
        %v3069 = vadd.f32 %v3000, %v3068
        %3070 = vdwg.mxu0
        %3071 = vmatpush.bf16.msra.mxu0 %v2576
        %3072 = vmatpush.bf16.msra.mxu0 %v2574
        %3073 = vmatpush.bf16.msra.mxu0 %v2572
        %3074 = vmatpush.bf16.msra.mxu0 %v2570
        %3075 = vmatpush.bf16.msra.mxu0 %v2568
        %3076 = vmatpush.bf16.msra.mxu0 %v2566
        %3077 = vmatpush.bf16.msra.mxu0 %v2564
        %3078 = vmatpush.bf16.msra.mxu0 %v2562
        %3079 = vmatmul.bf16.gmra.mxu0 %v2221
        %v3080 = vpop.f32.mrf.mxu0
        %v3081 = vadd.f32 %v3012, %v3080
        %v3082 = vpop.f32.mrf.mxu0
        %v3083 = vadd.f32 %v3014, %v3082
        %3084 = vmatmul.bf16.gmra.mxu0 %v2225
        %v3085 = vpop.f32.mrf.mxu0
        %v3086 = vadd.f32 %v3017, %v3085
        %v3087 = vpop.f32.mrf.mxu0
        %v3088 = vadd.f32 %v3019, %v3087
        %3089 = vmatmul.bf16.gmra.mxu0 %v2229
        %v3090 = vpop.f32.mrf.mxu0
        %v3091 = vadd.f32 %v3022, %v3090
        %v3092 = vpop.f32.mrf.mxu0
        %v3093 = vadd.f32 %v3024, %v3092
        %3094 = vmatmul.bf16.gmra.mxu0 %v2233
        %v3095 = vpop.f32.mrf.mxu0
        %v3096 = vadd.f32 %v3027, %v3095
        %v3097 = vpop.f32.mrf.mxu0
        %v3098 = vadd.f32 %v3029, %v3097
        %3099 = vmatmul.bf16.gmra.mxu0 %v2237
        %v3100 = vpop.f32.mrf.mxu0
        %v3101 = vadd.f32 %v3032, %v3100
        %v3102 = vpop.f32.mrf.mxu0
        %v3103 = vadd.f32 %v3034, %v3102
        %3104 = vmatmul.bf16.gmra.mxu0 %v2241
        %v3105 = vpop.f32.mrf.mxu0
        %v3106 = vadd.f32 %v3037, %v3105
        %v3107 = vpop.f32.mrf.mxu0
        %v3108 = vadd.f32 %v3039, %v3107
        %3109 = vmatmul.bf16.gmra.mxu0 %v2245
        %v3110 = vpop.f32.mrf.mxu0
        %v3111 = vadd.f32 %v3042, %v3110
        %v3112 = vpop.f32.mrf.mxu0
        %v3113 = vadd.f32 %v3044, %v3112
        %3114 = vmatmul.bf16.gmra.mxu0 %v2249
        %v3115 = vpop.f32.mrf.mxu0
        %v3116 = vadd.f32 %v3047, %v3115
        %v3117 = vpop.f32.mrf.mxu0
        %v3118 = vadd.f32 %v3049, %v3117
        %3119 = vmatmul.bf16.gmra.mxu0 %v2253
        %v3120 = vpop.f32.mrf.mxu0
        %v3121 = vadd.f32 %v3052, %v3120
        %v3122 = vpop.f32.mrf.mxu0
        %v3123 = vadd.f32 %v3054, %v3122
        %3124 = vmatmul.bf16.gmra.mxu0 %v2257
        %v3125 = vpop.f32.mrf.mxu0
        %v3126 = vadd.f32 %v3057, %v3125
        %v3127 = vpop.f32.mrf.mxu0
        %v3128 = vadd.f32 %v3059, %v3127
        %3129 = vmatmul.bf16.gmra.mxu0 %v2261
        %v3130 = vpop.f32.mrf.mxu0
        %v3131 = vadd.f32 %v3062, %v3130
        %v3132 = vpop.f32.mrf.mxu0
        %v3133 = vadd.f32 %v3064, %v3132
        %3134 = vmatmul.bf16.gmra.mxu0 %v2265
        %v3135 = vpop.f32.mrf.mxu0
        %v3136 = vadd.f32 %v3067, %v3135
        %v3137 = vpop.f32.mrf.mxu0
        %v3138 = vadd.f32 %v3069, %v3137
        %3139 = vdwg.mxu0
        %3140 = vmatpush.bf16.msra.mxu0 %v2592
        %3141 = vmatpush.bf16.msra.mxu0 %v2590
        %3142 = vmatpush.bf16.msra.mxu0 %v2588
        %3143 = vmatpush.bf16.msra.mxu0 %v2586
        %3144 = vmatpush.bf16.msra.mxu0 %v2584
        %3145 = vmatpush.bf16.msra.mxu0 %v2582
        %3146 = vmatpush.bf16.msra.mxu0 %v2580
        %3147 = vmatpush.bf16.msra.mxu0 %v2578
        %3148 = vmatmul.bf16.gmra.mxu0 %v2222
        %v3149 = vpop.f32.mrf.mxu0
        %v3150 = vadd.f32 %v3081, %v3149
        %v3151 = vpop.f32.mrf.mxu0
        %v3152 = vadd.f32 %v3083, %v3151
        %3153 = vmatmul.bf16.gmra.mxu0 %v2226
        %v3154 = vpop.f32.mrf.mxu0
        %v3155 = vadd.f32 %v3086, %v3154
        %v3156 = vpop.f32.mrf.mxu0
        %v3157 = vadd.f32 %v3088, %v3156
        %3158 = vmatmul.bf16.gmra.mxu0 %v2230
        %v3159 = vpop.f32.mrf.mxu0
        %v3160 = vadd.f32 %v3091, %v3159
        %v3161 = vpop.f32.mrf.mxu0
        %v3162 = vadd.f32 %v3093, %v3161
        %3163 = vmatmul.bf16.gmra.mxu0 %v2234
        %v3164 = vpop.f32.mrf.mxu0
        %v3165 = vadd.f32 %v3096, %v3164
        %v3166 = vpop.f32.mrf.mxu0
        %v3167 = vadd.f32 %v3098, %v3166
        %3168 = vmatmul.bf16.gmra.mxu0 %v2238
        %v3169 = vpop.f32.mrf.mxu0
        %v3170 = vadd.f32 %v3101, %v3169
        %v3171 = vpop.f32.mrf.mxu0
        %v3172 = vadd.f32 %v3103, %v3171
        %3173 = vmatmul.bf16.gmra.mxu0 %v2242
        %v3174 = vpop.f32.mrf.mxu0
        %v3175 = vadd.f32 %v3106, %v3174
        %v3176 = vpop.f32.mrf.mxu0
        %v3177 = vadd.f32 %v3108, %v3176
        %3178 = vmatmul.bf16.gmra.mxu0 %v2246
        %v3179 = vpop.f32.mrf.mxu0
        %v3180 = vadd.f32 %v3111, %v3179
        %v3181 = vpop.f32.mrf.mxu0
        %v3182 = vadd.f32 %v3113, %v3181
        %3183 = vmatmul.bf16.gmra.mxu0 %v2250
        %v3184 = vpop.f32.mrf.mxu0
        %v3185 = vadd.f32 %v3116, %v3184
        %v3186 = vpop.f32.mrf.mxu0
        %v3187 = vadd.f32 %v3118, %v3186
        %3188 = vmatmul.bf16.gmra.mxu0 %v2254
        %v3189 = vpop.f32.mrf.mxu0
        %v3190 = vadd.f32 %v3121, %v3189
        %v3191 = vpop.f32.mrf.mxu0
        %v3192 = vadd.f32 %v3123, %v3191
        %3193 = vmatmul.bf16.gmra.mxu0 %v2258
        %v3194 = vpop.f32.mrf.mxu0
        %v3195 = vadd.f32 %v3126, %v3194
        %v3196 = vpop.f32.mrf.mxu0
        %v3197 = vadd.f32 %v3128, %v3196
        %3198 = vmatmul.bf16.gmra.mxu0 %v2262
        %v3199 = vpop.f32.mrf.mxu0
        %v3200 = vadd.f32 %v3131, %v3199
        %v3201 = vpop.f32.mrf.mxu0
        %v3202 = vadd.f32 %v3133, %v3201
        %3203 = vmatmul.bf16.gmra.mxu0 %v2266
        %v3204 = vpop.f32.mrf.mxu0
        %v3205 = vadd.f32 %v3136, %v3204
        %v3206 = vpop.f32.mrf.mxu0
        %v3207 = vadd.f32 %v3138, %v3206
        %3208 = vdwg.mxu0
        %v3209 = vmax.f32 %v2874, 0.0
        %v3210 = vmax.f32 %v3150, 0.0
        %v3211 = vmax.f32 %v2876, 0.0
        %v3212 = vmax.f32 %v3152, 0.0
        %v3213 = vmax.f32 %v2879, 0.0
        %v3214 = vmax.f32 %v3155, 0.0
        %v3215 = vmax.f32 %v2881, 0.0
        %v3216 = vmax.f32 %v3157, 0.0
        %v3217 = vmax.f32 %v2884, 0.0
        %v3218 = vmax.f32 %v3160, 0.0
        %v3219 = vmax.f32 %v2886, 0.0
        %v3220 = vmax.f32 %v3162, 0.0
        %v3221 = vmax.f32 %v2889, 0.0
        %v3222 = vmax.f32 %v3165, 0.0
        %v3223 = vmax.f32 %v2891, 0.0
        %v3224 = vmax.f32 %v3167, 0.0
        %v3225 = vmax.f32 %v2894, 0.0
        %v3226 = vmax.f32 %v3170, 0.0
        %v3227 = vmax.f32 %v2896, 0.0
        %v3228 = vmax.f32 %v3172, 0.0
        %v3229 = vmax.f32 %v2899, 0.0
        %v3230 = vmax.f32 %v3175, 0.0
        %v3231 = vmax.f32 %v2901, 0.0
        %v3232 = vmax.f32 %v3177, 0.0
        %v3233 = vmax.f32 %v2904, 0.0
        %v3234 = vmax.f32 %v3180, 0.0
        %v3235 = vmax.f32 %v2906, 0.0
        %v3236 = vmax.f32 %v3182, 0.0
        %v3237 = vmax.f32 %v2909, 0.0
        %v3238 = vmax.f32 %v3185, 0.0
        %v3239 = vmax.f32 %v2911, 0.0
        %v3240 = vmax.f32 %v3187, 0.0
        %v3241 = vmax.f32 %v2914, 0.0
        %v3242 = vmax.f32 %v3190, 0.0
        %v3243 = vmax.f32 %v2916, 0.0
        %v3244 = vmax.f32 %v3192, 0.0
        %v3245 = vmax.f32 %v2919, 0.0
        %v3246 = vmax.f32 %v3195, 0.0
        %v3247 = vmax.f32 %v2921, 0.0
        %v3248 = vmax.f32 %v3197, 0.0
        %v3249 = vmax.f32 %v2924, 0.0
        %v3250 = vmax.f32 %v3200, 0.0
        %v3251 = vmax.f32 %v2926, 0.0
        %v3252 = vmax.f32 %v3202, 0.0
        %v3253 = vmax.f32 %v2929, 0.0
        %v3254 = vmax.f32 %v3205, 0.0
        %v3255 = vmax.f32 %v2931, 0.0
        %v3256 = vmax.f32 %v3207, 0.0
        %v3257 = vpack.c.bf16 %v3211, %v3209
        %v3258 = vpack.c.bf16 %v3212, %v3210
        %v3259 = vpack.c.bf16 %v3215, %v3213
        %v3260 = vpack.c.bf16 %v3216, %v3214
        %v3261 = vpack.c.bf16 %v3219, %v3217
        %v3262 = vpack.c.bf16 %v3220, %v3218
        %v3263 = vpack.c.bf16 %v3223, %v3221
        %v3264 = vpack.c.bf16 %v3224, %v3222
        %v3265 = vpack.c.bf16 %v3227, %v3225
        %v3266 = vpack.c.bf16 %v3228, %v3226
        %v3267 = vpack.c.bf16 %v3231, %v3229
        %v3268 = vpack.c.bf16 %v3232, %v3230
        %v3269 = vpack.c.bf16 %v3235, %v3233
        %v3270 = vpack.c.bf16 %v3236, %v3234
        %v3271 = vpack.c.bf16 %v3239, %v3237
        %v3272 = vpack.c.bf16 %v3240, %v3238
        %v3273 = vpack.c.bf16 %v3243, %v3241
        %v3274 = vpack.c.bf16 %v3244, %v3242
        %v3275 = vpack.c.bf16 %v3247, %v3245
        %v3276 = vpack.c.bf16 %v3248, %v3246
        %v3277 = vpack.c.bf16 %v3251, %v3249
        %v3278 = vpack.c.bf16 %v3252, %v3250
        %v3279 = vpack.c.bf16 %v3255, %v3253
        %v3280 = vpack.c.bf16 %v3256, %v3254
        %v3281 = vld [vmem:[%s7] sm:$0xf]
        %v3282 = vld [vmem:[%s7 + $0x4] sm:$0xf]
        %v3283 = vld [vmem:[%s7 + $0x8] sm:$0xf]
        %v3284 = vld [vmem:[%s7 + $0xc] sm:$0xf]
        %v3285 = vld [vmem:[%s7 + $0x10] sm:$0xf]
        %v3286 = vld [vmem:[%s7 + $0x14] sm:$0xf]
        %v3287 = vld [vmem:[%s7 + $0x18] sm:$0xf]
        %v3288 = vld [vmem:[%s7 + $0x1c] sm:$0xf]
        %v3289 = vld [vmem:[%s7 + $0x20] sm:$0xf]
        %v3290 = vld [vmem:[%s7 + $0x24] sm:$0xf]
        %v3291 = vld [vmem:[%s7 + $0x28] sm:$0xf]
        %v3292 = vld [vmem:[%s7 + $0x2c] sm:$0xf]
        %v3293 = vld [vmem:[%s7 + $0x30] sm:$0xf]
        %v3294 = vld [vmem:[%s7 + $0x34] sm:$0xf]
        %v3295 = vld [vmem:[%s7 + $0x38] sm:$0xf]
        %v3296 = vld [vmem:[%s7 + $0x3c] sm:$0xf]
        %v3297 = vld [vmem:[%s7 + $0x40] sm:$0xf]
        %v3298 = vld [vmem:[%s7 + $0x44] sm:$0xf]
        %v3299 = vld [vmem:[%s7 + $0x48] sm:$0xf]
        %v3300 = vld [vmem:[%s7 + $0x4c] sm:$0xf]
        %v3301 = vld [vmem:[%s7 + $0x50] sm:$0xf]
        %v3302 = vld [vmem:[%s7 + $0x54] sm:$0xf]
        %v3303 = vld [vmem:[%s7 + $0x58] sm:$0xf]
        %v3304 = vld [vmem:[%s7 + $0x5c] sm:$0xf]
        %v3305 = vld [vmem:[%s7 + $0x60] sm:$0xf]
        %v3306 = vld [vmem:[%s7 + $0x64] sm:$0xf]
        %v3307 = vld [vmem:[%s7 + $0x68] sm:$0xf]
        %v3308 = vld [vmem:[%s7 + $0x6c] sm:$0xf]
        %v3309 = vld [vmem:[%s7 + $0x70] sm:$0xf]
        %v3310 = vld [vmem:[%s7 + $0x74] sm:$0xf]
        %v3311 = vld [vmem:[%s7 + $0x78] sm:$0xf]
        %v3312 = vld [vmem:[%s7 + $0x7c] sm:$0xf]
        %v3313 = vld [vmem:[%s8] sm:$0x1]
        %v3315 = vperm.slane %v3313, 0
        %v3349 = vunpack.c.l.b16 %v3281
        %v3350 = vunpack.c.l.b16 %v3282
        %v3351 = vunpack.c.l.b16 %v3283
        %v3352 = vunpack.c.l.b16 %v3284
        %v3353 = vunpack.c.l.b16 %v3285
        %v3354 = vunpack.c.l.b16 %v3286
        %v3355 = vunpack.c.l.b16 %v3287
        %v3356 = vunpack.c.l.b16 %v3288
        %v3357 = vunpack.c.l.b16 %v3289
        %v3358 = vunpack.c.l.b16 %v3290
        %v3359 = vunpack.c.l.b16 %v3291
        %v3360 = vunpack.c.l.b16 %v3292
        %v3361 = vunpack.c.l.b16 %v3293
        %v3362 = vunpack.c.l.b16 %v3294
        %v3363 = vunpack.c.l.b16 %v3295
        %v3364 = vunpack.c.l.b16 %v3296
        %v3365 = vunpack.c.l.b16 %v3297
        %v3366 = vunpack.c.l.b16 %v3298
        %v3367 = vunpack.c.l.b16 %v3299
        %v3368 = vunpack.c.l.b16 %v3300
        %v3369 = vunpack.c.l.b16 %v3301
        %v3370 = vunpack.c.l.b16 %v3302
        %v3371 = vunpack.c.l.b16 %v3303
        %v3372 = vunpack.c.l.b16 %v3304
        %v3373 = vunpack.c.l.b16 %v3305
        %v3374 = vunpack.c.l.b16 %v3306
        %v3375 = vunpack.c.l.b16 %v3307
        %v3376 = vunpack.c.l.b16 %v3308
        %v3377 = vunpack.c.l.b16 %v3309
        %v3378 = vunpack.c.l.b16 %v3310
        %v3379 = vunpack.c.l.b16 %v3311
        %v3380 = vunpack.c.l.b16 %v3312
        %v3381 = vpack.c.b16 %v3350, %v3349
        %v3382 = vpack.c.b16 %v3352, %v3351
        %v3383 = vpack.c.b16 %v3354, %v3353
        %v3384 = vpack.c.b16 %v3356, %v3355
        %v3385 = vpack.c.b16 %v3358, %v3357
        %v3386 = vpack.c.b16 %v3360, %v3359
        %v3387 = vpack.c.b16 %v3362, %v3361
        %v3388 = vpack.c.b16 %v3364, %v3363
        %v3389 = vpack.c.b16 %v3366, %v3365
        %v3390 = vpack.c.b16 %v3368, %v3367
        %v3391 = vpack.c.b16 %v3370, %v3369
        %v3392 = vpack.c.b16 %v3372, %v3371
        %v3393 = vpack.c.b16 %v3374, %v3373
        %v3394 = vpack.c.b16 %v3376, %v3375
        %v3395 = vpack.c.b16 %v3378, %v3377
        %v3396 = vpack.c.b16 %v3380, %v3379
        %3413 = vmatpush.bf16.msra.mxu0 %v3388
        %3414 = vmatpush.bf16.msra.mxu0 %v3387
        %3415 = vmatpush.bf16.msra.mxu0 %v3386
        %3416 = vmatpush.bf16.msra.mxu0 %v3385
        %3417 = vmatpush.bf16.msra.mxu0 %v3384
        %3418 = vmatpush.bf16.msra.mxu0 %v3383
        %3419 = vmatpush.bf16.msra.mxu0 %v3382
        %3420 = vmatpush.bf16.msra.mxu0 %v3381
        %3421 = vmatmul.bf16.gmra.mxu0 %v3257
        %v3422 = vpop.f32.mrf.mxu0
        %v3423 = vadd.f32 %v3315, %v3422
        %v3424 = vpop.f32.mrf.mxu0
        %v3425 = vadd.f32 %v3315, %v3424
        %3426 = vmatmul.bf16.gmra.mxu0 %v3259
        %v3427 = vpop.f32.mrf.mxu0
        %v3428 = vadd.f32 %v3315, %v3427
        %v3429 = vpop.f32.mrf.mxu0
        %v3430 = vadd.f32 %v3315, %v3429
        %3431 = vmatmul.bf16.gmra.mxu0 %v3261
        %v3432 = vpop.f32.mrf.mxu0
        %v3433 = vadd.f32 %v3315, %v3432
        %v3434 = vpop.f32.mrf.mxu0
        %v3435 = vadd.f32 %v3315, %v3434
        %3436 = vmatmul.bf16.gmra.mxu0 %v3263
        %v3437 = vpop.f32.mrf.mxu0
        %v3438 = vadd.f32 %v3315, %v3437
        %v3439 = vpop.f32.mrf.mxu0
        %v3440 = vadd.f32 %v3315, %v3439
        %3441 = vmatmul.bf16.gmra.mxu0 %v3265
        %v3442 = vpop.f32.mrf.mxu0
        %v3443 = vadd.f32 %v3315, %v3442
        %v3444 = vpop.f32.mrf.mxu0
        %v3445 = vadd.f32 %v3315, %v3444
        %3446 = vmatmul.bf16.gmra.mxu0 %v3267
        %v3447 = vpop.f32.mrf.mxu0
        %v3448 = vadd.f32 %v3315, %v3447
        %v3449 = vpop.f32.mrf.mxu0
        %v3450 = vadd.f32 %v3315, %v3449
        %3451 = vmatmul.bf16.gmra.mxu0 %v3269
        %v3452 = vpop.f32.mrf.mxu0
        %v3453 = vadd.f32 %v3315, %v3452
        %v3454 = vpop.f32.mrf.mxu0
        %v3455 = vadd.f32 %v3315, %v3454
        %3456 = vmatmul.bf16.gmra.mxu0 %v3271
        %v3457 = vpop.f32.mrf.mxu0
        %v3458 = vadd.f32 %v3315, %v3457
        %v3459 = vpop.f32.mrf.mxu0
        %v3460 = vadd.f32 %v3315, %v3459
        %3461 = vmatmul.bf16.gmra.mxu0 %v3273
        %v3462 = vpop.f32.mrf.mxu0
        %v3463 = vadd.f32 %v3315, %v3462
        %v3464 = vpop.f32.mrf.mxu0
        %v3465 = vadd.f32 %v3315, %v3464
        %3466 = vmatmul.bf16.gmra.mxu0 %v3275
        %v3467 = vpop.f32.mrf.mxu0
        %v3468 = vadd.f32 %v3315, %v3467
        %v3469 = vpop.f32.mrf.mxu0
        %v3470 = vadd.f32 %v3315, %v3469
        %3471 = vmatmul.bf16.gmra.mxu0 %v3277
        %v3472 = vpop.f32.mrf.mxu0
        %v3473 = vadd.f32 %v3315, %v3472
        %v3474 = vpop.f32.mrf.mxu0
        %v3475 = vadd.f32 %v3315, %v3474
        %3476 = vmatmul.bf16.gmra.mxu0 %v3279
        %v3477 = vpop.f32.mrf.mxu0
        %v3478 = vadd.f32 %v3315, %v3477
        %v3479 = vpop.f32.mrf.mxu0
        %v3480 = vadd.f32 %v3315, %v3479
        %3481 = vdwg.mxu0
        %3482 = vmatpush.bf16.msra.mxu0 %v3396
        %3483 = vmatpush.bf16.msra.mxu0 %v3395
        %3484 = vmatpush.bf16.msra.mxu0 %v3394
        %3485 = vmatpush.bf16.msra.mxu0 %v3393
        %3486 = vmatpush.bf16.msra.mxu0 %v3392
        %3487 = vmatpush.bf16.msra.mxu0 %v3391
        %3488 = vmatpush.bf16.msra.mxu0 %v3390
        %3489 = vmatpush.bf16.msra.mxu0 %v3389
        %3490 = vmatmul.bf16.gmra.mxu0 %v3258
        %v3491 = vpop.f32.mrf.mxu0
        %v3492 = vadd.f32 %v3423, %v3491
        %v3493 = vpop.f32.mrf.mxu0
        %v3494 = vadd.f32 %v3425, %v3493
        %3495 = vmatmul.bf16.gmra.mxu0 %v3260
        %v3496 = vpop.f32.mrf.mxu0
        %v3497 = vadd.f32 %v3428, %v3496
        %v3498 = vpop.f32.mrf.mxu0
        %v3499 = vadd.f32 %v3430, %v3498
        %3500 = vmatmul.bf16.gmra.mxu0 %v3262
        %v3501 = vpop.f32.mrf.mxu0
        %v3502 = vadd.f32 %v3433, %v3501
        %v3503 = vpop.f32.mrf.mxu0
        %v3504 = vadd.f32 %v3435, %v3503
        %3505 = vmatmul.bf16.gmra.mxu0 %v3264
        %v3506 = vpop.f32.mrf.mxu0
        %v3507 = vadd.f32 %v3438, %v3506
        %v3508 = vpop.f32.mrf.mxu0
        %v3509 = vadd.f32 %v3440, %v3508
        %3510 = vmatmul.bf16.gmra.mxu0 %v3266
        %v3511 = vpop.f32.mrf.mxu0
        %v3512 = vadd.f32 %v3443, %v3511
        %v3513 = vpop.f32.mrf.mxu0
        %v3514 = vadd.f32 %v3445, %v3513
        %3515 = vmatmul.bf16.gmra.mxu0 %v3268
        %v3516 = vpop.f32.mrf.mxu0
        %v3517 = vadd.f32 %v3448, %v3516
        %v3518 = vpop.f32.mrf.mxu0
        %v3519 = vadd.f32 %v3450, %v3518
        %3520 = vmatmul.bf16.gmra.mxu0 %v3270
        %v3521 = vpop.f32.mrf.mxu0
        %v3522 = vadd.f32 %v3453, %v3521
        %v3523 = vpop.f32.mrf.mxu0
        %v3524 = vadd.f32 %v3455, %v3523
        %3525 = vmatmul.bf16.gmra.mxu0 %v3272
        %v3526 = vpop.f32.mrf.mxu0
        %v3527 = vadd.f32 %v3458, %v3526
        %v3528 = vpop.f32.mrf.mxu0
        %v3529 = vadd.f32 %v3460, %v3528
        %3530 = vmatmul.bf16.gmra.mxu0 %v3274
        %v3531 = vpop.f32.mrf.mxu0
        %v3532 = vadd.f32 %v3463, %v3531
        %v3533 = vpop.f32.mrf.mxu0
        %v3534 = vadd.f32 %v3465, %v3533
        %3535 = vmatmul.bf16.gmra.mxu0 %v3276
        %v3536 = vpop.f32.mrf.mxu0
        %v3537 = vadd.f32 %v3468, %v3536
        %v3538 = vpop.f32.mrf.mxu0
        %v3539 = vadd.f32 %v3470, %v3538
        %3540 = vmatmul.bf16.gmra.mxu0 %v3278
        %v3541 = vpop.f32.mrf.mxu0
        %v3542 = vadd.f32 %v3473, %v3541
        %v3543 = vpop.f32.mrf.mxu0
        %v3544 = vadd.f32 %v3475, %v3543
        %3545 = vmatmul.bf16.gmra.mxu0 %v3280
        %v3546 = vpop.f32.mrf.mxu0
        %v3547 = vadd.f32 %v3478, %v3546
        %v3548 = vpop.f32.mrf.mxu0
        %v3549 = vadd.f32 %v3480, %v3548
        %3550 = vdwg.mxu0
        %v3551 = vmul.f32 %v3492, %v3492
        %v3552 = vmul.f32 %v3494, %v3494
        %v3553 = vmul.f32 %v3497, %v3497
        %v3554 = vmul.f32 %v3499, %v3499
        %v3555 = vmul.f32 %v3502, %v3502
        %v3556 = vmul.f32 %v3504, %v3504
        %v3557 = vmul.f32 %v3507, %v3507
        %v3558 = vmul.f32 %v3509, %v3509
        %v3559 = vmul.f32 %v3512, %v3512
        %v3560 = vmul.f32 %v3514, %v3514
        %v3561 = vmul.f32 %v3517, %v3517
        %v3562 = vmul.f32 %v3519, %v3519
        %v3563 = vmul.f32 %v3522, %v3522
        %v3564 = vmul.f32 %v3524, %v3524
        %v3565 = vmul.f32 %v3527, %v3527
        %v3566 = vmul.f32 %v3529, %v3529
        %v3567 = vmul.f32 %v3532, %v3532
        %v3568 = vmul.f32 %v3534, %v3534
        %v3569 = vmul.f32 %v3537, %v3537
        %v3570 = vmul.f32 %v3539, %v3539
        %v3571 = vmul.f32 %v3542, %v3542
        %v3572 = vmul.f32 %v3544, %v3544
        %v3573 = vmul.f32 %v3547, %v3547
        %v3574 = vmul.f32 %v3549, %v3549
        %3575 = vadd.xlane.f32.xlu0 %v3551
        %v3576 = vpop.xlane.xlu0 %3575
        %3577 = vadd.xlane.f32.xlu0 %v3552
        %v3578 = vpop.xlane.xlu0 %3577
        %3579 = vadd.xlane.f32.xlu0 %v3553
        %v3580 = vpop.xlane.xlu0 %3579
        %3581 = vadd.xlane.f32.xlu0 %v3554
        %v3582 = vpop.xlane.xlu0 %3581
        %3583 = vadd.xlane.f32.xlu0 %v3555
        %v3584 = vpop.xlane.xlu0 %3583
        %3585 = vadd.xlane.f32.xlu0 %v3556
        %v3586 = vpop.xlane.xlu0 %3585
        %3587 = vadd.xlane.f32.xlu0 %v3557
        %v3588 = vpop.xlane.xlu0 %3587
        %3589 = vadd.xlane.f32.xlu0 %v3558
        %v3590 = vpop.xlane.xlu0 %3589
        %3591 = vadd.xlane.f32.xlu0 %v3559
        %v3592 = vpop.xlane.xlu0 %3591
        %3593 = vadd.xlane.f32.xlu0 %v3560
        %v3594 = vpop.xlane.xlu0 %3593
        %3595 = vadd.xlane.f32.xlu0 %v3561
        %v3596 = vpop.xlane.xlu0 %3595
        %3597 = vadd.xlane.f32.xlu0 %v3562
        %v3598 = vpop.xlane.xlu0 %3597
        %3599 = vadd.xlane.f32.xlu0 %v3563
        %v3600 = vpop.xlane.xlu0 %3599
        %3601 = vadd.xlane.f32.xlu0 %v3564
        %v3602 = vpop.xlane.xlu0 %3601
        %3603 = vadd.xlane.f32.xlu0 %v3565
        %v3604 = vpop.xlane.xlu0 %3603
        %3605 = vadd.xlane.f32.xlu0 %v3566
        %v3606 = vpop.xlane.xlu0 %3605
        %3607 = vadd.xlane.f32.xlu0 %v3567
        %v3608 = vpop.xlane.xlu0 %3607
        %3609 = vadd.xlane.f32.xlu0 %v3568
        %v3610 = vpop.xlane.xlu0 %3609
        %3611 = vadd.xlane.f32.xlu0 %v3569
        %v3612 = vpop.xlane.xlu0 %3611
        %3613 = vadd.xlane.f32.xlu0 %v3570
        %v3614 = vpop.xlane.xlu0 %3613
        %3615 = vadd.xlane.f32.xlu0 %v3571
        %v3616 = vpop.xlane.xlu0 %3615
        %3617 = vadd.xlane.f32.xlu0 %v3572
        %v3618 = vpop.xlane.xlu0 %3617
        %3619 = vadd.xlane.f32.xlu0 %v3573
        %v3620 = vpop.xlane.xlu0 %3619
        %3621 = vadd.xlane.f32.xlu0 %v3574
        %v3622 = vpop.xlane.xlu0 %3621
        %v3623 = vmax.f32 %v3576, 1e-24
        %v3624 = vmax.f32 %v3578, 1e-24
        %v3625 = vmax.f32 %v3580, 1e-24
        %v3626 = vmax.f32 %v3582, 1e-24
        %v3627 = vmax.f32 %v3584, 1e-24
        %v3628 = vmax.f32 %v3586, 1e-24
        %v3629 = vmax.f32 %v3588, 1e-24
        %v3630 = vmax.f32 %v3590, 1e-24
        %v3631 = vmax.f32 %v3592, 1e-24
        %v3632 = vmax.f32 %v3594, 1e-24
        %v3633 = vmax.f32 %v3596, 1e-24
        %v3634 = vmax.f32 %v3598, 1e-24
        %v3635 = vmax.f32 %v3600, 1e-24
        %v3636 = vmax.f32 %v3602, 1e-24
        %v3637 = vmax.f32 %v3604, 1e-24
        %v3638 = vmax.f32 %v3606, 1e-24
        %v3639 = vmax.f32 %v3608, 1e-24
        %v3640 = vmax.f32 %v3610, 1e-24
        %v3641 = vmax.f32 %v3612, 1e-24
        %v3642 = vmax.f32 %v3614, 1e-24
        %v3643 = vmax.f32 %v3616, 1e-24
        %v3644 = vmax.f32 %v3618, 1e-24
        %v3645 = vmax.f32 %v3620, 1e-24
        %v3646 = vmax.f32 %v3622, 1e-24
        %v3647 = vrsqrt.pop %v3623
        %v3648 = vmul.f32 %v3647, %v3623
        %v3649 = vmul.f32 %v3648, %v3647
        %v3650 = vmul.f32 0.5, %v3649
        %v3651 = vsub.f32 1.5, %v3650
        %v3652 = vmul.f32 %v3647, %v3651
        %vm3653 = vweird.f32 %v3623
        %vm3654 = vweird.f32 %v3647
        %vm3655 = vmor %vm3653, %vm3654
        %v3656 = vsel %vm3655, %v3647, %v3652
        %v3657 = vrsqrt.pop %v3624
        %v3658 = vmul.f32 %v3657, %v3624
        %v3659 = vmul.f32 %v3658, %v3657
        %v3660 = vmul.f32 0.5, %v3659
        %v3661 = vsub.f32 1.5, %v3660
        %v3662 = vmul.f32 %v3657, %v3661
        %vm3663 = vweird.f32 %v3624
        %vm3664 = vweird.f32 %v3657
        %vm3665 = vmor %vm3663, %vm3664
        %v3666 = vsel %vm3665, %v3657, %v3662
        %v3667 = vrsqrt.pop %v3625
        %v3668 = vmul.f32 %v3667, %v3625
        %v3669 = vmul.f32 %v3668, %v3667
        %v3670 = vmul.f32 0.5, %v3669
        %v3671 = vsub.f32 1.5, %v3670
        %v3672 = vmul.f32 %v3667, %v3671
        %vm3673 = vweird.f32 %v3625
        %vm3674 = vweird.f32 %v3667
        %vm3675 = vmor %vm3673, %vm3674
        %v3676 = vsel %vm3675, %v3667, %v3672
        %v3677 = vrsqrt.pop %v3626
        %v3678 = vmul.f32 %v3677, %v3626
        %v3679 = vmul.f32 %v3678, %v3677
        %v3680 = vmul.f32 0.5, %v3679
        %v3681 = vsub.f32 1.5, %v3680
        %v3682 = vmul.f32 %v3677, %v3681
        %vm3683 = vweird.f32 %v3626
        %vm3684 = vweird.f32 %v3677
        %vm3685 = vmor %vm3683, %vm3684
        %v3686 = vsel %vm3685, %v3677, %v3682
        %v3687 = vrsqrt.pop %v3627
        %v3688 = vmul.f32 %v3687, %v3627
        %v3689 = vmul.f32 %v3688, %v3687
        %v3690 = vmul.f32 0.5, %v3689
        %v3691 = vsub.f32 1.5, %v3690
        %v3692 = vmul.f32 %v3687, %v3691
        %vm3693 = vweird.f32 %v3627
        %vm3694 = vweird.f32 %v3687
        %vm3695 = vmor %vm3693, %vm3694
        %v3696 = vsel %vm3695, %v3687, %v3692
        %v3697 = vrsqrt.pop %v3628
        %v3698 = vmul.f32 %v3697, %v3628
        %v3699 = vmul.f32 %v3698, %v3697
        %v3700 = vmul.f32 0.5, %v3699
        %v3701 = vsub.f32 1.5, %v3700
        %v3702 = vmul.f32 %v3697, %v3701
        %vm3703 = vweird.f32 %v3628
        %vm3704 = vweird.f32 %v3697
        %vm3705 = vmor %vm3703, %vm3704
        %v3706 = vsel %vm3705, %v3697, %v3702
        %v3707 = vrsqrt.pop %v3629
        %v3708 = vmul.f32 %v3707, %v3629
        %v3709 = vmul.f32 %v3708, %v3707
        %v3710 = vmul.f32 0.5, %v3709
        %v3711 = vsub.f32 1.5, %v3710
        %v3712 = vmul.f32 %v3707, %v3711
        %vm3713 = vweird.f32 %v3629
        %vm3714 = vweird.f32 %v3707
        %vm3715 = vmor %vm3713, %vm3714
        %v3716 = vsel %vm3715, %v3707, %v3712
        %v3717 = vrsqrt.pop %v3630
        %v3718 = vmul.f32 %v3717, %v3630
        %v3719 = vmul.f32 %v3718, %v3717
        %v3720 = vmul.f32 0.5, %v3719
        %v3721 = vsub.f32 1.5, %v3720
        %v3722 = vmul.f32 %v3717, %v3721
        %vm3723 = vweird.f32 %v3630
        %vm3724 = vweird.f32 %v3717
        %vm3725 = vmor %vm3723, %vm3724
        %v3726 = vsel %vm3725, %v3717, %v3722
        %v3727 = vrsqrt.pop %v3631
        %v3728 = vmul.f32 %v3727, %v3631
        %v3729 = vmul.f32 %v3728, %v3727
        %v3730 = vmul.f32 0.5, %v3729
        %v3731 = vsub.f32 1.5, %v3730
        %v3732 = vmul.f32 %v3727, %v3731
        %vm3733 = vweird.f32 %v3631
        %vm3734 = vweird.f32 %v3727
        %vm3735 = vmor %vm3733, %vm3734
        %v3736 = vsel %vm3735, %v3727, %v3732
        %v3737 = vrsqrt.pop %v3632
        %v3738 = vmul.f32 %v3737, %v3632
        %v3739 = vmul.f32 %v3738, %v3737
        %v3740 = vmul.f32 0.5, %v3739
        %v3741 = vsub.f32 1.5, %v3740
        %v3742 = vmul.f32 %v3737, %v3741
        %vm3743 = vweird.f32 %v3632
        %vm3744 = vweird.f32 %v3737
        %vm3745 = vmor %vm3743, %vm3744
        %v3746 = vsel %vm3745, %v3737, %v3742
        %v3747 = vrsqrt.pop %v3633
        %v3748 = vmul.f32 %v3747, %v3633
        %v3749 = vmul.f32 %v3748, %v3747
        %v3750 = vmul.f32 0.5, %v3749
        %v3751 = vsub.f32 1.5, %v3750
        %v3752 = vmul.f32 %v3747, %v3751
        %vm3753 = vweird.f32 %v3633
        %vm3754 = vweird.f32 %v3747
        %vm3755 = vmor %vm3753, %vm3754
        %v3756 = vsel %vm3755, %v3747, %v3752
        %v3757 = vrsqrt.pop %v3634
        %v3758 = vmul.f32 %v3757, %v3634
        %v3759 = vmul.f32 %v3758, %v3757
        %v3760 = vmul.f32 0.5, %v3759
        %v3761 = vsub.f32 1.5, %v3760
        %v3762 = vmul.f32 %v3757, %v3761
        %vm3763 = vweird.f32 %v3634
        %vm3764 = vweird.f32 %v3757
        %vm3765 = vmor %vm3763, %vm3764
        %v3766 = vsel %vm3765, %v3757, %v3762
        %v3767 = vrsqrt.pop %v3635
        %v3768 = vmul.f32 %v3767, %v3635
        %v3769 = vmul.f32 %v3768, %v3767
        %v3770 = vmul.f32 0.5, %v3769
        %v3771 = vsub.f32 1.5, %v3770
        %v3772 = vmul.f32 %v3767, %v3771
        %vm3773 = vweird.f32 %v3635
        %vm3774 = vweird.f32 %v3767
        %vm3775 = vmor %vm3773, %vm3774
        %v3776 = vsel %vm3775, %v3767, %v3772
        %v3777 = vrsqrt.pop %v3636
        %v3778 = vmul.f32 %v3777, %v3636
        %v3779 = vmul.f32 %v3778, %v3777
        %v3780 = vmul.f32 0.5, %v3779
        %v3781 = vsub.f32 1.5, %v3780
        %v3782 = vmul.f32 %v3777, %v3781
        %vm3783 = vweird.f32 %v3636
        %vm3784 = vweird.f32 %v3777
        %vm3785 = vmor %vm3783, %vm3784
        %v3786 = vsel %vm3785, %v3777, %v3782
        %v3787 = vrsqrt.pop %v3637
        %v3788 = vmul.f32 %v3787, %v3637
        %v3789 = vmul.f32 %v3788, %v3787
        %v3790 = vmul.f32 0.5, %v3789
        %v3791 = vsub.f32 1.5, %v3790
        %v3792 = vmul.f32 %v3787, %v3791
        %vm3793 = vweird.f32 %v3637
        %vm3794 = vweird.f32 %v3787
        %vm3795 = vmor %vm3793, %vm3794
        %v3796 = vsel %vm3795, %v3787, %v3792
        %v3797 = vrsqrt.pop %v3638
        %v3798 = vmul.f32 %v3797, %v3638
        %v3799 = vmul.f32 %v3798, %v3797
        %v3800 = vmul.f32 0.5, %v3799
        %v3801 = vsub.f32 1.5, %v3800
        %v3802 = vmul.f32 %v3797, %v3801
        %vm3803 = vweird.f32 %v3638
        %vm3804 = vweird.f32 %v3797
        %vm3805 = vmor %vm3803, %vm3804
        %v3806 = vsel %vm3805, %v3797, %v3802
        %v3807 = vrsqrt.pop %v3639
        %v3808 = vmul.f32 %v3807, %v3639
        %v3809 = vmul.f32 %v3808, %v3807
        %v3810 = vmul.f32 0.5, %v3809
        %v3811 = vsub.f32 1.5, %v3810
        %v3812 = vmul.f32 %v3807, %v3811
        %vm3813 = vweird.f32 %v3639
        %vm3814 = vweird.f32 %v3807
        %vm3815 = vmor %vm3813, %vm3814
        %v3816 = vsel %vm3815, %v3807, %v3812
        %v3817 = vrsqrt.pop %v3640
        %v3818 = vmul.f32 %v3817, %v3640
        %v3819 = vmul.f32 %v3818, %v3817
        %v3820 = vmul.f32 0.5, %v3819
        %v3821 = vsub.f32 1.5, %v3820
        %v3822 = vmul.f32 %v3817, %v3821
        %vm3823 = vweird.f32 %v3640
        %vm3824 = vweird.f32 %v3817
        %vm3825 = vmor %vm3823, %vm3824
        %v3826 = vsel %vm3825, %v3817, %v3822
        %v3827 = vrsqrt.pop %v3641
        %v3828 = vmul.f32 %v3827, %v3641
        %v3829 = vmul.f32 %v3828, %v3827
        %v3830 = vmul.f32 0.5, %v3829
        %v3831 = vsub.f32 1.5, %v3830
        %v3832 = vmul.f32 %v3827, %v3831
        %vm3833 = vweird.f32 %v3641
        %vm3834 = vweird.f32 %v3827
        %vm3835 = vmor %vm3833, %vm3834
        %v3836 = vsel %vm3835, %v3827, %v3832
        %v3837 = vrsqrt.pop %v3642
        %v3838 = vmul.f32 %v3837, %v3642
        %v3839 = vmul.f32 %v3838, %v3837
        %v3840 = vmul.f32 0.5, %v3839
        %v3841 = vsub.f32 1.5, %v3840
        %v3842 = vmul.f32 %v3837, %v3841
        %vm3843 = vweird.f32 %v3642
        %vm3844 = vweird.f32 %v3837
        %vm3845 = vmor %vm3843, %vm3844
        %v3846 = vsel %vm3845, %v3837, %v3842
        %v3847 = vrsqrt.pop %v3643
        %v3848 = vmul.f32 %v3847, %v3643
        %v3849 = vmul.f32 %v3848, %v3847
        %v3850 = vmul.f32 0.5, %v3849
        %v3851 = vsub.f32 1.5, %v3850
        %v3852 = vmul.f32 %v3847, %v3851
        %vm3853 = vweird.f32 %v3643
        %vm3854 = vweird.f32 %v3847
        %vm3855 = vmor %vm3853, %vm3854
        %v3856 = vsel %vm3855, %v3847, %v3852
        %v3857 = vrsqrt.pop %v3644
        %v3858 = vmul.f32 %v3857, %v3644
        %v3859 = vmul.f32 %v3858, %v3857
        %v3860 = vmul.f32 0.5, %v3859
        %v3861 = vsub.f32 1.5, %v3860
        %v3862 = vmul.f32 %v3857, %v3861
        %vm3863 = vweird.f32 %v3644
        %vm3864 = vweird.f32 %v3857
        %vm3865 = vmor %vm3863, %vm3864
        %v3866 = vsel %vm3865, %v3857, %v3862
        %v3867 = vrsqrt.pop %v3645
        %v3868 = vmul.f32 %v3867, %v3645
        %v3869 = vmul.f32 %v3868, %v3867
        %v3870 = vmul.f32 0.5, %v3869
        %v3871 = vsub.f32 1.5, %v3870
        %v3872 = vmul.f32 %v3867, %v3871
        %vm3873 = vweird.f32 %v3645
        %vm3874 = vweird.f32 %v3867
        %vm3875 = vmor %vm3873, %vm3874
        %v3876 = vsel %vm3875, %v3867, %v3872
        %v3877 = vrsqrt.pop %v3646
        %v3878 = vmul.f32 %v3877, %v3646
        %v3879 = vmul.f32 %v3878, %v3877
        %v3880 = vmul.f32 0.5, %v3879
        %v3881 = vsub.f32 1.5, %v3880
        %v3882 = vmul.f32 %v3877, %v3881
        %vm3883 = vweird.f32 %v3646
        %vm3884 = vweird.f32 %v3877
        %vm3885 = vmor %vm3883, %vm3884
        %v3886 = vsel %vm3885, %v3877, %v3882
        %v3887 = vmul.f32 %v3492, %v3656
        %v3888 = vmul.f32 %v3494, %v3666
        %v3889 = vmul.f32 %v3497, %v3676
        %v3890 = vmul.f32 %v3499, %v3686
        %v3891 = vmul.f32 %v3502, %v3696
        %v3892 = vmul.f32 %v3504, %v3706
        %v3893 = vmul.f32 %v3507, %v3716
        %v3894 = vmul.f32 %v3509, %v3726
        %v3895 = vmul.f32 %v3512, %v3736
        %v3896 = vmul.f32 %v3514, %v3746
        %v3897 = vmul.f32 %v3517, %v3756
        %v3898 = vmul.f32 %v3519, %v3766
        %v3899 = vmul.f32 %v3522, %v3776
        %v3900 = vmul.f32 %v3524, %v3786
        %v3901 = vmul.f32 %v3527, %v3796
        %v3902 = vmul.f32 %v3529, %v3806
        %v3903 = vmul.f32 %v3532, %v3816
        %v3904 = vmul.f32 %v3534, %v3826
        %v3905 = vmul.f32 %v3537, %v3836
        %v3906 = vmul.f32 %v3539, %v3846
        %v3907 = vmul.f32 %v3542, %v3856
        %v3908 = vmul.f32 %v3544, %v3866
        %v3909 = vmul.f32 %v3547, %v3876
        %v3910 = vmul.f32 %v3549, %v3886
        %3911 = vst [vmem:[%s344] sm:$0xff] %v3887
        %3912 = vst [vmem:[%s344 + $0x8] sm:$0xff] %v3888
        %3913 = vst [vmem:[%s344 + $0x10] sm:$0xff] %v3889
        %3914 = vst [vmem:[%s344 + $0x18] sm:$0xff] %v3890
        %3915 = vst [vmem:[%s344 + $0x20] sm:$0xff] %v3891
        %3916 = vst [vmem:[%s344 + $0x28] sm:$0xff] %v3892
        %3917 = vst [vmem:[%s344 + $0x30] sm:$0xff] %v3893
        %3918 = vst [vmem:[%s344 + $0x38] sm:$0xff] %v3894
        %3919 = vst [vmem:[%s344 + $0x40] sm:$0xff] %v3895
        %3920 = vst [vmem:[%s344 + $0x48] sm:$0xff] %v3896
        %3921 = vst [vmem:[%s344 + $0x50] sm:$0xff] %v3897
        %3922 = vst [vmem:[%s344 + $0x58] sm:$0xff] %v3898
        %3923 = vst [vmem:[%s344 + $0x60] sm:$0xff] %v3899
        %3924 = vst [vmem:[%s344 + $0x68] sm:$0xff] %v3900
        %3925 = vst [vmem:[%s344 + $0x70] sm:$0xff] %v3901
        %3926 = vst [vmem:[%s344 + $0x78] sm:$0xff] %v3902
        %3927 = vst [vmem:[%s344 + $0x80] sm:$0xff] %v3903
        %3928 = vst [vmem:[%s344 + $0x88] sm:$0xff] %v3904
        %3929 = vst [vmem:[%s344 + $0x90] sm:$0xff] %v3905
        %3930 = vst [vmem:[%s344 + $0x98] sm:$0xff] %v3906
        %3931 = vst [vmem:[%s344 + $0xa0] sm:$0xff] %v3907
        %3932 = vst [vmem:[%s344 + $0xa8] sm:$0xff] %v3908
        %3933 = vst [vmem:[%s344 + $0xb0] sm:$0xff] %v3909
        %3934 = vst [vmem:[%s344 + $0xb8] sm:$0xff] %v3910
        %s3935 = sand.u32 %s230, 1
        %s3936 = scalar_lea.sflag [#allocation3], %s3935
        %s3937 = sand.u32 %s230, 1
        %s3938 = smul.addr %s3937, 192
        %s3939 = scalar_lea.vmem [#allocation2], %s3938
        // Predicated region
        $region57: #{h_to_clip_joint_forward.1} parent=55 // pred_check
          %p3940 = pneg %p240
        $region58: #{h_to_clip_joint_forward.1} parent=55 // pred_check_branch
          %3942 = sbr.rel (%p3940) target = $region60
        $region59: #{h_to_clip_joint_forward.1} parent=55 // pred_region
          %s3943 = smul.u32 24, %s23
          %3945 = vsyncadd %s3936, 0
          %s3946 = smul.addr %s3943, 8
          %s3947 = scalar_lea.hbm %s9, %s3946
          %s3948 = sshll.u32 %s3939, 4
          %s3949 = int_to_ptr.vmem [resolvable:$true] %s3948
          %s3950 = sshll.u32 %s3947, 4
          %s3951 = int_to_ptr.hbm [resolvable:$true] %s3950
          %3956 = dma.vmem_to_hbm [thread:$0]  %s3949, 3072, %s3951, %s3936, 128, 128, 8
        $region60: #{h_to_clip_joint_forward.1} parent=55 // pred_fallthru
          _
      $region56: #{h_to_clip_joint_forward.1} parent=5 // pred_fallthru
        _
      %p3957 = scmp.le.s32.totalorder 2, %s18
      // Predicated region
      $region61: #{h_to_clip_joint_forward.1} parent=5 // pred_check
        %p3958 = pneg %p3957
      $region62: #{h_to_clip_joint_forward.1} parent=5 // pred_check_branch
        %3960 = sbr.rel (%p3958) target = $region64
      $region63: #{h_to_clip_joint_forward.1} parent=5 // pred_region
        %s3961 = ssub.s32 %s18, 2
        // Predicated region
        $region65: #{h_to_clip_joint_forward.1} parent=63 // pred_check
          %p3962 = pneg %p246
        $region66: #{h_to_clip_joint_forward.1} parent=63 // pred_check_branch
          %3964 = sbr.rel (%p3962) target = $region68
        $region67: #{h_to_clip_joint_forward.1} parent=63 // pred_region
          %s3965 = sand.u32 %s231, 1
          %s3966 = scalar_lea.sflag [#allocation3], %s3965
          %s3967 = sand.u32 %s231, 1
          %s3968 = smul.addr %s3967, 192
          %s3969 = scalar_lea.vmem [#allocation2], %s3968
          %3971 = dma.done %s3966, 3072
        $region68: #{h_to_clip_joint_forward.1} parent=63 // pred_fallthru
          _
      $region64: #{h_to_clip_joint_forward.1} parent=5 // pred_fallthru
        _
    $region6: #{h_to_clip_joint_forward.1} parent=1 // loop_footer
      %s22 = sadd.s32 1, %s18
    $region7: #{h_to_clip_joint_forward.1} parent=1 // loop_footer_branch
      %17 = sbr.rel target = $region3
    $region8: #{h_to_clip_joint_forward.1} parent=1 // loop_exit
      _
    %3972 = vsyncpa [#allocation3], 1
    %s3973 = scalar_lea.sflag [#allocation3], 1
    %3974 = vsyncpa %s3973, 1

</llo_original>
